<compile_context>
chip_gen: v6e
topology: v6e:2x2x1
jax: 0.10.0
libtpu: 0.0.40
codegen_flags: <defaults>
</compile_context>

<pallas_src>
import functools
import math

import jax
import jax.numpy as jnp
from jax import lax
from jax.experimental import pallas as pl
from jax.experimental.pallas import tpu as pltpu


# ----------------------------------------------------------------------------
# Fused Pallas kernel: all heads + output layer + sigmoid
# ----------------------------------------------------------------------------
def _fused_signed_gat_kernel(x_ref, adj_ref, wh_ref, a1_ref, a2_ref,
                             wt1_ref, wt2_ref, wout_ref, a1o_ref, a2o_ref,
                             wto1_ref, wto2_ref, out_ref,
                             *, alpha, n_heads, use_bf16):
    f32 = jnp.float32

    def mdt(a, b):
        """MXU matmul, f32 accumulation (bf16 operands on v6e/v7x if enabled)."""
        if use_bf16:
            a = a.astype(jnp.bfloat16)
            b = b.astype(jnp.bfloat16)
        return jnp.dot(a, b, preferred_element_type=f32)

    def mdt_bt(a, b):
        """a @ b.T (contract last dims) — row-form result without an XLU transpose."""
        if use_bf16:
            a = a.astype(jnp.bfloat16)
            b = b.astype(jnp.bfloat16)
        return lax.dot_general(a, b, (((1,), (1,)), ((), ())),
                               preferred_element_type=f32)

    x = x_ref[...]                         # (N, F) node features, f32
    mask = adj_ref[...] > 0.0              # (N, N) bool — computed ONCE, reused 5x
    neg_inf = jnp.float32(-1.0e12)

    def leaky_relu(e):
        return jnp.where(e > 0, e, alpha * e)

    def masked_softmax(z):
        z = jnp.where(mask, z, neg_inf)
        m = jnp.max(z, axis=1, keepdims=True)
        p = jnp.exp(z - m)
        s = jnp.sum(p, axis=1, keepdims=True)
        return p * pl.reciprocal(s, approx=True)   # EUP reciprocal, ~free

    # ---------------- multi-head attention (all heads fused) ----------------
    h_all = mdt(x, wh_ref[...])            # (N, H*Fo)  lane-dense, 128 wide
    wh1 = mdt(h_all, a1_ref[...])          # (N, H)   all heads' Wh1 in one push
    wh2t = mdt_bt(a2_ref[...], h_all)      # (H, N)   all heads' Wh2, row form

    blocks = []
    for hi in range(n_heads):              # unrolled at trace time (H is small)
        e = leaky_relu(wh1[:, hi:hi + 1] + wh2t[hi:hi + 1, :])    # (N, N)
        att = masked_softmax(e)             # positive attention
        natt = masked_softmax(-e)           # |negative| attention (sign folded below)
        # Reassociated: att @ (x @ wtrans_top) - natt @ (x @ wtrans_bot)
        # (the torch code aggregates the *input* features, not h)
        y1 = mdt(x, wt1_ref[hi])            # (N, Fo)
        y2 = mdt(x, wt2_ref[hi])            # (N, Fo)
        blk = mdt(att, y1) - mdt(natt, y2)  # (N, Fo)
        blocks.append(jnp.where(blk > 0, blk, jnp.exp(blk) - 1.0))   # ELU
    x_cat = jnp.concatenate(blocks, axis=1)                          # (N, H*Fo) = 128 lanes

    # ---------------- output GAT layer (concat=False) + sigmoid --------------
    h2 = mdt(x_cat, wout_ref[...])          # (N, Fo)
    wh1o = mdt(h2, a1o_ref[...])            # (N, 1)
    wh2ot = mdt_bt(a2o_ref[...], h2)        # (1, N)  row form, no transpose
    e2 = leaky_relu(wh1o + wh2ot)           # (N, N)
    att2 = masked_softmax(e2)
    natt2 = masked_softmax(-e2)
    z1 = mdt(x_cat, wto1_ref[...])          # (N, Fo)   reassociated
    z2 = mdt(x_cat, wto2_ref[...])          # (N, Fo)
    out = mdt(att2, z1) - mdt(natt2, z2)    # (N, Fo)
    out = 1.0 / (1.0 + jnp.exp(-out))       # sigmoid (exact: stays in [0, 1])

    out_ref[...] = out.astype(out_ref.dtype)


def fused_signed_gat(X, adj, packed, *, alpha, nb_heads, use_bf16=True):
    """Full Signed_GAT forward (all heads + out layer + sigmoid) in one pallas_call."""
    n = X.shape[0]
    n_output = packed["W_out"].shape[1]
    kernel = functools.partial(_fused_signed_gat_kernel, alpha=alpha,
                               n_heads=nb_heads, use_bf16=use_bf16)
    vmem = pl.BlockSpec(memory_space=pltpu.MemorySpace.VMEM)
    return pl.pallas_call(
        kernel,
        out_shape=jax.ShapeDtypeStruct((n, n_output), jnp.float32),
        in_specs=[vmem] * 12,
        out_specs=vmem,
    )(X, adj, packed["Wh"], packed["A1_bd"], packed["A2_rows"],
      packed["WT1"], packed["WT2"], packed["W_out"],
      packed["a1_out"], packed["a2_out"], packed["WTo1"], packed["WTo2"])


# ----------------------------------------------------------------------------
# Parameter construction (deterministic, xavier_uniform gain=1.414 like torch)
# ----------------------------------------------------------------------------
def _xavier_uniform(key, shape, gain=1.414):
    fan_in, fan_out = shape[0], shape[1]
    bound = gain * math.sqrt(6.0 / (fan_in + fan_out))
    return jax.random.uniform(key, shape, jnp.float32, -bound, bound)


def _pack_params(heads, out, *, nfeat, n_output, nb_heads):
    """Pack per-head params into lane-dense / block-structured matrices (host side, once)."""
    F, Fo, H = nfeat, n_output, nb_heads
    assert F == Fo, "head GraphAttentionLayer requires nfeat == n_output (as in the torch module)"

    Wh = jnp.concatenate([h["W"] for h in heads], axis=1)          # (F, H*Fo)
    A1_bd = jnp.zeros((H * Fo, H), jnp.float32)                    # block columns
    A2_rows = jnp.zeros((H, H * Fo), jnp.float32)                  # block rows
    for hi, hp in enumerate(heads):
        A1_bd = A1_bd.at[hi * Fo:(hi + 1) * Fo, hi].set(hp["a"][:Fo, 0])
        A2_rows = A2_rows.at[hi, hi * Fo:(hi + 1) * Fo].set(hp["a"][Fo:, 0])

    # per-head wtrans halves as dense stacks (used via the reassociated matmuls)
    WT1 = jnp.stack([h["wtrans"][:F, :] for h in heads], axis=0)   # (H, F, Fo)
    WT2 = jnp.stack([h["wtrans"][F:, :] for h in heads], axis=0)   # (H, F, Fo)

    out_in = F * H
    return dict(
        Wh=Wh, A1_bd=A1_bd, A2_rows=A2_rows, WT1=WT1, WT2=WT2,
        W_out=out["W"],                      # (H*F, Fo)
        a1_out=out["a"][:Fo, :],             # (Fo, 1)  column
        a2_out=out["a"][Fo:, :].T,           # (1, Fo)  row (lane-major)
        WTo1=out["wtrans"][:out_in, :],      # (H*F, Fo)
        WTo2=out["wtrans"][out_in:, :],      # (H*F, Fo)
    )


def init_signed_gat_params(key, *, uV, nfeat, n_output, nb_heads,
                           node_embedding, cosmatrix, original_adj):
    keys = jax.random.split(key, 3 * nb_heads + 3)

    heads = []
    for i in range(nb_heads):
        heads.append(dict(
            W=_xavier_uniform(keys[3 * i + 0], (nfeat, n_output)),
            a=_xavier_uniform(keys[3 * i + 1], (2 * n_output, 1)),
            wtrans=_xavier_uniform(keys[3 * i + 2], (2 * n_output, n_output)),
        ))

    out_in = nfeat * nb_heads
    out = dict(
        W=_xavier_uniform(keys[-3], (out_in, n_output)),
        a=_xavier_uniform(keys[-2], (2 * n_output, 1)),
        # TODO(synk): original module's out_att wtrans is (2*n_output, n_output) and
        # cannot multiply (N, 2*in_features); sized (2*in_features, out_features) here.
        wtrans=_xavier_uniform(keys[-1], (2 * out_in, n_output)),
    )

    # embedding table (padding_idx=0 -> row 0 zeroed, matching nn.Embedding)
    emb = node_embedding.astype(jnp.float32)
    emb = emb.at[0].set(0.0)

    # adjacency: binarize(original_adj + (cosmatrix > 0.5))
    potential = jnp.where(cosmatrix > 0.5, 1.0, 0.0)
    adj = original_adj.astype(jnp.float32) + potential
    adj = jnp.where(adj > 0, 1.0, 0.0).astype(jnp.float32)

    packed = _pack_params(heads, out, nfeat=nfeat, n_output=n_output, nb_heads=nb_heads)
    return dict(embedding=emb, adj=adj, heads=heads, out=out,
                packed=packed, nb_heads=nb_heads)


# ----------------------------------------------------------------------------
# Signed_GAT forward
# ----------------------------------------------------------------------------
def signed_gat_forward(params, X_tid, *, alpha=0.3, use_bf16=True):
    full = fused_signed_gat(params["embedding"], params["adj"], params["packed"],
                            alpha=alpha, nb_heads=params["nb_heads"],
                            use_bf16=use_bf16)                      # (uV, n_output)
    return full[X_tid]                                              # (batch, n_output)


# ----------------------------------------------------------------------------
# Pure-JAX reference (unfused, f32) for correctness checking
# ----------------------------------------------------------------------------
def _gat_layer_ref(inp, adj, W, a, wtrans, *, alpha, concat):
    h = inp @ W
    fo = W.shape[1]
    wh1 = h @ a[:fo, :]
    wh2 = h @ a[fo:, :]
    e = wh1 + wh2.T
    e = jnp.where(e > 0, e, alpha * e)
    neg = jnp.float32(-1.0e12)
    att = jax.nn.softmax(jnp.where(adj > 0, e, neg), axis=1)
    natt = -jax.nn.softmax(jnp.where(adj > 0, -e, neg), axis=1)
    out = jnp.concatenate([att @ inp, natt @ inp], axis=1) @ wtrans
    if concat:
        out = jnp.where(out > 0, out, jnp.exp(out) - 1.0)
    return out


def signed_gat_ref(params, X_tid, *, alpha=0.3):
    X, adj = params["embedding"], params["adj"]
    outs = [_gat_layer_ref(X, adj, h["W"], h["a"], h["wtrans"], alpha=alpha, concat=True)
            for h in params["heads"]]
    x = jnp.concatenate(outs, axis=1)
    o = params["out"]
    x = _gat_layer_ref(x, adj, o["W"], o["a"], o["wtrans"], alpha=alpha, concat=False)
    x = 1.0 / (1.0 + jnp.exp(-x))
    return x[X_tid]


# ----------------------------------------------------------------------------
if __name__ == "__main__":
    uV = 64          # number of graph nodes
    nfeat = 32       # embedding / feature dim (stands in for 300)
    n_output = 32
    nb_heads = 4
    alpha = 0.3

    key = jax.random.PRNGKey(0)
    k_emb, k_cos, k_adj, k_par = jax.random.split(key, 4)

    node_embedding = jax.random.normal(k_emb, (uV, nfeat), jnp.float32)
    cosmatrix = jax.random.uniform(k_cos, (uV, uV), jnp.float32)
    original_adj = (jax.random.uniform(k_adj, (uV, uV), jnp.float32) > 0.8
                    ).astype(jnp.float32)
    # every node gets a self-loop so all softmax rows are well-defined
    original_adj = jnp.maximum(original_adj, jnp.eye(uV, dtype=jnp.float32))

    params = init_signed_gat_params(
        k_par, uV=uV, nfeat=nfeat, n_output=n_output, nb_heads=nb_heads,
        node_embedding=node_embedding, cosmatrix=cosmatrix,
        original_adj=original_adj)

    X_tid = jnp.array([0, 3, 7, 11], dtype=jnp.int32)

    # correctness: f32-MXU kernel vs pure-JAX reference
    out_f32 = jax.block_until_ready(
        signed_gat_forward(params, X_tid, alpha=alpha, use_bf16=False))
    ref = jax.block_until_ready(signed_gat_ref(params, X_tid, alpha=alpha))
    assert out_f32.shape == (X_tid.shape[0], n_output)
    assert bool(jnp.all(jnp.isfinite(out_f32)))
    assert bool(jnp.allclose(out_f32, ref, atol=2e-2, rtol=2e-2)), \
        f"max abs diff {float(jnp.max(jnp.abs(out_f32 - ref)))}"

    # perf path: bf16 MXU operands (v6e/v7x friendly), f32 elementwise
    out = jax.block_until_ready(
        signed_gat_forward(params, X_tid, alpha=alpha, use_bf16=True))
    assert out.shape == (X_tid.shape[0], n_output)
    assert bool(jnp.all(jnp.isfinite(out)))
    assert bool(jnp.all((out >= 0.0) & (out <= 1.0)))   # sigmoid output range

    print("KERNEL_OK")
</pallas_src>

<mosaic_0001>
module attributes {stable_mosaic.version = 11 : i64} {
  func.func @_fused_signed_gat_kernel(%arg0: memref<64x32xf32, #tpu.memory_space<vmem>>, %arg1: memref<64x64xf32, #tpu.memory_space<vmem>>, %arg2: memref<32x128xf32, #tpu.memory_space<vmem>>, %arg3: memref<128x4xf32, #tpu.memory_space<vmem>>, %arg4: memref<4x128xf32, #tpu.memory_space<vmem>>, %arg5: memref<4x32x32xf32, #tpu.memory_space<vmem>>, %arg6: memref<4x32x32xf32, #tpu.memory_space<vmem>>, %arg7: memref<128x32xf32, #tpu.memory_space<vmem>>, %arg8: memref<32x1xf32, #tpu.memory_space<vmem>>, %arg9: memref<1x32xf32, #tpu.memory_space<vmem>>, %arg10: memref<128x32xf32, #tpu.memory_space<vmem>>, %arg11: memref<128x32xf32, #tpu.memory_space<vmem>>, %arg12: memref<64x32xf32, #tpu.memory_space<vmem>>) attributes {dimension_semantics = [], scalar_prefetch = 0 : i64, scratch_operands = 0 : i64, tpu.core_type = #tpu.core_type<tc>} {
    %c0 = arith.constant 0 : index
    %c0_0 = arith.constant 0 : index
    %0 = vector.load %arg0[%c0, %c0_0] : memref<64x32xf32, #tpu.memory_space<vmem>>, vector<64x32xf32>
    %c0_1 = arith.constant 0 : index
    %c0_2 = arith.constant 0 : index
    %1 = vector.load %arg1[%c0_1, %c0_2] : memref<64x64xf32, #tpu.memory_space<vmem>>, vector<64x64xf32>
    %cst = arith.constant 0.000000e+00 : f32
    %2 = vector.broadcast %cst : f32 to vector<64x64xf32>
    %3 = arith.cmpf ogt, %1, %2 : vector<64x64xf32>
    %c0_3 = arith.constant 0 : index
    %c0_4 = arith.constant 0 : index
    %4 = vector.load %arg2[%c0_3, %c0_4] : memref<32x128xf32, #tpu.memory_space<vmem>>, vector<32x128xf32>
    %cst_5 = arith.constant dense<0.000000e+00> : vector<64x128xf32>
    %5 = tpu.matmul %0, %4, %cst_5 {dimension_numbers = #tpu.dot_dimension_numbers<[1], [0], [0], [1], [0, 0, 1, 1], [], []>} : vector<64x32xf32>, vector<32x128xf32>, vector<64x128xf32> -> vector<64x128xf32>
    %c0_6 = arith.constant 0 : index
    %c0_7 = arith.constant 0 : index
    %6 = vector.load %arg3[%c0_6, %c0_7] : memref<128x4xf32, #tpu.memory_space<vmem>>, vector<128x4xf32>
    %cst_8 = arith.constant dense<0.000000e+00> : vector<64x4xf32>
    %7 = tpu.matmul %5, %6, %cst_8 {dimension_numbers = #tpu.dot_dimension_numbers<[1], [0], [0], [1], [0, 0, 1, 1], [], []>} : vector<64x128xf32>, vector<128x4xf32>, vector<64x4xf32> -> vector<64x4xf32>
    %c0_9 = arith.constant 0 : index
    %c0_10 = arith.constant 0 : index
    %8 = vector.load %arg4[%c0_9, %c0_10] : memref<4x128xf32, #tpu.memory_space<vmem>>, vector<4x128xf32>
    %cst_11 = arith.constant dense<0.000000e+00> : vector<4x64xf32>
    %9 = tpu.matmul %8, %5, %cst_11 {dimension_numbers = #tpu.dot_dimension_numbers<[1], [1], [0], [0], [0, 0, 1, 0], [], []>} : vector<4x128xf32>, vector<64x128xf32>, vector<4x64xf32> -> vector<4x64xf32>
    %10 = vector.extract_strided_slice %7 {offsets = [0, 0], sizes = [64, 1], strides = [1, 1]} : vector<64x4xf32> to vector<64x1xf32>
    %11 = vector.extract_strided_slice %9 {offsets = [0, 0], sizes = [1, 64], strides = [1, 1]} : vector<4x64xf32> to vector<1x64xf32>
    %12 = vector.broadcast %10 : vector<64x1xf32> to vector<64x64xf32>
    %13 = vector.broadcast %11 : vector<1x64xf32> to vector<64x64xf32>
    %14 = arith.addf %12, %13 : vector<64x64xf32>
    %cst_12 = arith.constant 0.000000e+00 : f32
    %15 = vector.broadcast %cst_12 : f32 to vector<64x64xf32>
    %16 = arith.cmpf ogt, %14, %15 : vector<64x64xf32>
    %cst_13 = arith.constant 3.000000e-01 : f32
    %17 = vector.broadcast %cst_13 : f32 to vector<64x64xf32>
    %18 = arith.mulf %17, %14 : vector<64x64xf32>
    %19 = arith.select %16, %14, %18 : vector<64x64xi1>, vector<64x64xf32>
    %cst_14 = arith.constant -9.99999995E+11 : f32
    %20 = vector.broadcast %cst_14 : f32 to vector<64x64xf32>
    %21 = arith.select %3, %19, %20 : vector<64x64xi1>, vector<64x64xf32>
    %cst_15 = arith.constant dense<0xFF800000> : vector<64xf32>
    %22 = vector.multi_reduction <maximumf>, %21, %cst_15 [1] : vector<64x64xf32> to vector<64xf32>
    %23 = vector.shape_cast %22 : vector<64xf32> to vector<64x1xf32>
    %24 = vector.broadcast %23 : vector<64x1xf32> to vector<64x64xf32>
    %25 = arith.subf %21, %24 : vector<64x64xf32>
    %26 = math.exp %25 : vector<64x64xf32>
    %cst_16 = arith.constant dense<0.000000e+00> : vector<64xf32>
    %27 = vector.multi_reduction <add>, %26, %cst_16 [1] : vector<64x64xf32> to vector<64xf32>
    %28 = vector.shape_cast %27 : vector<64xf32> to vector<64x1xf32>
    %29 = tpu.reciprocal %28 {approx = true} : vector<64x1xf32> -> vector<64x1xf32>
    %30 = vector.broadcast %29 : vector<64x1xf32> to vector<64x64xf32>
    %31 = arith.mulf %26, %30 : vector<64x64xf32>
    %cst_17 = arith.constant 0.000000e+00 : f32
    %32 = vector.broadcast %cst_17 : f32 to vector<64x64xf32>
    %33 = arith.subf %32, %19 : vector<64x64xf32>
    %cst_18 = arith.constant -9.99999995E+11 : f32
    %34 = vector.broadcast %cst_18 : f32 to vector<64x64xf32>
    %35 = arith.select %3, %33, %34 : vector<64x64xi1>, vector<64x64xf32>
    %cst_19 = arith.constant dense<0xFF800000> : vector<64xf32>
    %36 = vector.multi_reduction <maximumf>, %35, %cst_19 [1] : vector<64x64xf32> to vector<64xf32>
    %37 = vector.shape_cast %36 : vector<64xf32> to vector<64x1xf32>
    %38 = vector.broadcast %37 : vector<64x1xf32> to vector<64x64xf32>
    %39 = arith.subf %35, %38 : vector<64x64xf32>
    %40 = math.exp %39 : vector<64x64xf32>
    %cst_20 = arith.constant dense<0.000000e+00> : vector<64xf32>
    %41 = vector.multi_reduction <add>, %40, %cst_20 [1] : vector<64x64xf32> to vector<64xf32>
    %42 = vector.shape_cast %41 : vector<64xf32> to vector<64x1xf32>
    %43 = tpu.reciprocal %42 {approx = true} : vector<64x1xf32> -> vector<64x1xf32>
    %44 = vector.broadcast %43 : vector<64x1xf32> to vector<64x64xf32>
    %45 = arith.mulf %40, %44 : vector<64x64xf32>
    %c0_21 = arith.constant 0 : index
    %c0_22 = arith.constant 0 : index
    %c0_23 = arith.constant 0 : index
    %46 = vector.load %arg5[%c0_21, %c0_22, %c0_23] : memref<4x32x32xf32, #tpu.memory_space<vmem>>, vector<1x32x32xf32>
    %47 = vector.shape_cast %46 : vector<1x32x32xf32> to vector<32x32xf32>
    %cst_24 = arith.constant dense<0.000000e+00> : vector<64x32xf32>
    %48 = tpu.matmul %0, %47, %cst_24 {dimension_numbers = #tpu.dot_dimension_numbers<[1], [0], [0], [1], [0, 0, 1, 1], [], []>} : vector<64x32xf32>, vector<32x32xf32>, vector<64x32xf32> -> vector<64x32xf32>
    %c0_25 = arith.constant 0 : index
    %c0_26 = arith.constant 0 : index
    %c0_27 = arith.constant 0 : index
    %49 = vector.load %arg6[%c0_25, %c0_26, %c0_27] : memref<4x32x32xf32, #tpu.memory_space<vmem>>, vector<1x32x32xf32>
    %50 = vector.shape_cast %49 : vector<1x32x32xf32> to vector<32x32xf32>
    %cst_28 = arith.constant dense<0.000000e+00> : vector<64x32xf32>
    %51 = tpu.matmul %0, %50, %cst_28 {dimension_numbers = #tpu.dot_dimension_numbers<[1], [0], [0], [1], [0, 0, 1, 1], [], []>} : vector<64x32xf32>, vector<32x32xf32>, vector<64x32xf32> -> vector<64x32xf32>
    %cst_29 = arith.constant dense<0.000000e+00> : vector<64x32xf32>
    %52 = tpu.matmul %31, %48, %cst_29 {dimension_numbers = #tpu.dot_dimension_numbers<[1], [0], [0], [1], [0, 0, 1, 1], [], []>} : vector<64x64xf32>, vector<64x32xf32>, vector<64x32xf32> -> vector<64x32xf32>
    %cst_30 = arith.constant dense<0.000000e+00> : vector<64x32xf32>
    %53 = tpu.matmul %45, %51, %cst_30 {dimension_numbers = #tpu.dot_dimension_numbers<[1], [0], [0], [1], [0, 0, 1, 1], [], []>} : vector<64x64xf32>, vector<64x32xf32>, vector<64x32xf32> -> vector<64x32xf32>
    %54 = arith.subf %52, %53 : vector<64x32xf32>
    %cst_31 = arith.constant 0.000000e+00 : f32
    %55 = vector.broadcast %cst_31 : f32 to vector<64x32xf32>
    %56 = arith.cmpf ogt, %54, %55 : vector<64x32xf32>
    %57 = math.exp %54 : vector<64x32xf32>
    %cst_32 = arith.constant 1.000000e+00 : f32
    %58 = vector.broadcast %cst_32 : f32 to vector<64x32xf32>
    %59 = arith.subf %57, %58 : vector<64x32xf32>
    %60 = arith.select %56, %54, %59 : vector<64x32xi1>, vector<64x32xf32>
    %61 = vector.extract_strided_slice %7 {offsets = [0, 1], sizes = [64, 1], strides = [1, 1]} : vector<64x4xf32> to vector<64x1xf32>
    %62 = vector.extract_strided_slice %9 {offsets = [1, 0], sizes = [1, 64], strides = [1, 1]} : vector<4x64xf32> to vector<1x64xf32>
    %63 = vector.broadcast %61 : vector<64x1xf32> to vector<64x64xf32>
    %64 = vector.broadcast %62 : vector<1x64xf32> to vector<64x64xf32>
    %65 = arith.addf %63, %64 : vector<64x64xf32>
    %cst_33 = arith.constant 0.000000e+00 : f32
    %66 = vector.broadcast %cst_33 : f32 to vector<64x64xf32>
    %67 = arith.cmpf ogt, %65, %66 : vector<64x64xf32>
    %cst_34 = arith.constant 3.000000e-01 : f32
    %68 = vector.broadcast %cst_34 : f32 to vector<64x64xf32>
    %69 = arith.mulf %68, %65 : vector<64x64xf32>
    %70 = arith.select %67, %65, %69 : vector<64x64xi1>, vector<64x64xf32>
    %cst_35 = arith.constant -9.99999995E+11 : f32
    %71 = vector.broadcast %cst_35 : f32 to vector<64x64xf32>
    %72 = arith.select %3, %70, %71 : vector<64x64xi1>, vector<64x64xf32>
    %cst_36 = arith.constant dense<0xFF800000> : vector<64xf32>
    %73 = vector.multi_reduction <maximumf>, %72, %cst_36 [1] : vector<64x64xf32> to vector<64xf32>
    %74 = vector.shape_cast %73 : vector<64xf32> to vector<64x1xf32>
    %75 = vector.broadcast %74 : vector<64x1xf32> to vector<64x64xf32>
    %76 = arith.subf %72, %75 : vector<64x64xf32>
    %77 = math.exp %76 : vector<64x64xf32>
    %cst_37 = arith.constant dense<0.000000e+00> : vector<64xf32>
    %78 = vector.multi_reduction <add>, %77, %cst_37 [1] : vector<64x64xf32> to vector<64xf32>
    %79 = vector.shape_cast %78 : vector<64xf32> to vector<64x1xf32>
    %80 = tpu.reciprocal %79 {approx = true} : vector<64x1xf32> -> vector<64x1xf32>
    %81 = vector.broadcast %80 : vector<64x1xf32> to vector<64x64xf32>
    %82 = arith.mulf %77, %81 : vector<64x64xf32>
    %cst_38 = arith.constant 0.000000e+00 : f32
    %83 = vector.broadcast %cst_38 : f32 to vector<64x64xf32>
    %84 = arith.subf %83, %70 : vector<64x64xf32>
    %cst_39 = arith.constant -9.99999995E+11 : f32
    %85 = vector.broadcast %cst_39 : f32 to vector<64x64xf32>
    %86 = arith.select %3, %84, %85 : vector<64x64xi1>, vector<64x64xf32>
    %cst_40 = arith.constant dense<0xFF800000> : vector<64xf32>
    %87 = vector.multi_reduction <maximumf>, %86, %cst_40 [1] : vector<64x64xf32> to vector<64xf32>
    %88 = vector.shape_cast %87 : vector<64xf32> to vector<64x1xf32>
    %89 = vector.broadcast %88 : vector<64x1xf32> to vector<64x64xf32>
    %90 = arith.subf %86, %89 : vector<64x64xf32>
    %91 = math.exp %90 : vector<64x64xf32>
    %cst_41 = arith.constant dense<0.000000e+00> : vector<64xf32>
    %92 = vector.multi_reduction <add>, %91, %cst_41 [1] : vector<64x64xf32> to vector<64xf32>
    %93 = vector.shape_cast %92 : vector<64xf32> to vector<64x1xf32>
    %94 = tpu.reciprocal %93 {approx = true} : vector<64x1xf32> -> vector<64x1xf32>
    %95 = vector.broadcast %94 : vector<64x1xf32> to vector<64x64xf32>
    %96 = arith.mulf %91, %95 : vector<64x64xf32>
    %c1 = arith.constant 1 : index
    %c0_42 = arith.constant 0 : index
    %c0_43 = arith.constant 0 : index
    %97 = vector.load %arg5[%c1, %c0_42, %c0_43] : memref<4x32x32xf32, #tpu.memory_space<vmem>>, vector<1x32x32xf32>
    %98 = vector.shape_cast %97 : vector<1x32x32xf32> to vector<32x32xf32>
    %cst_44 = arith.constant dense<0.000000e+00> : vector<64x32xf32>
    %99 = tpu.matmul %0, %98, %cst_44 {dimension_numbers = #tpu.dot_dimension_numbers<[1], [0], [0], [1], [0, 0, 1, 1], [], []>} : vector<64x32xf32>, vector<32x32xf32>, vector<64x32xf32> -> vector<64x32xf32>
    %c1_45 = arith.constant 1 : index
    %c0_46 = arith.constant 0 : index
    %c0_47 = arith.constant 0 : index
    %100 = vector.load %arg6[%c1_45, %c0_46, %c0_47] : memref<4x32x32xf32, #tpu.memory_space<vmem>>, vector<1x32x32xf32>
    %101 = vector.shape_cast %100 : vector<1x32x32xf32> to vector<32x32xf32>
    %cst_48 = arith.constant dense<0.000000e+00> : vector<64x32xf32>
    %102 = tpu.matmul %0, %101, %cst_48 {dimension_numbers = #tpu.dot_dimension_numbers<[1], [0], [0], [1], [0, 0, 1, 1], [], []>} : vector<64x32xf32>, vector<32x32xf32>, vector<64x32xf32> -> vector<64x32xf32>
    %cst_49 = arith.constant dense<0.000000e+00> : vector<64x32xf32>
    %103 = tpu.matmul %82, %99, %cst_49 {dimension_numbers = #tpu.dot_dimension_numbers<[1], [0], [0], [1], [0, 0, 1, 1], [], []>} : vector<64x64xf32>, vector<64x32xf32>, vector<64x32xf32> -> vector<64x32xf32>
    %cst_50 = arith.constant dense<0.000000e+00> : vector<64x32xf32>
    %104 = tpu.matmul %96, %102, %cst_50 {dimension_numbers = #tpu.dot_dimension_numbers<[1], [0], [0], [1], [0, 0, 1, 1], [], []>} : vector<64x64xf32>, vector<64x32xf32>, vector<64x32xf32> -> vector<64x32xf32>
    %105 = arith.subf %103, %104 : vector<64x32xf32>
    %cst_51 = arith.constant 0.000000e+00 : f32
    %106 = vector.broadcast %cst_51 : f32 to vector<64x32xf32>
    %107 = arith.cmpf ogt, %105, %106 : vector<64x32xf32>
    %108 = math.exp %105 : vector<64x32xf32>
    %cst_52 = arith.constant 1.000000e+00 : f32
    %109 = vector.broadcast %cst_52 : f32 to vector<64x32xf32>
    %110 = arith.subf %108, %109 : vector<64x32xf32>
    %111 = arith.select %107, %105, %110 : vector<64x32xi1>, vector<64x32xf32>
    %112 = vector.extract_strided_slice %7 {offsets = [0, 2], sizes = [64, 1], strides = [1, 1]} : vector<64x4xf32> to vector<64x1xf32>
    %113 = vector.extract_strided_slice %9 {offsets = [2, 0], sizes = [1, 64], strides = [1, 1]} : vector<4x64xf32> to vector<1x64xf32>
    %114 = vector.broadcast %112 : vector<64x1xf32> to vector<64x64xf32>
    %115 = vector.broadcast %113 : vector<1x64xf32> to vector<64x64xf32>
    %116 = arith.addf %114, %115 : vector<64x64xf32>
    %cst_53 = arith.constant 0.000000e+00 : f32
    %117 = vector.broadcast %cst_53 : f32 to vector<64x64xf32>
    %118 = arith.cmpf ogt, %116, %117 : vector<64x64xf32>
    %cst_54 = arith.constant 3.000000e-01 : f32
    %119 = vector.broadcast %cst_54 : f32 to vector<64x64xf32>
    %120 = arith.mulf %119, %116 : vector<64x64xf32>
    %121 = arith.select %118, %116, %120 : vector<64x64xi1>, vector<64x64xf32>
    %cst_55 = arith.constant -9.99999995E+11 : f32
    %122 = vector.broadcast %cst_55 : f32 to vector<64x64xf32>
    %123 = arith.select %3, %121, %122 : vector<64x64xi1>, vector<64x64xf32>
    %cst_56 = arith.constant dense<0xFF800000> : vector<64xf32>
    %124 = vector.multi_reduction <maximumf>, %123, %cst_56 [1] : vector<64x64xf32> to vector<64xf32>
    %125 = vector.shape_cast %124 : vector<64xf32> to vector<64x1xf32>
    %126 = vector.broadcast %125 : vector<64x1xf32> to vector<64x64xf32>
    %127 = arith.subf %123, %126 : vector<64x64xf32>
    %128 = math.exp %127 : vector<64x64xf32>
    %cst_57 = arith.constant dense<0.000000e+00> : vector<64xf32>
    %129 = vector.multi_reduction <add>, %128, %cst_57 [1] : vector<64x64xf32> to vector<64xf32>
    %130 = vector.shape_cast %129 : vector<64xf32> to vector<64x1xf32>
    %131 = tpu.reciprocal %130 {approx = true} : vector<64x1xf32> -> vector<64x1xf32>
    %132 = vector.broadcast %131 : vector<64x1xf32> to vector<64x64xf32>
    %133 = arith.mulf %128, %132 : vector<64x64xf32>
    %cst_58 = arith.constant 0.000000e+00 : f32
    %134 = vector.broadcast %cst_58 : f32 to vector<64x64xf32>
    %135 = arith.subf %134, %121 : vector<64x64xf32>
    %cst_59 = arith.constant -9.99999995E+11 : f32
    %136 = vector.broadcast %cst_59 : f32 to vector<64x64xf32>
    %137 = arith.select %3, %135, %136 : vector<64x64xi1>, vector<64x64xf32>
    %cst_60 = arith.constant dense<0xFF800000> : vector<64xf32>
    %138 = vector.multi_reduction <maximumf>, %137, %cst_60 [1] : vector<64x64xf32> to vector<64xf32>
    %139 = vector.shape_cast %138 : vector<64xf32> to vector<64x1xf32>
    %140 = vector.broadcast %139 : vector<64x1xf32> to vector<64x64xf32>
    %141 = arith.subf %137, %140 : vector<64x64xf32>
    %142 = math.exp %141 : vector<64x64xf32>
    %cst_61 = arith.constant dense<0.000000e+00> : vector<64xf32>
    %143 = vector.multi_reduction <add>, %142, %cst_61 [1] : vector<64x64xf32> to vector<64xf32>
    %144 = vector.shape_cast %143 : vector<64xf32> to vector<64x1xf32>
    %145 = tpu.reciprocal %144 {approx = true} : vector<64x1xf32> -> vector<64x1xf32>
    %146 = vector.broadcast %145 : vector<64x1xf32> to vector<64x64xf32>
    %147 = arith.mulf %142, %146 : vector<64x64xf32>
    %c2 = arith.constant 2 : index
    %c0_62 = arith.constant 0 : index
    %c0_63 = arith.constant 0 : index
    %148 = vector.load %arg5[%c2, %c0_62, %c0_63] : memref<4x32x32xf32, #tpu.memory_space<vmem>>, vector<1x32x32xf32>
    %149 = vector.shape_cast %148 : vector<1x32x32xf32> to vector<32x32xf32>
    %cst_64 = arith.constant dense<0.000000e+00> : vector<64x32xf32>
    %150 = tpu.matmul %0, %149, %cst_64 {dimension_numbers = #tpu.dot_dimension_numbers<[1], [0], [0], [1], [0, 0, 1, 1], [], []>} : vector<64x32xf32>, vector<32x32xf32>, vector<64x32xf32> -> vector<64x32xf32>
    %c2_65 = arith.constant 2 : index
    %c0_66 = arith.constant 0 : index
    %c0_67 = arith.constant 0 : index
    %151 = vector.load %arg6[%c2_65, %c0_66, %c0_67] : memref<4x32x32xf32, #tpu.memory_space<vmem>>, vector<1x32x32xf32>
    %152 = vector.shape_cast %151 : vector<1x32x32xf32> to vector<32x32xf32>
    %cst_68 = arith.constant dense<0.000000e+00> : vector<64x32xf32>
    %153 = tpu.matmul %0, %152, %cst_68 {dimension_numbers = #tpu.dot_dimension_numbers<[1], [0], [0], [1], [0, 0, 1, 1], [], []>} : vector<64x32xf32>, vector<32x32xf32>, vector<64x32xf32> -> vector<64x32xf32>
    %cst_69 = arith.constant dense<0.000000e+00> : vector<64x32xf32>
    %154 = tpu.matmul %133, %150, %cst_69 {dimension_numbers = #tpu.dot_dimension_numbers<[1], [0], [0], [1], [0, 0, 1, 1], [], []>} : vector<64x64xf32>, vector<64x32xf32>, vector<64x32xf32> -> vector<64x32xf32>
    %cst_70 = arith.constant dense<0.000000e+00> : vector<64x32xf32>
    %155 = tpu.matmul %147, %153, %cst_70 {dimension_numbers = #tpu.dot_dimension_numbers<[1], [0], [0], [1], [0, 0, 1, 1], [], []>} : vector<64x64xf32>, vector<64x32xf32>, vector<64x32xf32> -> vector<64x32xf32>
    %156 = arith.subf %154, %155 : vector<64x32xf32>
    %cst_71 = arith.constant 0.000000e+00 : f32
    %157 = vector.broadcast %cst_71 : f32 to vector<64x32xf32>
    %158 = arith.cmpf ogt, %156, %157 : vector<64x32xf32>
    %159 = math.exp %156 : vector<64x32xf32>
    %cst_72 = arith.constant 1.000000e+00 : f32
    %160 = vector.broadcast %cst_72 : f32 to vector<64x32xf32>
    %161 = arith.subf %159, %160 : vector<64x32xf32>
    %162 = arith.select %158, %156, %161 : vector<64x32xi1>, vector<64x32xf32>
    %163 = vector.extract_strided_slice %7 {offsets = [0, 3], sizes = [64, 1], strides = [1, 1]} : vector<64x4xf32> to vector<64x1xf32>
    %164 = vector.extract_strided_slice %9 {offsets = [3, 0], sizes = [1, 64], strides = [1, 1]} : vector<4x64xf32> to vector<1x64xf32>
    %165 = vector.broadcast %163 : vector<64x1xf32> to vector<64x64xf32>
    %166 = vector.broadcast %164 : vector<1x64xf32> to vector<64x64xf32>
    %167 = arith.addf %165, %166 : vector<64x64xf32>
    %cst_73 = arith.constant 0.000000e+00 : f32
    %168 = vector.broadcast %cst_73 : f32 to vector<64x64xf32>
    %169 = arith.cmpf ogt, %167, %168 : vector<64x64xf32>
    %cst_74 = arith.constant 3.000000e-01 : f32
    %170 = vector.broadcast %cst_74 : f32 to vector<64x64xf32>
    %171 = arith.mulf %170, %167 : vector<64x64xf32>
    %172 = arith.select %169, %167, %171 : vector<64x64xi1>, vector<64x64xf32>
    %cst_75 = arith.constant -9.99999995E+11 : f32
    %173 = vector.broadcast %cst_75 : f32 to vector<64x64xf32>
    %174 = arith.select %3, %172, %173 : vector<64x64xi1>, vector<64x64xf32>
    %cst_76 = arith.constant dense<0xFF800000> : vector<64xf32>
    %175 = vector.multi_reduction <maximumf>, %174, %cst_76 [1] : vector<64x64xf32> to vector<64xf32>
    %176 = vector.shape_cast %175 : vector<64xf32> to vector<64x1xf32>
    %177 = vector.broadcast %176 : vector<64x1xf32> to vector<64x64xf32>
    %178 = arith.subf %174, %177 : vector<64x64xf32>
    %179 = math.exp %178 : vector<64x64xf32>
    %cst_77 = arith.constant dense<0.000000e+00> : vector<64xf32>
    %180 = vector.multi_reduction <add>, %179, %cst_77 [1] : vector<64x64xf32> to vector<64xf32>
    %181 = vector.shape_cast %180 : vector<64xf32> to vector<64x1xf32>
    %182 = tpu.reciprocal %181 {approx = true} : vector<64x1xf32> -> vector<64x1xf32>
    %183 = vector.broadcast %182 : vector<64x1xf32> to vector<64x64xf32>
    %184 = arith.mulf %179, %183 : vector<64x64xf32>
    %cst_78 = arith.constant 0.000000e+00 : f32
    %185 = vector.broadcast %cst_78 : f32 to vector<64x64xf32>
    %186 = arith.subf %185, %172 : vector<64x64xf32>
    %cst_79 = arith.constant -9.99999995E+11 : f32
    %187 = vector.broadcast %cst_79 : f32 to vector<64x64xf32>
    %188 = arith.select %3, %186, %187 : vector<64x64xi1>, vector<64x64xf32>
    %cst_80 = arith.constant dense<0xFF800000> : vector<64xf32>
    %189 = vector.multi_reduction <maximumf>, %188, %cst_80 [1] : vector<64x64xf32> to vector<64xf32>
    %190 = vector.shape_cast %189 : vector<64xf32> to vector<64x1xf32>
    %191 = vector.broadcast %190 : vector<64x1xf32> to vector<64x64xf32>
    %192 = arith.subf %188, %191 : vector<64x64xf32>
    %193 = math.exp %192 : vector<64x64xf32>
    %cst_81 = arith.constant dense<0.000000e+00> : vector<64xf32>
    %194 = vector.multi_reduction <add>, %193, %cst_81 [1] : vector<64x64xf32> to vector<64xf32>
    %195 = vector.shape_cast %194 : vector<64xf32> to vector<64x1xf32>
    %196 = tpu.reciprocal %195 {approx = true} : vector<64x1xf32> -> vector<64x1xf32>
    %197 = vector.broadcast %196 : vector<64x1xf32> to vector<64x64xf32>
    %198 = arith.mulf %193, %197 : vector<64x64xf32>
    %c3 = arith.constant 3 : index
    %c0_82 = arith.constant 0 : index
    %c0_83 = arith.constant 0 : index
    %199 = vector.load %arg5[%c3, %c0_82, %c0_83] : memref<4x32x32xf32, #tpu.memory_space<vmem>>, vector<1x32x32xf32>
    %200 = vector.shape_cast %199 : vector<1x32x32xf32> to vector<32x32xf32>
    %cst_84 = arith.constant dense<0.000000e+00> : vector<64x32xf32>
    %201 = tpu.matmul %0, %200, %cst_84 {dimension_numbers = #tpu.dot_dimension_numbers<[1], [0], [0], [1], [0, 0, 1, 1], [], []>} : vector<64x32xf32>, vector<32x32xf32>, vector<64x32xf32> -> vector<64x32xf32>
    %c3_85 = arith.constant 3 : index
    %c0_86 = arith.constant 0 : index
    %c0_87 = arith.constant 0 : index
    %202 = vector.load %arg6[%c3_85, %c0_86, %c0_87] : memref<4x32x32xf32, #tpu.memory_space<vmem>>, vector<1x32x32xf32>
    %203 = vector.shape_cast %202 : vector<1x32x32xf32> to vector<32x32xf32>
    %cst_88 = arith.constant dense<0.000000e+00> : vector<64x32xf32>
    %204 = tpu.matmul %0, %203, %cst_88 {dimension_numbers = #tpu.dot_dimension_numbers<[1], [0], [0], [1], [0, 0, 1, 1], [], []>} : vector<64x32xf32>, vector<32x32xf32>, vector<64x32xf32> -> vector<64x32xf32>
    %cst_89 = arith.constant dense<0.000000e+00> : vector<64x32xf32>
    %205 = tpu.matmul %184, %201, %cst_89 {dimension_numbers = #tpu.dot_dimension_numbers<[1], [0], [0], [1], [0, 0, 1, 1], [], []>} : vector<64x64xf32>, vector<64x32xf32>, vector<64x32xf32> -> vector<64x32xf32>
    %cst_90 = arith.constant dense<0.000000e+00> : vector<64x32xf32>
    %206 = tpu.matmul %198, %204, %cst_90 {dimension_numbers = #tpu.dot_dimension_numbers<[1], [0], [0], [1], [0, 0, 1, 1], [], []>} : vector<64x64xf32>, vector<64x32xf32>, vector<64x32xf32> -> vector<64x32xf32>
    %207 = arith.subf %205, %206 : vector<64x32xf32>
    %cst_91 = arith.constant 0.000000e+00 : f32
    %208 = vector.broadcast %cst_91 : f32 to vector<64x32xf32>
    %209 = arith.cmpf ogt, %207, %208 : vector<64x32xf32>
    %210 = math.exp %207 : vector<64x32xf32>
    %cst_92 = arith.constant 1.000000e+00 : f32
    %211 = vector.broadcast %cst_92 : f32 to vector<64x32xf32>
    %212 = arith.subf %210, %211 : vector<64x32xf32>
    %213 = arith.select %209, %207, %212 : vector<64x32xi1>, vector<64x32xf32>
    %214 = tpu.concatenate %60, %111, %162, %213 in 1 : vector<64x32xf32>, vector<64x32xf32>, vector<64x32xf32>, vector<64x32xf32> -> vector<64x128xf32>
    %c0_93 = arith.constant 0 : index
    %c0_94 = arith.constant 0 : index
    %215 = vector.load %arg7[%c0_93, %c0_94] : memref<128x32xf32, #tpu.memory_space<vmem>>, vector<128x32xf32>
    %cst_95 = arith.constant dense<0.000000e+00> : vector<64x32xf32>
    %216 = tpu.matmul %214, %215, %cst_95 {dimension_numbers = #tpu.dot_dimension_numbers<[1], [0], [0], [1], [0, 0, 1, 1], [], []>} : vector<64x128xf32>, vector<128x32xf32>, vector<64x32xf32> -> vector<64x32xf32>
    %c0_96 = arith.constant 0 : index
    %c0_97 = arith.constant 0 : index
    %217 = vector.load %arg8[%c0_96, %c0_97] : memref<32x1xf32, #tpu.memory_space<vmem>>, vector<32x1xf32>
    %cst_98 = arith.constant dense<0.000000e+00> : vector<64x1xf32>
    %218 = tpu.matmul %216, %217, %cst_98 {dimension_numbers = #tpu.dot_dimension_numbers<[1], [0], [0], [1], [0, 0, 1, 1], [], []>} : vector<64x32xf32>, vector<32x1xf32>, vector<64x1xf32> -> vector<64x1xf32>
    %c0_99 = arith.constant 0 : index
    %c0_100 = arith.constant 0 : index
    %219 = vector.load %arg9[%c0_99, %c0_100] : memref<1x32xf32, #tpu.memory_space<vmem>>, vector<1x32xf32>
    %cst_101 = arith.constant dense<0.000000e+00> : vector<1x64xf32>
    %220 = tpu.matmul %219, %216, %cst_101 {dimension_numbers = #tpu.dot_dimension_numbers<[1], [1], [0], [0], [0, 0, 1, 0], [], []>} : vector<1x32xf32>, vector<64x32xf32>, vector<1x64xf32> -> vector<1x64xf32>
    %221 = vector.broadcast %218 : vector<64x1xf32> to vector<64x64xf32>
    %222 = vector.broadcast %220 : vector<1x64xf32> to vector<64x64xf32>
    %223 = arith.addf %221, %222 : vector<64x64xf32>
    %cst_102 = arith.constant 0.000000e+00 : f32
    %224 = vector.broadcast %cst_102 : f32 to vector<64x64xf32>
    %225 = arith.cmpf ogt, %223, %224 : vector<64x64xf32>
    %cst_103 = arith.constant 3.000000e-01 : f32
    %226 = vector.broadcast %cst_103 : f32 to vector<64x64xf32>
    %227 = arith.mulf %226, %223 : vector<64x64xf32>
    %228 = arith.select %225, %223, %227 : vector<64x64xi1>, vector<64x64xf32>
    %cst_104 = arith.constant -9.99999995E+11 : f32
    %229 = vector.broadcast %cst_104 : f32 to vector<64x64xf32>
    %230 = arith.select %3, %228, %229 : vector<64x64xi1>, vector<64x64xf32>
    %cst_105 = arith.constant dense<0xFF800000> : vector<64xf32>
    %231 = vector.multi_reduction <maximumf>, %230, %cst_105 [1] : vector<64x64xf32> to vector<64xf32>
    %232 = vector.shape_cast %231 : vector<64xf32> to vector<64x1xf32>
    %233 = vector.broadcast %232 : vector<64x1xf32> to vector<64x64xf32>
    %234 = arith.subf %230, %233 : vector<64x64xf32>
    %235 = math.exp %234 : vector<64x64xf32>
    %cst_106 = arith.constant dense<0.000000e+00> : vector<64xf32>
    %236 = vector.multi_reduction <add>, %235, %cst_106 [1] : vector<64x64xf32> to vector<64xf32>
    %237 = vector.shape_cast %236 : vector<64xf32> to vector<64x1xf32>
    %238 = tpu.reciprocal %237 {approx = true} : vector<64x1xf32> -> vector<64x1xf32>
    %239 = vector.broadcast %238 : vector<64x1xf32> to vector<64x64xf32>
    %240 = arith.mulf %235, %239 : vector<64x64xf32>
    %cst_107 = arith.constant 0.000000e+00 : f32
    %241 = vector.broadcast %cst_107 : f32 to vector<64x64xf32>
    %242 = arith.subf %241, %228 : vector<64x64xf32>
    %cst_108 = arith.constant -9.99999995E+11 : f32
    %243 = vector.broadcast %cst_108 : f32 to vector<64x64xf32>
    %244 = arith.select %3, %242, %243 : vector<64x64xi1>, vector<64x64xf32>
    %cst_109 = arith.constant dense<0xFF800000> : vector<64xf32>
    %245 = vector.multi_reduction <maximumf>, %244, %cst_109 [1] : vector<64x64xf32> to vector<64xf32>
    %246 = vector.shape_cast %245 : vector<64xf32> to vector<64x1xf32>
    %247 = vector.broadcast %246 : vector<64x1xf32> to vector<64x64xf32>
    %248 = arith.subf %244, %247 : vector<64x64xf32>
    %249 = math.exp %248 : vector<64x64xf32>
    %cst_110 = arith.constant dense<0.000000e+00> : vector<64xf32>
    %250 = vector.multi_reduction <add>, %249, %cst_110 [1] : vector<64x64xf32> to vector<64xf32>
    %251 = vector.shape_cast %250 : vector<64xf32> to vector<64x1xf32>
    %252 = tpu.reciprocal %251 {approx = true} : vector<64x1xf32> -> vector<64x1xf32>
    %253 = vector.broadcast %252 : vector<64x1xf32> to vector<64x64xf32>
    %254 = arith.mulf %249, %253 : vector<64x64xf32>
    %c0_111 = arith.constant 0 : index
    %c0_112 = arith.constant 0 : index
    %255 = vector.load %arg10[%c0_111, %c0_112] : memref<128x32xf32, #tpu.memory_space<vmem>>, vector<128x32xf32>
    %cst_113 = arith.constant dense<0.000000e+00> : vector<64x32xf32>
    %256 = tpu.matmul %214, %255, %cst_113 {dimension_numbers = #tpu.dot_dimension_numbers<[1], [0], [0], [1], [0, 0, 1, 1], [], []>} : vector<64x128xf32>, vector<128x32xf32>, vector<64x32xf32> -> vector<64x32xf32>
    %c0_114 = arith.constant 0 : index
    %c0_115 = arith.constant 0 : index
    %257 = vector.load %arg11[%c0_114, %c0_115] : memref<128x32xf32, #tpu.memory_space<vmem>>, vector<128x32xf32>
    %cst_116 = arith.constant dense<0.000000e+00> : vector<64x32xf32>
    %258 = tpu.matmul %214, %257, %cst_116 {dimension_numbers = #tpu.dot_dimension_numbers<[1], [0], [0], [1], [0, 0, 1, 1], [], []>} : vector<64x128xf32>, vector<128x32xf32>, vector<64x32xf32> -> vector<64x32xf32>
    %cst_117 = arith.constant dense<0.000000e+00> : vector<64x32xf32>
    %259 = tpu.matmul %240, %256, %cst_117 {dimension_numbers = #tpu.dot_dimension_numbers<[1], [0], [0], [1], [0, 0, 1, 1], [], []>} : vector<64x64xf32>, vector<64x32xf32>, vector<64x32xf32> -> vector<64x32xf32>
    %cst_118 = arith.constant dense<0.000000e+00> : vector<64x32xf32>
    %260 = tpu.matmul %254, %258, %cst_118 {dimension_numbers = #tpu.dot_dimension_numbers<[1], [0], [0], [1], [0, 0, 1, 1], [], []>} : vector<64x64xf32>, vector<64x32xf32>, vector<64x32xf32> -> vector<64x32xf32>
    %261 = arith.subf %259, %260 : vector<64x32xf32>
    %cst_119 = arith.constant 0.000000e+00 : f32
    %262 = vector.broadcast %cst_119 : f32 to vector<64x32xf32>
    %263 = arith.subf %262, %261 : vector<64x32xf32>
    %264 = math.exp %263 : vector<64x32xf32>
    %cst_120 = arith.constant 1.000000e+00 : f32
    %265 = vector.broadcast %cst_120 : f32 to vector<64x32xf32>
    %266 = arith.addf %265, %264 : vector<64x32xf32>
    %cst_121 = arith.constant 1.000000e+00 : f32
    %267 = vector.broadcast %cst_121 : f32 to vector<64x32xf32>
    %268 = arith.divf %267, %266 : vector<64x32xf32>
    %c0_122 = arith.constant 0 : index
    %c0_123 = arith.constant 0 : index
    %269 = vector.load %arg12[%c0_122, %c0_123] : memref<64x32xf32, #tpu.memory_space<vmem>>, vector<64x32xf32>
    tpu.vector_store %arg12[%c0_122, %c0_123], %268 {strides = array<i32>} : memref<64x32xf32, #tpu.memory_space<vmem>>, vector<64x32xf32>,
    return
  }
}

</mosaic_0001>

<llo_original>
// kernel: tpu_custom_call.1
$region0: #{tpu_custom_call.1}
  #allocation0 [shape = 'u32[]', space=smem, size = 0x4, offset = 0x4, fixed_abs, tag = 'smem constant byte address 0x4 - core index']
  #allocation1 [shape = 'u32[144,128]{1,0:T(1,128)}', space=vmem, size = 0x12000, scoped, tag = 'internal scratch']
  %s0 = inlined_call_operand.vmem [shape: f32[64,32], index: 0, kind: input, shape index: {}]
  %s1 = inlined_call_operand.vmem [shape: f32[64,64], index: 1, kind: input, shape index: {}]
  %s2 = inlined_call_operand.vmem [shape: f32[32,128], index: 2, kind: input, shape index: {}]
  %s3 = inlined_call_operand.vmem [shape: f32[128,4], index: 3, kind: input, shape index: {}]
  %s4 = inlined_call_operand.vmem [shape: f32[4,128], index: 4, kind: input, shape index: {}]
  %s5 = inlined_call_operand.vmem [shape: f32[4,32,32], index: 5, kind: input, shape index: {}]
  %s6 = inlined_call_operand.vmem [shape: f32[4,32,32], index: 6, kind: input, shape index: {}]
  %s7 = inlined_call_operand.vmem [shape: f32[128,32], index: 7, kind: input, shape index: {}]
  %s8 = inlined_call_operand.vmem [shape: f32[32,1], index: 8, kind: input, shape index: {}]
  %s9 = inlined_call_operand.vmem [shape: f32[1,32], index: 9, kind: input, shape index: {}]
  %s10 = inlined_call_operand.vmem [shape: f32[128,32], index: 10, kind: input, shape index: {}]
  %s11 = inlined_call_operand.vmem [shape: f32[128,32], index: 11, kind: input, shape index: {}]
  %s12 = inlined_call_operand.vmem [shape: f32[64,32], index: 12, kind: output, shape index: {}]
  %s13 = sld [smem:[#allocation0]]
  $region58: #{tpu_custom_call.1} parent=0
    _
  %s15 = ssub.s32 1, %s13
  %s16 = scalar_select 0, %s15, %s13
  // Predicated region
  $region2: #{tpu_custom_call.1} parent=0 // pred_check
    _
  $region3: #{tpu_custom_call.1} parent=0 // pred_check_branch
    %18 = sbr.rel (0) target = $region5
  $region4: #{tpu_custom_call.1} parent=0 // pred_region
    _
  $region5: #{tpu_custom_call.1} parent=0 // pred_fallthru
    _
  // Predicated region
  $region6: #{tpu_custom_call.1} parent=0 // pred_check
    _
  $region7: #{tpu_custom_call.1} parent=0 // pred_check_branch
    %20 = sbr.rel (0) target = $region9
  $region8: #{tpu_custom_call.1} parent=0 // pred_region
    _
  $region9: #{tpu_custom_call.1} parent=0 // pred_fallthru
    _
  // Predicated region
  $region10: #{tpu_custom_call.1} parent=0 // pred_check
    _
  $region11: #{tpu_custom_call.1} parent=0 // pred_check_branch
    %22 = sbr.rel (0) target = $region13
  $region12: #{tpu_custom_call.1} parent=0 // pred_region
    _
  $region13: #{tpu_custom_call.1} parent=0 // pred_fallthru
    _
  // Predicated region
  $region14: #{tpu_custom_call.1} parent=0 // pred_check
    _
  $region15: #{tpu_custom_call.1} parent=0 // pred_check_branch
    %24 = sbr.rel (0) target = $region17
  $region16: #{tpu_custom_call.1} parent=0 // pred_region
    _
  $region17: #{tpu_custom_call.1} parent=0 // pred_fallthru
    _
  // Predicated region
  $region18: #{tpu_custom_call.1} parent=0 // pred_check
    _
  $region19: #{tpu_custom_call.1} parent=0 // pred_check_branch
    %26 = sbr.rel (0) target = $region21
  $region20: #{tpu_custom_call.1} parent=0 // pred_region
    _
  $region21: #{tpu_custom_call.1} parent=0 // pred_fallthru
    _
  // Predicated region
  $region22: #{tpu_custom_call.1} parent=0 // pred_check
    _
  $region23: #{tpu_custom_call.1} parent=0 // pred_check_branch
    %28 = sbr.rel (0) target = $region25
  $region24: #{tpu_custom_call.1} parent=0 // pred_region
    _
  $region25: #{tpu_custom_call.1} parent=0 // pred_fallthru
    _
  // Predicated region
  $region26: #{tpu_custom_call.1} parent=0 // pred_check
    _
  $region27: #{tpu_custom_call.1} parent=0 // pred_check_branch
    %30 = sbr.rel (0) target = $region29
  $region28: #{tpu_custom_call.1} parent=0 // pred_region
    _
  $region29: #{tpu_custom_call.1} parent=0 // pred_fallthru
    _
  // Predicated region
  $region30: #{tpu_custom_call.1} parent=0 // pred_check
    _
  $region31: #{tpu_custom_call.1} parent=0 // pred_check_branch
    %32 = sbr.rel (0) target = $region33
  $region32: #{tpu_custom_call.1} parent=0 // pred_region
    _
  $region33: #{tpu_custom_call.1} parent=0 // pred_fallthru
    _
  // Predicated region
  $region34: #{tpu_custom_call.1} parent=0 // pred_check
    _
  $region35: #{tpu_custom_call.1} parent=0 // pred_check_branch
    %34 = sbr.rel (0) target = $region37
  $region36: #{tpu_custom_call.1} parent=0 // pred_region
    _
  $region37: #{tpu_custom_call.1} parent=0 // pred_fallthru
    _
  // Predicated region
  $region38: #{tpu_custom_call.1} parent=0 // pred_check
    _
  $region39: #{tpu_custom_call.1} parent=0 // pred_check_branch
    %36 = sbr.rel (0) target = $region41
  $region40: #{tpu_custom_call.1} parent=0 // pred_region
    _
  $region41: #{tpu_custom_call.1} parent=0 // pred_fallthru
    _
  // Predicated region
  $region42: #{tpu_custom_call.1} parent=0 // pred_check
    _
  $region43: #{tpu_custom_call.1} parent=0 // pred_check_branch
    %38 = sbr.rel (0) target = $region45
  $region44: #{tpu_custom_call.1} parent=0 // pred_region
    _
  $region45: #{tpu_custom_call.1} parent=0 // pred_fallthru
    _
  // Predicated region
  $region46: #{tpu_custom_call.1} parent=0 // pred_check
    _
  $region47: #{tpu_custom_call.1} parent=0 // pred_check_branch
    %40 = sbr.rel (0) target = $region49
  $region48: #{tpu_custom_call.1} parent=0 // pred_region
    _
  $region49: #{tpu_custom_call.1} parent=0 // pred_fallthru
    _
  %v41 = vld [vmem:[%s0] sm:$0xff]
  %v42 = vld [vmem:[%s0 + $0x8] sm:$0xff]
  %v43 = vld [vmem:[%s0 + $0x10] sm:$0xff]
  %v44 = vld [vmem:[%s0 + $0x18] sm:$0xff]
  %v45 = vld [vmem:[%s0 + $0x20] sm:$0xff]
  %v46 = vld [vmem:[%s0 + $0x28] sm:$0xff]
  %v47 = vld [vmem:[%s0 + $0x30] sm:$0xff]
  %v48 = vld [vmem:[%s0 + $0x38] sm:$0xff]
  %v49 = vld [vmem:[%s1] sm:$0xff]
  %v50 = vld [vmem:[%s1 + $0x8] sm:$0xff]
  %v51 = vld [vmem:[%s1 + $0x10] sm:$0xff]
  %v52 = vld [vmem:[%s1 + $0x18] sm:$0xff]
  %v53 = vld [vmem:[%s1 + $0x20] sm:$0xff]
  %v54 = vld [vmem:[%s1 + $0x28] sm:$0xff]
  %v55 = vld [vmem:[%s1 + $0x30] sm:$0xff]
  %v56 = vld [vmem:[%s1 + $0x38] sm:$0xff]
  %vm57 = vcmp.gt.f32.partialorder %v49, 0.0
  %vm58 = vcmp.gt.f32.partialorder %v50, 0.0
  %vm59 = vcmp.gt.f32.partialorder %v51, 0.0
  %vm60 = vcmp.gt.f32.partialorder %v52, 0.0
  %vm61 = vcmp.gt.f32.partialorder %v53, 0.0
  %vm62 = vcmp.gt.f32.partialorder %v54, 0.0
  %vm63 = vcmp.gt.f32.partialorder %v55, 0.0
  %vm64 = vcmp.gt.f32.partialorder %v56, 0.0
  %v65 = vld [vmem:[%s2] sm:$0xff]
  %v66 = vld [vmem:[%s2 + $0x8] sm:$0xff]
  %v67 = vld [vmem:[%s2 + $0x10] sm:$0xff]
  %v68 = vld [vmem:[%s2 + $0x18] sm:$0xff]
  %vm69 = vcmask 261120
  %v71 = vsel %vm69, %v41, 0
  %v74 = vsel %vm69, %v42, 0
  %v77 = vsel %vm69, %v43, 0
  %v80 = vsel %vm69, %v44, 0
  %v83 = vsel %vm69, %v45, 0
  %v86 = vsel %vm69, %v46, 0
  %v89 = vsel %vm69, %v47, 0
  %v92 = vsel %vm69, %v48, 0
  %94 = vmatprep.subr.mxu0 0.0
  %95 = vmatpush1.msra.mxu0 0.0
  %96 = vmatprep.subr.mxu0 0.0
  %97 = vmatpush1.msra.mxu0 0.0
  %98 = vmatprep.subr.mxu0 0.0
  %99 = vmatpush1.msra.mxu0 0.0
  %100 = vmatprep.subr.mxu0 0.0
  %101 = vmatpush1.msra.mxu0 0.0
  %102 = vmatprep.subr.mxu0 0.0
  %103 = vmatpush1.msra.mxu0 0.0
  %104 = vmatprep.subr.mxu0 0.0
  %105 = vmatpush1.msra.mxu0 0.0
  %106 = vmatprep.subr.mxu0 0.0
  %107 = vmatpush1.msra.mxu0 0.0
  %108 = vmatprep.subr.mxu0 0.0
  %109 = vmatpush1.msra.mxu0 0.0
  %110 = vmatprep.subr.mxu0 0.0
  %111 = vmatpush1.msra.mxu0 0.0
  %112 = vmatprep.subr.mxu0 0.0
  %113 = vmatpush1.msra.mxu0 0.0
  %114 = vmatprep.subr.mxu0 0.0
  %115 = vmatpush1.msra.mxu0 0.0
  %116 = vmatprep.subr.mxu0 0.0
  %117 = vmatpush1.msra.mxu0 0.0
  %118 = vmatprep.subr.mxu0 0.0
  %119 = vmatpush1.msra.mxu0 %v68
  %120 = vmatprep.subr.mxu0 0.0
  %121 = vmatpush1.msra.mxu0 %v67
  %122 = vmatprep.subr.mxu0 0.0
  %123 = vmatpush1.msra.mxu0 %v66
  %124 = vmatprep.subr.mxu0 0.0
  %125 = vmatpush1.msra.mxu0 %v65
  %126 = vmatprep.subr.mxu0 0.0
  %127 = vmatpush2.msra.mxu0 0.0
  %128 = vmatprep.subr.mxu0 0.0
  %129 = vmatpush2.msra.mxu0 0.0
  %130 = vmatprep.subr.mxu0 0.0
  %131 = vmatpush2.msra.mxu0 0.0
  %132 = vmatprep.subr.mxu0 0.0
  %133 = vmatpush2.msra.mxu0 0.0
  %134 = vmatprep.subr.mxu0 0.0
  %135 = vmatpush2.msra.mxu0 0.0
  %136 = vmatprep.subr.mxu0 0.0
  %137 = vmatpush2.msra.mxu0 0.0
  %138 = vmatprep.subr.mxu0 0.0
  %139 = vmatpush2.msra.mxu0 0.0
  %140 = vmatprep.subr.mxu0 0.0
  %141 = vmatpush2.msra.mxu0 0.0
  %142 = vmatprep.subr.mxu0 0.0
  %143 = vmatpush2.msra.mxu0 0.0
  %144 = vmatprep.subr.mxu0 0.0
  %145 = vmatpush2.msra.mxu0 0.0
  %146 = vmatprep.subr.mxu0 0.0
  %147 = vmatpush2.msra.mxu0 0.0
  %148 = vmatprep.subr.mxu0 0.0
  %149 = vmatpush2.msra.mxu0 0.0
  %150 = vmatprep.subr.mxu0 0.0
  %151 = vmatpush2.msra.mxu0 0.0
  %152 = vmatprep.subr.mxu0 0.0
  %153 = vmatpush2.msra.mxu0 0.0
  %154 = vmatprep.subr.mxu0 0.0
  %155 = vmatpush2.msra.mxu0 0.0
  %156 = vmatprep.subr.mxu0 0.0
  %157 = vmatpush2.msra.mxu0 0.0
  %158 = vmatprep.mubr.f32.mxu0 0.0
  %159 = vmatmul.mubr.f32.gmra.mxu0 %v71
  %v160 = vpop.f32.mrf.mxu0
  %v161 = vadd.f32 0.0, %v160
  %v162 = vpop.f32.mrf.mxu0
  %163 = vmatprep.mubr.f32.mxu0 0.0
  %164 = vmatmul.mubr.f32.gmra.mxu0 %v74
  %v165 = vpop.f32.mrf.mxu0
  %v166 = vadd.f32 0.0, %v165
  %v167 = vpop.f32.mrf.mxu0
  %168 = vmatprep.mubr.f32.mxu0 0.0
  %169 = vmatmul.mubr.f32.gmra.mxu0 %v77
  %v170 = vpop.f32.mrf.mxu0
  %v171 = vadd.f32 0.0, %v170
  %v172 = vpop.f32.mrf.mxu0
  %173 = vmatprep.mubr.f32.mxu0 0.0
  %174 = vmatmul.mubr.f32.gmra.mxu0 %v80
  %v175 = vpop.f32.mrf.mxu0
  %v176 = vadd.f32 0.0, %v175
  %v177 = vpop.f32.mrf.mxu0
  %178 = vmatprep.mubr.f32.mxu0 0.0
  %179 = vmatmul.mubr.f32.gmra.mxu0 %v83
  %v180 = vpop.f32.mrf.mxu0
  %v181 = vadd.f32 0.0, %v180
  %v182 = vpop.f32.mrf.mxu0
  %183 = vmatprep.mubr.f32.mxu0 0.0
  %184 = vmatmul.mubr.f32.gmra.mxu0 %v86
  %v185 = vpop.f32.mrf.mxu0
  %v186 = vadd.f32 0.0, %v185
  %v187 = vpop.f32.mrf.mxu0
  %188 = vmatprep.mubr.f32.mxu0 0.0
  %189 = vmatmul.mubr.f32.gmra.mxu0 %v89
  %v190 = vpop.f32.mrf.mxu0
  %v191 = vadd.f32 0.0, %v190
  %v192 = vpop.f32.mrf.mxu0
  %193 = vmatprep.mubr.f32.mxu0 0.0
  %194 = vmatmul.mubr.f32.gmra.mxu0 %v92
  %v195 = vpop.f32.mrf.mxu0
  %v196 = vadd.f32 0.0, %v195
  %v197 = vpop.f32.mrf.mxu0
  %198 = vdwg.mxu0
  %v199 = vld [vmem:[%s3] sm:$0xff]
  %v200 = vld [vmem:[%s3 + $0x8] sm:$0xff]
  %v201 = vld [vmem:[%s3 + $0x10] sm:$0xff]
  %v202 = vld [vmem:[%s3 + $0x18] sm:$0xff]
  %v203 = vld [vmem:[%s3 + $0x20] sm:$0xff]
  %v204 = vld [vmem:[%s3 + $0x28] sm:$0xff]
  %v205 = vld [vmem:[%s3 + $0x30] sm:$0xff]
  %v206 = vld [vmem:[%s3 + $0x38] sm:$0xff]
  %v207 = vld [vmem:[%s3 + $0x40] sm:$0xff]
  %v208 = vld [vmem:[%s3 + $0x48] sm:$0xff]
  %v209 = vld [vmem:[%s3 + $0x50] sm:$0xff]
  %v210 = vld [vmem:[%s3 + $0x58] sm:$0xff]
  %v211 = vld [vmem:[%s3 + $0x60] sm:$0xff]
  %v212 = vld [vmem:[%s3 + $0x68] sm:$0xff]
  %v213 = vld [vmem:[%s3 + $0x70] sm:$0xff]
  %v214 = vld [vmem:[%s3 + $0x78] sm:$0xff]
  %215 = vmatprep.subr.mxu0 0.0
  %216 = vmatpush1.msra.mxu0 %v214
  %217 = vmatprep.subr.mxu0 0.0
  %218 = vmatpush1.msra.mxu0 %v213
  %219 = vmatprep.subr.mxu0 0.0
  %220 = vmatpush1.msra.mxu0 %v212
  %221 = vmatprep.subr.mxu0 0.0
  %222 = vmatpush1.msra.mxu0 %v211
  %223 = vmatprep.subr.mxu0 0.0
  %224 = vmatpush1.msra.mxu0 %v210
  %225 = vmatprep.subr.mxu0 0.0
  %226 = vmatpush1.msra.mxu0 %v209
  %227 = vmatprep.subr.mxu0 0.0
  %228 = vmatpush1.msra.mxu0 %v208
  %229 = vmatprep.subr.mxu0 0.0
  %230 = vmatpush1.msra.mxu0 %v207
  %231 = vmatprep.subr.mxu0 0.0
  %232 = vmatpush1.msra.mxu0 %v206
  %233 = vmatprep.subr.mxu0 0.0
  %234 = vmatpush1.msra.mxu0 %v205
  %235 = vmatprep.subr.mxu0 0.0
  %236 = vmatpush1.msra.mxu0 %v204
  %237 = vmatprep.subr.mxu0 0.0
  %238 = vmatpush1.msra.mxu0 %v203
  %239 = vmatprep.subr.mxu0 0.0
  %240 = vmatpush1.msra.mxu0 %v202
  %241 = vmatprep.subr.mxu0 0.0
  %242 = vmatpush1.msra.mxu0 %v201
  %243 = vmatprep.subr.mxu0 0.0
  %244 = vmatpush1.msra.mxu0 %v200
  %245 = vmatprep.subr.mxu0 0.0
  %246 = vmatpush1.msra.mxu0 %v199
  %247 = vmatprep.subr.mxu0 0.0
  %248 = vmatpush2.msra.mxu0 0.0
  %249 = vmatprep.subr.mxu0 0.0
  %250 = vmatpush2.msra.mxu0 0.0
  %251 = vmatprep.subr.mxu0 0.0
  %252 = vmatpush2.msra.mxu0 0.0
  %253 = vmatprep.subr.mxu0 0.0
  %254 = vmatpush2.msra.mxu0 0.0
  %255 = vmatprep.subr.mxu0 0.0
  %256 = vmatpush2.msra.mxu0 0.0
  %257 = vmatprep.subr.mxu0 0.0
  %258 = vmatpush2.msra.mxu0 0.0
  %259 = vmatprep.subr.mxu0 0.0
  %260 = vmatpush2.msra.mxu0 0.0
  %261 = vmatprep.subr.mxu0 0.0
  %262 = vmatpush2.msra.mxu0 0.0
  %263 = vmatprep.subr.mxu0 0.0
  %264 = vmatpush2.msra.mxu0 0.0
  %265 = vmatprep.subr.mxu0 0.0
  %266 = vmatpush2.msra.mxu0 0.0
  %267 = vmatprep.subr.mxu0 0.0
  %268 = vmatpush2.msra.mxu0 0.0
  %269 = vmatprep.subr.mxu0 0.0
  %270 = vmatpush2.msra.mxu0 0.0
  %271 = vmatprep.subr.mxu0 0.0
  %272 = vmatpush2.msra.mxu0 0.0
  %273 = vmatprep.subr.mxu0 0.0
  %274 = vmatpush2.msra.mxu0 0.0
  %275 = vmatprep.subr.mxu0 0.0
  %276 = vmatpush2.msra.mxu0 0.0
  %277 = vmatprep.subr.mxu0 0.0
  %278 = vmatpush2.msra.mxu0 0.0
  %279 = vmatprep.mubr.f32.mxu0 0.0
  %280 = vmatmul.mubr.f32.gmra.mxu0 %v161
  %v281 = vpop.f32.mrf.mxu0
  %v282 = vadd.f32 0.0, %v281
  %v283 = vpop.f32.mrf.mxu0
  %284 = vmatprep.mubr.f32.mxu0 0.0
  %285 = vmatmul.mubr.f32.gmra.mxu0 %v166
  %v286 = vpop.f32.mrf.mxu0
  %v287 = vadd.f32 0.0, %v286
  %v288 = vpop.f32.mrf.mxu0
  %289 = vmatprep.mubr.f32.mxu0 0.0
  %290 = vmatmul.mubr.f32.gmra.mxu0 %v171
  %v291 = vpop.f32.mrf.mxu0
  %v292 = vadd.f32 0.0, %v291
  %v293 = vpop.f32.mrf.mxu0
  %294 = vmatprep.mubr.f32.mxu0 0.0
  %295 = vmatmul.mubr.f32.gmra.mxu0 %v176
  %v296 = vpop.f32.mrf.mxu0
  %v297 = vadd.f32 0.0, %v296
  %v298 = vpop.f32.mrf.mxu0
  %299 = vmatprep.mubr.f32.mxu0 0.0
  %300 = vmatmul.mubr.f32.gmra.mxu0 %v181
  %v301 = vpop.f32.mrf.mxu0
  %v302 = vadd.f32 0.0, %v301
  %v303 = vpop.f32.mrf.mxu0
  %304 = vmatprep.mubr.f32.mxu0 0.0
  %305 = vmatmul.mubr.f32.gmra.mxu0 %v186
  %v306 = vpop.f32.mrf.mxu0
  %v307 = vadd.f32 0.0, %v306
  %v308 = vpop.f32.mrf.mxu0
  %309 = vmatprep.mubr.f32.mxu0 0.0
  %310 = vmatmul.mubr.f32.gmra.mxu0 %v191
  %v311 = vpop.f32.mrf.mxu0
  %v312 = vadd.f32 0.0, %v311
  %v313 = vpop.f32.mrf.mxu0
  %314 = vmatprep.mubr.f32.mxu0 0.0
  %315 = vmatmul.mubr.f32.gmra.mxu0 %v196
  %v316 = vpop.f32.mrf.mxu0
  %v317 = vadd.f32 0.0, %v316
  %v318 = vpop.f32.mrf.mxu0
  %319 = vdwg.mxu0
  %v320 = vld [vmem:[%s4] sm:$0xf]
  %321 = vmatprep.subr.mxu0 0.0
  %322 = vmatpush1.xpose.msra.mxu0 0.0
  %323 = vmatprep.subr.mxu0 0.0
  %324 = vmatpush1.xpose.msra.mxu0 0.0
  %325 = vmatprep.subr.mxu0 0.0
  %326 = vmatpush1.xpose.msra.mxu0 0.0
  %327 = vmatprep.subr.mxu0 0.0
  %328 = vmatpush1.xpose.msra.mxu0 0.0
  %329 = vmatprep.subr.mxu0 0.0
  %330 = vmatpush1.xpose.msra.mxu0 0.0
  %331 = vmatprep.subr.mxu0 0.0
  %332 = vmatpush1.xpose.msra.mxu0 0.0
  %333 = vmatprep.subr.mxu0 0.0
  %334 = vmatpush1.xpose.msra.mxu0 0.0
  %335 = vmatprep.subr.mxu0 0.0
  %336 = vmatpush1.xpose.msra.mxu0 0.0
  %337 = vmatprep.subr.mxu0 0.0
  %338 = vmatpush1.xpose.msra.mxu0 %v196
  %339 = vmatprep.subr.mxu0 0.0
  %340 = vmatpush1.xpose.msra.mxu0 %v191
  %341 = vmatprep.subr.mxu0 0.0
  %342 = vmatpush1.xpose.msra.mxu0 %v186
  %343 = vmatprep.subr.mxu0 0.0
  %344 = vmatpush1.xpose.msra.mxu0 %v181
  %345 = vmatprep.subr.mxu0 0.0
  %346 = vmatpush1.xpose.msra.mxu0 %v176
  %347 = vmatprep.subr.mxu0 0.0
  %348 = vmatpush1.xpose.msra.mxu0 %v171
  %349 = vmatprep.subr.mxu0 0.0
  %350 = vmatpush1.xpose.msra.mxu0 %v166
  %351 = vmatprep.subr.mxu0 0.0
  %352 = vmatpush1.xpose.msra.mxu0 %v161
  %353 = vmatprep.subr.mxu0 0.0
  %354 = vmatpush2.xpose.msra.mxu0 0.0
  %355 = vmatprep.subr.mxu0 0.0
  %356 = vmatpush2.xpose.msra.mxu0 0.0
  %357 = vmatprep.subr.mxu0 0.0
  %358 = vmatpush2.xpose.msra.mxu0 0.0
  %359 = vmatprep.subr.mxu0 0.0
  %360 = vmatpush2.xpose.msra.mxu0 0.0
  %361 = vmatprep.subr.mxu0 0.0
  %362 = vmatpush2.xpose.msra.mxu0 0.0
  %363 = vmatprep.subr.mxu0 0.0
  %364 = vmatpush2.xpose.msra.mxu0 0.0
  %365 = vmatprep.subr.mxu0 0.0
  %366 = vmatpush2.xpose.msra.mxu0 0.0
  %367 = vmatprep.subr.mxu0 0.0
  %368 = vmatpush2.xpose.msra.mxu0 0.0
  %369 = vmatprep.subr.mxu0 0.0
  %370 = vmatpush2.xpose.msra.mxu0 0.0
  %371 = vmatprep.subr.mxu0 0.0
  %372 = vmatpush2.xpose.msra.mxu0 0.0
  %373 = vmatprep.subr.mxu0 0.0
  %374 = vmatpush2.xpose.msra.mxu0 0.0
  %375 = vmatprep.subr.mxu0 0.0
  %376 = vmatpush2.xpose.msra.mxu0 0.0
  %377 = vmatprep.subr.mxu0 0.0
  %378 = vmatpush2.xpose.msra.mxu0 0.0
  %379 = vmatprep.subr.mxu0 0.0
  %380 = vmatpush2.xpose.msra.mxu0 0.0
  %381 = vmatprep.subr.mxu0 0.0
  %382 = vmatpush2.xpose.msra.mxu0 0.0
  %383 = vmatprep.subr.mxu0 0.0
  %384 = vmatpush2.xpose.msra.mxu0 0.0
  %385 = vmatprep.mubr.f32.mxu0 0.0
  %386 = vmatmul.mubr.f32.gmra.mxu0 %v320
  %v387 = vpop.f32.mrf.mxu0
  %v388 = vadd.f32 0.0, %v387
  %v389 = vpop.f32.mrf.mxu0
  %390 = vdwg.mxu0
  %392 = vset.pattern.permute.xlu0 0
  %393 = vperm.xlu0 %392, %v282
  %v394 = vpop.permute.xlu0 %393
  %397 = vset.pattern.permute.xlu0 0
  %398 = vperm.xlu0 %397, %v287
  %v399 = vpop.permute.xlu0 %398
  %402 = vset.pattern.permute.xlu0 0
  %403 = vperm.xlu0 %402, %v292
  %v404 = vpop.permute.xlu0 %403
  %407 = vset.pattern.permute.xlu0 0
  %408 = vperm.xlu0 %407, %v297
  %v409 = vpop.permute.xlu0 %408
  %412 = vset.pattern.permute.xlu0 0
  %413 = vperm.xlu0 %412, %v302
  %v414 = vpop.permute.xlu0 %413
  %417 = vset.pattern.permute.xlu0 0
  %418 = vperm.xlu0 %417, %v307
  %v419 = vpop.permute.xlu0 %418
  %422 = vset.pattern.permute.xlu0 0
  %423 = vperm.xlu0 %422, %v312
  %v424 = vpop.permute.xlu0 %423
  %427 = vset.pattern.permute.xlu0 0
  %428 = vperm.xlu0 %427, %v317
  %v429 = vpop.permute.xlu0 %428
  %v431 = vlaneseq
  %v432 = vshrl.u32 %v431, 7
  %v433 = vsub.s32 0, %v432
  %v434 = vrot.slane %v388, %v433
  %v435 = vadd.f32 %v394, %v434
  %v436 = vadd.f32 %v399, %v434
  %v437 = vadd.f32 %v404, %v434
  %v438 = vadd.f32 %v409, %v434
  %v439 = vadd.f32 %v414, %v434
  %v440 = vadd.f32 %v419, %v434
  %v441 = vadd.f32 %v424, %v434
  %v442 = vadd.f32 %v429, %v434
  %vm443 = vcmp.gt.f32.partialorder %v435, 0.0
  %vm444 = vcmp.gt.f32.partialorder %v436, 0.0
  %vm445 = vcmp.gt.f32.partialorder %v437, 0.0
  %vm446 = vcmp.gt.f32.partialorder %v438, 0.0
  %vm447 = vcmp.gt.f32.partialorder %v439, 0.0
  %vm448 = vcmp.gt.f32.partialorder %v440, 0.0
  %vm449 = vcmp.gt.f32.partialorder %v441, 0.0
  %vm450 = vcmp.gt.f32.partialorder %v442, 0.0
  %v451 = vmul.f32 %v435, 0.3
  %v452 = vmul.f32 %v436, 0.3
  %v453 = vmul.f32 %v437, 0.3
  %v454 = vmul.f32 %v438, 0.3
  %v455 = vmul.f32 %v439, 0.3
  %v456 = vmul.f32 %v440, 0.3
  %v457 = vmul.f32 %v441, 0.3
  %v458 = vmul.f32 %v442, 0.3
  %v459 = vsel %vm443, %v435, %v451
  %v460 = vsel %vm444, %v436, %v452
  %v461 = vsel %vm445, %v437, %v453
  %v462 = vsel %vm446, %v438, %v454
  %v463 = vsel %vm447, %v439, %v455
  %v464 = vsel %vm448, %v440, %v456
  %v465 = vsel %vm449, %v441, %v457
  %v466 = vsel %vm450, %v442, %v458
  %v467 = vsel %vm57, %v459, -1e+12
  %v468 = vsel %vm58, %v460, -1e+12
  %v469 = vsel %vm59, %v461, -1e+12
  %v470 = vsel %vm60, %v462, -1e+12
  %v471 = vsel %vm61, %v463, -1e+12
  %v472 = vsel %vm62, %v464, -1e+12
  %v473 = vsel %vm63, %v465, -1e+12
  %v474 = vsel %vm64, %v466, -1e+12
  %vm475 = vcmask 523264
  %v476 = vsel %vm475, %v467, -inf
  %477 = vmax.xlane.f32.xlu0 %v476
  %v478 = vpop.xlane.xlu0 %477
  %v479 = vsel %vm475, %v468, -inf
  %480 = vmax.xlane.f32.xlu0 %v479
  %v481 = vpop.xlane.xlu0 %480
  %v482 = vsel %vm475, %v469, -inf
  %483 = vmax.xlane.f32.xlu0 %v482
  %v484 = vpop.xlane.xlu0 %483
  %v485 = vsel %vm475, %v470, -inf
  %486 = vmax.xlane.f32.xlu0 %v485
  %v487 = vpop.xlane.xlu0 %486
  %v488 = vsel %vm475, %v471, -inf
  %489 = vmax.xlane.f32.xlu0 %v488
  %v490 = vpop.xlane.xlu0 %489
  %v491 = vsel %vm475, %v472, -inf
  %492 = vmax.xlane.f32.xlu0 %v491
  %v493 = vpop.xlane.xlu0 %492
  %v494 = vsel %vm475, %v473, -inf
  %495 = vmax.xlane.f32.xlu0 %v494
  %v496 = vpop.xlane.xlu0 %495
  %v497 = vsel %vm475, %v474, -inf
  %498 = vmax.xlane.f32.xlu0 %v497
  %v499 = vpop.xlane.xlu0 %498
  %v500 = vsub.f32 %v467, %v478
  %v501 = vsub.f32 %v468, %v481
  %v502 = vsub.f32 %v469, %v484
  %v503 = vsub.f32 %v470, %v487
  %v504 = vsub.f32 %v471, %v490
  %v505 = vsub.f32 %v472, %v493
  %v506 = vsub.f32 %v473, %v496
  %v507 = vsub.f32 %v474, %v499
  %v508 = vmul.f32 %v500, 1.442695
  %v509 = vpow.pop %v508
  %v510 = vmul.f32 %v501, 1.442695
  %v511 = vpow.pop %v510
  %v512 = vmul.f32 %v502, 1.442695
  %v513 = vpow.pop %v512
  %v514 = vmul.f32 %v503, 1.442695
  %v515 = vpow.pop %v514
  %v516 = vmul.f32 %v504, 1.442695
  %v517 = vpow.pop %v516
  %v518 = vmul.f32 %v505, 1.442695
  %v519 = vpow.pop %v518
  %v520 = vmul.f32 %v506, 1.442695
  %v521 = vpow.pop %v520
  %v522 = vmul.f32 %v507, 1.442695
  %v523 = vpow.pop %v522
  %v524 = vsel %vm475, %v509, 0.0
  %525 = vadd.xlane.f32.xlu0 %v524
  %v526 = vpop.xlane.xlu0 %525
  %v527 = vsel %vm475, %v511, 0.0
  %528 = vadd.xlane.f32.xlu0 %v527
  %v529 = vpop.xlane.xlu0 %528
  %v530 = vsel %vm475, %v513, 0.0
  %531 = vadd.xlane.f32.xlu0 %v530
  %v532 = vpop.xlane.xlu0 %531
  %v533 = vsel %vm475, %v515, 0.0
  %534 = vadd.xlane.f32.xlu0 %v533
  %v535 = vpop.xlane.xlu0 %534
  %v536 = vsel %vm475, %v517, 0.0
  %537 = vadd.xlane.f32.xlu0 %v536
  %v538 = vpop.xlane.xlu0 %537
  %v539 = vsel %vm475, %v519, 0.0
  %540 = vadd.xlane.f32.xlu0 %v539
  %v541 = vpop.xlane.xlu0 %540
  %v542 = vsel %vm475, %v521, 0.0
  %543 = vadd.xlane.f32.xlu0 %v542
  %v544 = vpop.xlane.xlu0 %543
  %v545 = vsel %vm475, %v523, 0.0
  %546 = vadd.xlane.f32.xlu0 %v545
  %v547 = vpop.xlane.xlu0 %546
  %v548 = vrcp.pop %v526
  %v549 = vrcp.pop %v529
  %v550 = vrcp.pop %v532
  %v551 = vrcp.pop %v535
  %v552 = vrcp.pop %v538
  %v553 = vrcp.pop %v541
  %v554 = vrcp.pop %v544
  %v555 = vrcp.pop %v547
  %v556 = vmul.f32 %v509, %v548
  %v557 = vmul.f32 %v511, %v549
  %v558 = vmul.f32 %v513, %v550
  %v559 = vmul.f32 %v515, %v551
  %v560 = vmul.f32 %v517, %v552
  %v561 = vmul.f32 %v519, %v553
  %v562 = vmul.f32 %v521, %v554
  %v563 = vmul.f32 %v523, %v555
  %v564 = vsub.f32 0.0, %v459
  %v565 = vsub.f32 0.0, %v460
  %v566 = vsub.f32 0.0, %v461
  %v567 = vsub.f32 0.0, %v462
  %v568 = vsub.f32 0.0, %v463
  %v569 = vsub.f32 0.0, %v464
  %v570 = vsub.f32 0.0, %v465
  %v571 = vsub.f32 0.0, %v466
  %v572 = vsel %vm57, %v564, -1e+12
  %v573 = vsel %vm58, %v565, -1e+12
  %v574 = vsel %vm59, %v566, -1e+12
  %v575 = vsel %vm60, %v567, -1e+12
  %v576 = vsel %vm61, %v568, -1e+12
  %v577 = vsel %vm62, %v569, -1e+12
  %v578 = vsel %vm63, %v570, -1e+12
  %v579 = vsel %vm64, %v571, -1e+12
  %v580 = vsel %vm475, %v572, -inf
  %581 = vmax.xlane.f32.xlu0 %v580
  %v582 = vpop.xlane.xlu0 %581
  %v583 = vsel %vm475, %v573, -inf
  %584 = vmax.xlane.f32.xlu0 %v583
  %v585 = vpop.xlane.xlu0 %584
  %v586 = vsel %vm475, %v574, -inf
  %587 = vmax.xlane.f32.xlu0 %v586
  %v588 = vpop.xlane.xlu0 %587
  %v589 = vsel %vm475, %v575, -inf
  %590 = vmax.xlane.f32.xlu0 %v589
  %v591 = vpop.xlane.xlu0 %590
  %v592 = vsel %vm475, %v576, -inf
  %593 = vmax.xlane.f32.xlu0 %v592
  %v594 = vpop.xlane.xlu0 %593
  %v595 = vsel %vm475, %v577, -inf
  %596 = vmax.xlane.f32.xlu0 %v595
  %v597 = vpop.xlane.xlu0 %596
  %v598 = vsel %vm475, %v578, -inf
  %599 = vmax.xlane.f32.xlu0 %v598
  %v600 = vpop.xlane.xlu0 %599
  %v601 = vsel %vm475, %v579, -inf
  %602 = vmax.xlane.f32.xlu0 %v601
  %v603 = vpop.xlane.xlu0 %602
  %v604 = vsub.f32 %v572, %v582
  %v605 = vsub.f32 %v573, %v585
  %v606 = vsub.f32 %v574, %v588
  %v607 = vsub.f32 %v575, %v591
  %v608 = vsub.f32 %v576, %v594
  %v609 = vsub.f32 %v577, %v597
  %v610 = vsub.f32 %v578, %v600
  %v611 = vsub.f32 %v579, %v603
  %v612 = vmul.f32 %v604, 1.442695
  %v613 = vpow.pop %v612
  %v614 = vmul.f32 %v605, 1.442695
  %v615 = vpow.pop %v614
  %v616 = vmul.f32 %v606, 1.442695
  %v617 = vpow.pop %v616
  %v618 = vmul.f32 %v607, 1.442695
  %v619 = vpow.pop %v618
  %v620 = vmul.f32 %v608, 1.442695
  %v621 = vpow.pop %v620
  %v622 = vmul.f32 %v609, 1.442695
  %v623 = vpow.pop %v622
  %v624 = vmul.f32 %v610, 1.442695
  %v625 = vpow.pop %v624
  %v626 = vmul.f32 %v611, 1.442695
  %v627 = vpow.pop %v626
  %v628 = vsel %vm475, %v613, 0.0
  %629 = vadd.xlane.f32.xlu0 %v628
  %v630 = vpop.xlane.xlu0 %629
  %v631 = vsel %vm475, %v615, 0.0
  %632 = vadd.xlane.f32.xlu0 %v631
  %v633 = vpop.xlane.xlu0 %632
  %v634 = vsel %vm475, %v617, 0.0
  %635 = vadd.xlane.f32.xlu0 %v634
  %v636 = vpop.xlane.xlu0 %635
  %v637 = vsel %vm475, %v619, 0.0
  %638 = vadd.xlane.f32.xlu0 %v637
  %v639 = vpop.xlane.xlu0 %638
  %v640 = vsel %vm475, %v621, 0.0
  %641 = vadd.xlane.f32.xlu0 %v640
  %v642 = vpop.xlane.xlu0 %641
  %v643 = vsel %vm475, %v623, 0.0
  %644 = vadd.xlane.f32.xlu0 %v643
  %v645 = vpop.xlane.xlu0 %644
  %v646 = vsel %vm475, %v625, 0.0
  %647 = vadd.xlane.f32.xlu0 %v646
  %v648 = vpop.xlane.xlu0 %647
  %v649 = vsel %vm475, %v627, 0.0
  %650 = vadd.xlane.f32.xlu0 %v649
  %v651 = vpop.xlane.xlu0 %650
  %v652 = vrcp.pop %v630
  %v653 = vrcp.pop %v633
  %v654 = vrcp.pop %v636
  %v655 = vrcp.pop %v639
  %v656 = vrcp.pop %v642
  %v657 = vrcp.pop %v645
  %v658 = vrcp.pop %v648
  %v659 = vrcp.pop %v651
  %v660 = vmul.f32 %v613, %v652
  %v661 = vmul.f32 %v615, %v653
  %v662 = vmul.f32 %v617, %v654
  %v663 = vmul.f32 %v619, %v655
  %v664 = vmul.f32 %v621, %v656
  %v665 = vmul.f32 %v623, %v657
  %v666 = vmul.f32 %v625, %v658
  %v667 = vmul.f32 %v627, %v659
  %v668 = vld [vmem:[%s5] sm:$0xff]
  %v669 = vld [vmem:[%s5 + $0x8] sm:$0xff]
  %v670 = vld [vmem:[%s5 + $0x10] sm:$0xff]
  %v671 = vld [vmem:[%s5 + $0x18] sm:$0xff]
  %672 = vmatprep.subr.mxu0 0.0
  %673 = vmatpush1.msra.mxu0 0.0
  %674 = vmatprep.subr.mxu0 0.0
  %675 = vmatpush1.msra.mxu0 0.0
  %676 = vmatprep.subr.mxu0 0.0
  %677 = vmatpush1.msra.mxu0 0.0
  %678 = vmatprep.subr.mxu0 0.0
  %679 = vmatpush1.msra.mxu0 0.0
  %680 = vmatprep.subr.mxu0 0.0
  %681 = vmatpush1.msra.mxu0 0.0
  %682 = vmatprep.subr.mxu0 0.0
  %683 = vmatpush1.msra.mxu0 0.0
  %684 = vmatprep.subr.mxu0 0.0
  %685 = vmatpush1.msra.mxu0 0.0
  %686 = vmatprep.subr.mxu0 0.0
  %687 = vmatpush1.msra.mxu0 0.0
  %688 = vmatprep.subr.mxu0 0.0
  %689 = vmatpush1.msra.mxu0 0.0
  %690 = vmatprep.subr.mxu0 0.0
  %691 = vmatpush1.msra.mxu0 0.0
  %692 = vmatprep.subr.mxu0 0.0
  %693 = vmatpush1.msra.mxu0 0.0
  %694 = vmatprep.subr.mxu0 0.0
  %695 = vmatpush1.msra.mxu0 0.0
  %696 = vmatprep.subr.mxu0 0.0
  %697 = vmatpush1.msra.mxu0 %v671
  %698 = vmatprep.subr.mxu0 0.0
  %699 = vmatpush1.msra.mxu0 %v670
  %700 = vmatprep.subr.mxu0 0.0
  %701 = vmatpush1.msra.mxu0 %v669
  %702 = vmatprep.subr.mxu0 0.0
  %703 = vmatpush1.msra.mxu0 %v668
  %704 = vmatprep.subr.mxu0 0.0
  %705 = vmatpush2.msra.mxu0 0.0
  %706 = vmatprep.subr.mxu0 0.0
  %707 = vmatpush2.msra.mxu0 0.0
  %708 = vmatprep.subr.mxu0 0.0
  %709 = vmatpush2.msra.mxu0 0.0
  %710 = vmatprep.subr.mxu0 0.0
  %711 = vmatpush2.msra.mxu0 0.0
  %712 = vmatprep.subr.mxu0 0.0
  %713 = vmatpush2.msra.mxu0 0.0
  %714 = vmatprep.subr.mxu0 0.0
  %715 = vmatpush2.msra.mxu0 0.0
  %716 = vmatprep.subr.mxu0 0.0
  %717 = vmatpush2.msra.mxu0 0.0
  %718 = vmatprep.subr.mxu0 0.0
  %719 = vmatpush2.msra.mxu0 0.0
  %720 = vmatprep.subr.mxu0 0.0
  %721 = vmatpush2.msra.mxu0 0.0
  %722 = vmatprep.subr.mxu0 0.0
  %723 = vmatpush2.msra.mxu0 0.0
  %724 = vmatprep.subr.mxu0 0.0
  %725 = vmatpush2.msra.mxu0 0.0
  %726 = vmatprep.subr.mxu0 0.0
  %727 = vmatpush2.msra.mxu0 0.0
  %728 = vmatprep.subr.mxu0 0.0
  %729 = vmatpush2.msra.mxu0 0.0
  %730 = vmatprep.subr.mxu0 0.0
  %731 = vmatpush2.msra.mxu0 0.0
  %732 = vmatprep.subr.mxu0 0.0
  %733 = vmatpush2.msra.mxu0 0.0
  %734 = vmatprep.subr.mxu0 0.0
  %735 = vmatpush2.msra.mxu0 0.0
  %736 = vmatprep.mubr.f32.mxu0 0.0
  %737 = vmatmul.mubr.f32.gmra.mxu0 %v71
  %v738 = vpop.f32.mrf.mxu0
  %v739 = vadd.f32 0.0, %v738
  %v740 = vpop.f32.mrf.mxu0
  %741 = vmatprep.mubr.f32.mxu0 0.0
  %742 = vmatmul.mubr.f32.gmra.mxu0 %v74
  %v743 = vpop.f32.mrf.mxu0
  %v744 = vadd.f32 0.0, %v743
  %v745 = vpop.f32.mrf.mxu0
  %746 = vmatprep.mubr.f32.mxu0 0.0
  %747 = vmatmul.mubr.f32.gmra.mxu0 %v77
  %v748 = vpop.f32.mrf.mxu0
  %v749 = vadd.f32 0.0, %v748
  %v750 = vpop.f32.mrf.mxu0
  %751 = vmatprep.mubr.f32.mxu0 0.0
  %752 = vmatmul.mubr.f32.gmra.mxu0 %v80
  %v753 = vpop.f32.mrf.mxu0
  %v754 = vadd.f32 0.0, %v753
  %v755 = vpop.f32.mrf.mxu0
  %756 = vmatprep.mubr.f32.mxu0 0.0
  %757 = vmatmul.mubr.f32.gmra.mxu0 %v83
  %v758 = vpop.f32.mrf.mxu0
  %v759 = vadd.f32 0.0, %v758
  %v760 = vpop.f32.mrf.mxu0
  %761 = vmatprep.mubr.f32.mxu0 0.0
  %762 = vmatmul.mubr.f32.gmra.mxu0 %v86
  %v763 = vpop.f32.mrf.mxu0
  %v764 = vadd.f32 0.0, %v763
  %v765 = vpop.f32.mrf.mxu0
  %766 = vmatprep.mubr.f32.mxu0 0.0
  %767 = vmatmul.mubr.f32.gmra.mxu0 %v89
  %v768 = vpop.f32.mrf.mxu0
  %v769 = vadd.f32 0.0, %v768
  %v770 = vpop.f32.mrf.mxu0
  %771 = vmatprep.mubr.f32.mxu0 0.0
  %772 = vmatmul.mubr.f32.gmra.mxu0 %v92
  %v773 = vpop.f32.mrf.mxu0
  %v774 = vadd.f32 0.0, %v773
  %v775 = vpop.f32.mrf.mxu0
  %776 = vdwg.mxu0
  %v777 = vld [vmem:[%s6] sm:$0xff]
  %v778 = vld [vmem:[%s6 + $0x8] sm:$0xff]
  %v779 = vld [vmem:[%s6 + $0x10] sm:$0xff]
  %v780 = vld [vmem:[%s6 + $0x18] sm:$0xff]
  %781 = vmatprep.subr.mxu0 0.0
  %782 = vmatpush1.msra.mxu0 0.0
  %783 = vmatprep.subr.mxu0 0.0
  %784 = vmatpush1.msra.mxu0 0.0
  %785 = vmatprep.subr.mxu0 0.0
  %786 = vmatpush1.msra.mxu0 0.0
  %787 = vmatprep.subr.mxu0 0.0
  %788 = vmatpush1.msra.mxu0 0.0
  %789 = vmatprep.subr.mxu0 0.0
  %790 = vmatpush1.msra.mxu0 0.0
  %791 = vmatprep.subr.mxu0 0.0
  %792 = vmatpush1.msra.mxu0 0.0
  %793 = vmatprep.subr.mxu0 0.0
  %794 = vmatpush1.msra.mxu0 0.0
  %795 = vmatprep.subr.mxu0 0.0
  %796 = vmatpush1.msra.mxu0 0.0
  %797 = vmatprep.subr.mxu0 0.0
  %798 = vmatpush1.msra.mxu0 0.0
  %799 = vmatprep.subr.mxu0 0.0
  %800 = vmatpush1.msra.mxu0 0.0
  %801 = vmatprep.subr.mxu0 0.0
  %802 = vmatpush1.msra.mxu0 0.0
  %803 = vmatprep.subr.mxu0 0.0
  %804 = vmatpush1.msra.mxu0 0.0
  %805 = vmatprep.subr.mxu0 0.0
  %806 = vmatpush1.msra.mxu0 %v780
  %807 = vmatprep.subr.mxu0 0.0
  %808 = vmatpush1.msra.mxu0 %v779
  %809 = vmatprep.subr.mxu0 0.0
  %810 = vmatpush1.msra.mxu0 %v778
  %811 = vmatprep.subr.mxu0 0.0
  %812 = vmatpush1.msra.mxu0 %v777
  %813 = vmatprep.subr.mxu0 0.0
  %814 = vmatpush2.msra.mxu0 0.0
  %815 = vmatprep.subr.mxu0 0.0
  %816 = vmatpush2.msra.mxu0 0.0
  %817 = vmatprep.subr.mxu0 0.0
  %818 = vmatpush2.msra.mxu0 0.0
  %819 = vmatprep.subr.mxu0 0.0
  %820 = vmatpush2.msra.mxu0 0.0
  %821 = vmatprep.subr.mxu0 0.0
  %822 = vmatpush2.msra.mxu0 0.0
  %823 = vmatprep.subr.mxu0 0.0
  %824 = vmatpush2.msra.mxu0 0.0
  %825 = vmatprep.subr.mxu0 0.0
  %826 = vmatpush2.msra.mxu0 0.0
  %827 = vmatprep.subr.mxu0 0.0
  %828 = vmatpush2.msra.mxu0 0.0
  %829 = vmatprep.subr.mxu0 0.0
  %830 = vmatpush2.msra.mxu0 0.0
  %831 = vmatprep.subr.mxu0 0.0
  %832 = vmatpush2.msra.mxu0 0.0
  %833 = vmatprep.subr.mxu0 0.0
  %834 = vmatpush2.msra.mxu0 0.0
  %835 = vmatprep.subr.mxu0 0.0
  %836 = vmatpush2.msra.mxu0 0.0
  %837 = vmatprep.subr.mxu0 0.0
  %838 = vmatpush2.msra.mxu0 0.0
  %839 = vmatprep.subr.mxu0 0.0
  %840 = vmatpush2.msra.mxu0 0.0
  %841 = vmatprep.subr.mxu0 0.0
  %842 = vmatpush2.msra.mxu0 0.0
  %843 = vmatprep.subr.mxu0 0.0
  %844 = vmatpush2.msra.mxu0 0.0
  %845 = vmatprep.mubr.f32.mxu0 0.0
  %846 = vmatmul.mubr.f32.gmra.mxu0 %v71
  %v847 = vpop.f32.mrf.mxu0
  %v848 = vadd.f32 0.0, %v847
  %v849 = vpop.f32.mrf.mxu0
  %850 = vmatprep.mubr.f32.mxu0 0.0
  %851 = vmatmul.mubr.f32.gmra.mxu0 %v74
  %v852 = vpop.f32.mrf.mxu0
  %v853 = vadd.f32 0.0, %v852
  %v854 = vpop.f32.mrf.mxu0
  %855 = vmatprep.mubr.f32.mxu0 0.0
  %856 = vmatmul.mubr.f32.gmra.mxu0 %v77
  %v857 = vpop.f32.mrf.mxu0
  %v858 = vadd.f32 0.0, %v857
  %v859 = vpop.f32.mrf.mxu0
  %860 = vmatprep.mubr.f32.mxu0 0.0
  %861 = vmatmul.mubr.f32.gmra.mxu0 %v80
  %v862 = vpop.f32.mrf.mxu0
  %v863 = vadd.f32 0.0, %v862
  %v864 = vpop.f32.mrf.mxu0
  %865 = vmatprep.mubr.f32.mxu0 0.0
  %866 = vmatmul.mubr.f32.gmra.mxu0 %v83
  %v867 = vpop.f32.mrf.mxu0
  %v868 = vadd.f32 0.0, %v867
  %v869 = vpop.f32.mrf.mxu0
  %870 = vmatprep.mubr.f32.mxu0 0.0
  %871 = vmatmul.mubr.f32.gmra.mxu0 %v86
  %v872 = vpop.f32.mrf.mxu0
  %v873 = vadd.f32 0.0, %v872
  %v874 = vpop.f32.mrf.mxu0
  %875 = vmatprep.mubr.f32.mxu0 0.0
  %876 = vmatmul.mubr.f32.gmra.mxu0 %v89
  %v877 = vpop.f32.mrf.mxu0
  %v878 = vadd.f32 0.0, %v877
  %v879 = vpop.f32.mrf.mxu0
  %880 = vmatprep.mubr.f32.mxu0 0.0
  %881 = vmatmul.mubr.f32.gmra.mxu0 %v92
  %v882 = vpop.f32.mrf.mxu0
  %v883 = vadd.f32 0.0, %v882
  %v884 = vpop.f32.mrf.mxu0
  %885 = vdwg.mxu0
  %v887 = vsel %vm475, %v556, 0
  %v890 = vsel %vm475, %v557, 0
  %v893 = vsel %vm475, %v558, 0
  %v896 = vsel %vm475, %v559, 0
  %v899 = vsel %vm475, %v560, 0
  %v902 = vsel %vm475, %v561, 0
  %v905 = vsel %vm475, %v562, 0
  %v908 = vsel %vm475, %v563, 0
  %910 = vmatprep.subr.mxu0 0.0
  %911 = vmatpush1.msra.mxu0 0.0
  %912 = vmatprep.subr.mxu0 0.0
  %913 = vmatpush1.msra.mxu0 0.0
  %914 = vmatprep.subr.mxu0 0.0
  %915 = vmatpush1.msra.mxu0 0.0
  %916 = vmatprep.subr.mxu0 0.0
  %917 = vmatpush1.msra.mxu0 0.0
  %918 = vmatprep.subr.mxu0 0.0
  %919 = vmatpush1.msra.mxu0 0.0
  %920 = vmatprep.subr.mxu0 0.0
  %921 = vmatpush1.msra.mxu0 0.0
  %922 = vmatprep.subr.mxu0 0.0
  %923 = vmatpush1.msra.mxu0 0.0
  %924 = vmatprep.subr.mxu0 0.0
  %925 = vmatpush1.msra.mxu0 0.0
  %926 = vmatprep.subr.mxu0 0.0
  %927 = vmatpush1.msra.mxu0 %v774
  %928 = vmatprep.subr.mxu0 0.0
  %929 = vmatpush1.msra.mxu0 %v769
  %930 = vmatprep.subr.mxu0 0.0
  %931 = vmatpush1.msra.mxu0 %v764
  %932 = vmatprep.subr.mxu0 0.0
  %933 = vmatpush1.msra.mxu0 %v759
  %934 = vmatprep.subr.mxu0 0.0
  %935 = vmatpush1.msra.mxu0 %v754
  %936 = vmatprep.subr.mxu0 0.0
  %937 = vmatpush1.msra.mxu0 %v749
  %938 = vmatprep.subr.mxu0 0.0
  %939 = vmatpush1.msra.mxu0 %v744
  %940 = vmatprep.subr.mxu0 0.0
  %941 = vmatpush1.msra.mxu0 %v739
  %942 = vmatprep.subr.mxu0 0.0
  %943 = vmatpush2.msra.mxu0 0.0
  %944 = vmatprep.subr.mxu0 0.0
  %945 = vmatpush2.msra.mxu0 0.0
  %946 = vmatprep.subr.mxu0 0.0
  %947 = vmatpush2.msra.mxu0 0.0
  %948 = vmatprep.subr.mxu0 0.0
  %949 = vmatpush2.msra.mxu0 0.0
  %950 = vmatprep.subr.mxu0 0.0
  %951 = vmatpush2.msra.mxu0 0.0
  %952 = vmatprep.subr.mxu0 0.0
  %953 = vmatpush2.msra.mxu0 0.0
  %954 = vmatprep.subr.mxu0 0.0
  %955 = vmatpush2.msra.mxu0 0.0
  %956 = vmatprep.subr.mxu0 0.0
  %957 = vmatpush2.msra.mxu0 0.0
  %958 = vmatprep.subr.mxu0 0.0
  %959 = vmatpush2.msra.mxu0 0.0
  %960 = vmatprep.subr.mxu0 0.0
  %961 = vmatpush2.msra.mxu0 0.0
  %962 = vmatprep.subr.mxu0 0.0
  %963 = vmatpush2.msra.mxu0 0.0
  %964 = vmatprep.subr.mxu0 0.0
  %965 = vmatpush2.msra.mxu0 0.0
  %966 = vmatprep.subr.mxu0 0.0
  %967 = vmatpush2.msra.mxu0 0.0
  %968 = vmatprep.subr.mxu0 0.0
  %969 = vmatpush2.msra.mxu0 0.0
  %970 = vmatprep.subr.mxu0 0.0
  %971 = vmatpush2.msra.mxu0 0.0
  %972 = vmatprep.subr.mxu0 0.0
  %973 = vmatpush2.msra.mxu0 0.0
  %974 = vmatprep.mubr.f32.mxu0 0.0
  %975 = vmatmul.mubr.f32.gmra.mxu0 %v887
  %v976 = vpop.f32.mrf.mxu0
  %v977 = vadd.f32 0.0, %v976
  %v978 = vpop.f32.mrf.mxu0
  %979 = vmatprep.mubr.f32.mxu0 0.0
  %980 = vmatmul.mubr.f32.gmra.mxu0 %v890
  %v981 = vpop.f32.mrf.mxu0
  %v982 = vadd.f32 0.0, %v981
  %v983 = vpop.f32.mrf.mxu0
  %984 = vmatprep.mubr.f32.mxu0 0.0
  %985 = vmatmul.mubr.f32.gmra.mxu0 %v893
  %v986 = vpop.f32.mrf.mxu0
  %v987 = vadd.f32 0.0, %v986
  %v988 = vpop.f32.mrf.mxu0
  %989 = vmatprep.mubr.f32.mxu0 0.0
  %990 = vmatmul.mubr.f32.gmra.mxu0 %v896
  %v991 = vpop.f32.mrf.mxu0
  %v992 = vadd.f32 0.0, %v991
  %v993 = vpop.f32.mrf.mxu0
  %994 = vmatprep.mubr.f32.mxu0 0.0
  %995 = vmatmul.mubr.f32.gmra.mxu0 %v899
  %v996 = vpop.f32.mrf.mxu0
  %v997 = vadd.f32 0.0, %v996
  %v998 = vpop.f32.mrf.mxu0
  %999 = vmatprep.mubr.f32.mxu0 0.0
  %1000 = vmatmul.mubr.f32.gmra.mxu0 %v902
  %v1001 = vpop.f32.mrf.mxu0
  %v1002 = vadd.f32 0.0, %v1001
  %v1003 = vpop.f32.mrf.mxu0
  %1004 = vmatprep.mubr.f32.mxu0 0.0
  %1005 = vmatmul.mubr.f32.gmra.mxu0 %v905
  %v1006 = vpop.f32.mrf.mxu0
  %v1007 = vadd.f32 0.0, %v1006
  %v1008 = vpop.f32.mrf.mxu0
  %1009 = vmatprep.mubr.f32.mxu0 0.0
  %1010 = vmatmul.mubr.f32.gmra.mxu0 %v908
  %v1011 = vpop.f32.mrf.mxu0
  %v1012 = vadd.f32 0.0, %v1011
  %v1013 = vpop.f32.mrf.mxu0
  %1014 = vdwg.mxu0
  %v1016 = vsel %vm475, %v660, 0
  %v1019 = vsel %vm475, %v661, 0
  %v1022 = vsel %vm475, %v662, 0
  %v1025 = vsel %vm475, %v663, 0
  %v1028 = vsel %vm475, %v664, 0
  %v1031 = vsel %vm475, %v665, 0
  %v1034 = vsel %vm475, %v666, 0
  %v1037 = vsel %vm475, %v667, 0
  %1039 = vmatprep.subr.mxu0 0.0
  %1040 = vmatpush1.msra.mxu0 0.0
  %1041 = vmatprep.subr.mxu0 0.0
  %1042 = vmatpush1.msra.mxu0 0.0
  %1043 = vmatprep.subr.mxu0 0.0
  %1044 = vmatpush1.msra.mxu0 0.0
  %1045 = vmatprep.subr.mxu0 0.0
  %1046 = vmatpush1.msra.mxu0 0.0
  %1047 = vmatprep.subr.mxu0 0.0
  %1048 = vmatpush1.msra.mxu0 0.0
  %1049 = vmatprep.subr.mxu0 0.0
  %1050 = vmatpush1.msra.mxu0 0.0
  %1051 = vmatprep.subr.mxu0 0.0
  %1052 = vmatpush1.msra.mxu0 0.0
  %1053 = vmatprep.subr.mxu0 0.0
  %1054 = vmatpush1.msra.mxu0 0.0
  %1055 = vmatprep.subr.mxu0 0.0
  %1056 = vmatpush1.msra.mxu0 %v883
  %1057 = vmatprep.subr.mxu0 0.0
  %1058 = vmatpush1.msra.mxu0 %v878
  %1059 = vmatprep.subr.mxu0 0.0
  %1060 = vmatpush1.msra.mxu0 %v873
  %1061 = vmatprep.subr.mxu0 0.0
  %1062 = vmatpush1.msra.mxu0 %v868
  %1063 = vmatprep.subr.mxu0 0.0
  %1064 = vmatpush1.msra.mxu0 %v863
  %1065 = vmatprep.subr.mxu0 0.0
  %1066 = vmatpush1.msra.mxu0 %v858
  %1067 = vmatprep.subr.mxu0 0.0
  %1068 = vmatpush1.msra.mxu0 %v853
  %1069 = vmatprep.subr.mxu0 0.0
  %1070 = vmatpush1.msra.mxu0 %v848
  %1071 = vmatprep.subr.mxu0 0.0
  %1072 = vmatpush2.msra.mxu0 0.0
  %1073 = vmatprep.subr.mxu0 0.0
  %1074 = vmatpush2.msra.mxu0 0.0
  %1075 = vmatprep.subr.mxu0 0.0
  %1076 = vmatpush2.msra.mxu0 0.0
  %1077 = vmatprep.subr.mxu0 0.0
  %1078 = vmatpush2.msra.mxu0 0.0
  %1079 = vmatprep.subr.mxu0 0.0
  %1080 = vmatpush2.msra.mxu0 0.0
  %1081 = vmatprep.subr.mxu0 0.0
  %1082 = vmatpush2.msra.mxu0 0.0
  %1083 = vmatprep.subr.mxu0 0.0
  %1084 = vmatpush2.msra.mxu0 0.0
  %1085 = vmatprep.subr.mxu0 0.0
  %1086 = vmatpush2.msra.mxu0 0.0
  %1087 = vmatprep.subr.mxu0 0.0
  %1088 = vmatpush2.msra.mxu0 0.0
  %1089 = vmatprep.subr.mxu0 0.0
  %1090 = vmatpush2.msra.mxu0 0.0
  %1091 = vmatprep.subr.mxu0 0.0
  %1092 = vmatpush2.msra.mxu0 0.0
  %1093 = vmatprep.subr.mxu0 0.0
  %1094 = vmatpush2.msra.mxu0 0.0
  %1095 = vmatprep.subr.mxu0 0.0
  %1096 = vmatpush2.msra.mxu0 0.0
  %1097 = vmatprep.subr.mxu0 0.0
  %1098 = vmatpush2.msra.mxu0 0.0
  %1099 = vmatprep.subr.mxu0 0.0
  %1100 = vmatpush2.msra.mxu0 0.0
  %1101 = vmatprep.subr.mxu0 0.0
  %1102 = vmatpush2.msra.mxu0 0.0
  %1103 = vmatprep.mubr.f32.mxu0 0.0
  %1104 = vmatmul.mubr.f32.gmra.mxu0 %v1016
  %v1105 = vpop.f32.mrf.mxu0
  %v1106 = vadd.f32 0.0, %v1105
  %v1107 = vpop.f32.mrf.mxu0
  %1108 = vmatprep.mubr.f32.mxu0 0.0
  %1109 = vmatmul.mubr.f32.gmra.mxu0 %v1019
  %v1110 = vpop.f32.mrf.mxu0
  %v1111 = vadd.f32 0.0, %v1110
  %v1112 = vpop.f32.mrf.mxu0
  %1113 = vmatprep.mubr.f32.mxu0 0.0
  %1114 = vmatmul.mubr.f32.gmra.mxu0 %v1022
  %v1115 = vpop.f32.mrf.mxu0
  %v1116 = vadd.f32 0.0, %v1115
  %v1117 = vpop.f32.mrf.mxu0
  %1118 = vmatprep.mubr.f32.mxu0 0.0
  %1119 = vmatmul.mubr.f32.gmra.mxu0 %v1025
  %v1120 = vpop.f32.mrf.mxu0
  %v1121 = vadd.f32 0.0, %v1120
  %v1122 = vpop.f32.mrf.mxu0
  %1123 = vmatprep.mubr.f32.mxu0 0.0
  %1124 = vmatmul.mubr.f32.gmra.mxu0 %v1028
  %v1125 = vpop.f32.mrf.mxu0
  %v1126 = vadd.f32 0.0, %v1125
  %v1127 = vpop.f32.mrf.mxu0
  %1128 = vmatprep.mubr.f32.mxu0 0.0
  %1129 = vmatmul.mubr.f32.gmra.mxu0 %v1031
  %v1130 = vpop.f32.mrf.mxu0
  %v1131 = vadd.f32 0.0, %v1130
  %v1132 = vpop.f32.mrf.mxu0
  %1133 = vmatprep.mubr.f32.mxu0 0.0
  %1134 = vmatmul.mubr.f32.gmra.mxu0 %v1034
  %v1135 = vpop.f32.mrf.mxu0
  %v1136 = vadd.f32 0.0, %v1135
  %v1137 = vpop.f32.mrf.mxu0
  %1138 = vmatprep.mubr.f32.mxu0 0.0
  %1139 = vmatmul.mubr.f32.gmra.mxu0 %v1037
  %v1140 = vpop.f32.mrf.mxu0
  %v1141 = vadd.f32 0.0, %v1140
  %v1142 = vpop.f32.mrf.mxu0
  %1143 = vdwg.mxu0
  %v1144 = vsub.f32 %v977, %v1106
  %v1145 = vsub.f32 %v982, %v1111
  %v1146 = vsub.f32 %v987, %v1116
  %v1147 = vsub.f32 %v992, %v1121
  %v1148 = vsub.f32 %v997, %v1126
  %v1149 = vsub.f32 %v1002, %v1131
  %v1150 = vsub.f32 %v1007, %v1136
  %v1151 = vsub.f32 %v1012, %v1141
  %vm1152 = vcmp.gt.f32.partialorder %v1144, 0.0
  %vm1153 = vcmp.gt.f32.partialorder %v1145, 0.0
  %vm1154 = vcmp.gt.f32.partialorder %v1146, 0.0
  %vm1155 = vcmp.gt.f32.partialorder %v1147, 0.0
  %vm1156 = vcmp.gt.f32.partialorder %v1148, 0.0
  %vm1157 = vcmp.gt.f32.partialorder %v1149, 0.0
  %vm1158 = vcmp.gt.f32.partialorder %v1150, 0.0
  %vm1159 = vcmp.gt.f32.partialorder %v1151, 0.0
  %v1160 = vmul.f32 %v1144, 1.442695
  %v1161 = vpow.pop %v1160
  %v1162 = vmul.f32 %v1145, 1.442695
  %v1163 = vpow.pop %v1162
  %v1164 = vmul.f32 %v1146, 1.442695
  %v1165 = vpow.pop %v1164
  %v1166 = vmul.f32 %v1147, 1.442695
  %v1167 = vpow.pop %v1166
  %v1168 = vmul.f32 %v1148, 1.442695
  %v1169 = vpow.pop %v1168
  %v1170 = vmul.f32 %v1149, 1.442695
  %v1171 = vpow.pop %v1170
  %v1172 = vmul.f32 %v1150, 1.442695
  %v1173 = vpow.pop %v1172
  %v1174 = vmul.f32 %v1151, 1.442695
  %v1175 = vpow.pop %v1174
  %v1176 = vsub.f32 %v1161, 1.0
  %v1177 = vsub.f32 %v1163, 1.0
  %v1178 = vsub.f32 %v1165, 1.0
  %v1179 = vsub.f32 %v1167, 1.0
  %v1180 = vsub.f32 %v1169, 1.0
  %v1181 = vsub.f32 %v1171, 1.0
  %v1182 = vsub.f32 %v1173, 1.0
  %v1183 = vsub.f32 %v1175, 1.0
  %v1184 = vsel %vm1152, %v1144, %v1176
  %v1185 = vsel %vm1153, %v1145, %v1177
  %v1186 = vsel %vm1154, %v1146, %v1178
  %v1187 = vsel %vm1155, %v1147, %v1179
  %v1188 = vsel %vm1156, %v1148, %v1180
  %v1189 = vsel %vm1157, %v1149, %v1181
  %v1190 = vsel %vm1158, %v1150, %v1182
  %v1191 = vsel %vm1159, %v1151, %v1183
  %1192 = vset.pattern.permute.xlu0 1
  %1193 = vperm.xlu0 %1192, %v282
  %v1194 = vpop.permute.xlu0 %1193
  %1196 = vset.pattern.permute.xlu0 1
  %1197 = vperm.xlu0 %1196, %v287
  %v1198 = vpop.permute.xlu0 %1197
  %1200 = vset.pattern.permute.xlu0 1
  %1201 = vperm.xlu0 %1200, %v292
  %v1202 = vpop.permute.xlu0 %1201
  %1204 = vset.pattern.permute.xlu0 1
  %1205 = vperm.xlu0 %1204, %v297
  %v1206 = vpop.permute.xlu0 %1205
  %1208 = vset.pattern.permute.xlu0 1
  %1209 = vperm.xlu0 %1208, %v302
  %v1210 = vpop.permute.xlu0 %1209
  %1212 = vset.pattern.permute.xlu0 1
  %1213 = vperm.xlu0 %1212, %v307
  %v1214 = vpop.permute.xlu0 %1213
  %1216 = vset.pattern.permute.xlu0 1
  %1217 = vperm.xlu0 %1216, %v312
  %v1218 = vpop.permute.xlu0 %1217
  %1220 = vset.pattern.permute.xlu0 1
  %1221 = vperm.xlu0 %1220, %v317
  %v1222 = vpop.permute.xlu0 %1221
  %v1224 = vlaneseq
  %v1225 = vshrl.u32 %v1224, 7
  %v1226 = vsub.s32 1, %v1225
  %v1227 = vrot.slane %v388, %v1226
  %v1228 = vadd.f32 %v1194, %v1227
  %v1229 = vadd.f32 %v1198, %v1227
  %v1230 = vadd.f32 %v1202, %v1227
  %v1231 = vadd.f32 %v1206, %v1227
  %v1232 = vadd.f32 %v1210, %v1227
  %v1233 = vadd.f32 %v1214, %v1227
  %v1234 = vadd.f32 %v1218, %v1227
  %v1235 = vadd.f32 %v1222, %v1227
  %vm1236 = vcmp.gt.f32.partialorder %v1228, 0.0
  %vm1237 = vcmp.gt.f32.partialorder %v1229, 0.0
  %vm1238 = vcmp.gt.f32.partialorder %v1230, 0.0
  %vm1239 = vcmp.gt.f32.partialorder %v1231, 0.0
  %vm1240 = vcmp.gt.f32.partialorder %v1232, 0.0
  %vm1241 = vcmp.gt.f32.partialorder %v1233, 0.0
  %vm1242 = vcmp.gt.f32.partialorder %v1234, 0.0
  %vm1243 = vcmp.gt.f32.partialorder %v1235, 0.0
  %v1244 = vmul.f32 %v1228, 0.3
  %v1245 = vmul.f32 %v1229, 0.3
  %v1246 = vmul.f32 %v1230, 0.3
  %v1247 = vmul.f32 %v1231, 0.3
  %v1248 = vmul.f32 %v1232, 0.3
  %v1249 = vmul.f32 %v1233, 0.3
  %v1250 = vmul.f32 %v1234, 0.3
  %v1251 = vmul.f32 %v1235, 0.3
  %v1252 = vsel %vm1236, %v1228, %v1244
  %v1253 = vsel %vm1237, %v1229, %v1245
  %v1254 = vsel %vm1238, %v1230, %v1246
  %v1255 = vsel %vm1239, %v1231, %v1247
  %v1256 = vsel %vm1240, %v1232, %v1248
  %v1257 = vsel %vm1241, %v1233, %v1249
  %v1258 = vsel %vm1242, %v1234, %v1250
  %v1259 = vsel %vm1243, %v1235, %v1251
  %v1260 = vsel %vm57, %v1252, -1e+12
  %v1261 = vsel %vm58, %v1253, -1e+12
  %v1262 = vsel %vm59, %v1254, -1e+12
  %v1263 = vsel %vm60, %v1255, -1e+12
  %v1264 = vsel %vm61, %v1256, -1e+12
  %v1265 = vsel %vm62, %v1257, -1e+12
  %v1266 = vsel %vm63, %v1258, -1e+12
  %v1267 = vsel %vm64, %v1259, -1e+12
  %v1268 = vsel %vm475, %v1260, -inf
  %1269 = vmax.xlane.f32.xlu0 %v1268
  %v1270 = vpop.xlane.xlu0 %1269
  %v1271 = vsel %vm475, %v1261, -inf
  %1272 = vmax.xlane.f32.xlu0 %v1271
  %v1273 = vpop.xlane.xlu0 %1272
  %v1274 = vsel %vm475, %v1262, -inf
  %1275 = vmax.xlane.f32.xlu0 %v1274
  %v1276 = vpop.xlane.xlu0 %1275
  %v1277 = vsel %vm475, %v1263, -inf
  %1278 = vmax.xlane.f32.xlu0 %v1277
  %v1279 = vpop.xlane.xlu0 %1278
  %v1280 = vsel %vm475, %v1264, -inf
  %1281 = vmax.xlane.f32.xlu0 %v1280
  %v1282 = vpop.xlane.xlu0 %1281
  %v1283 = vsel %vm475, %v1265, -inf
  %1284 = vmax.xlane.f32.xlu0 %v1283
  %v1285 = vpop.xlane.xlu0 %1284
  %v1286 = vsel %vm475, %v1266, -inf
  %1287 = vmax.xlane.f32.xlu0 %v1286
  %v1288 = vpop.xlane.xlu0 %1287
  %v1289 = vsel %vm475, %v1267, -inf
  %1290 = vmax.xlane.f32.xlu0 %v1289
  %v1291 = vpop.xlane.xlu0 %1290
  %v1292 = vsub.f32 %v1260, %v1270
  %v1293 = vsub.f32 %v1261, %v1273
  %v1294 = vsub.f32 %v1262, %v1276
  %v1295 = vsub.f32 %v1263, %v1279
  %v1296 = vsub.f32 %v1264, %v1282
  %v1297 = vsub.f32 %v1265, %v1285
  %v1298 = vsub.f32 %v1266, %v1288
  %v1299 = vsub.f32 %v1267, %v1291
  %v1300 = vmul.f32 %v1292, 1.442695
  %v1301 = vpow.pop %v1300
  %v1302 = vmul.f32 %v1293, 1.442695
  %v1303 = vpow.pop %v1302
  %v1304 = vmul.f32 %v1294, 1.442695
  %v1305 = vpow.pop %v1304
  %v1306 = vmul.f32 %v1295, 1.442695
  %v1307 = vpow.pop %v1306
  %v1308 = vmul.f32 %v1296, 1.442695
  %v1309 = vpow.pop %v1308
  %v1310 = vmul.f32 %v1297, 1.442695
  %v1311 = vpow.pop %v1310
  %v1312 = vmul.f32 %v1298, 1.442695
  %v1313 = vpow.pop %v1312
  %v1314 = vmul.f32 %v1299, 1.442695
  %v1315 = vpow.pop %v1314
  %v1316 = vsel %vm475, %v1301, 0.0
  %1317 = vadd.xlane.f32.xlu0 %v1316
  %v1318 = vpop.xlane.xlu0 %1317
  %v1319 = vsel %vm475, %v1303, 0.0
  %1320 = vadd.xlane.f32.xlu0 %v1319
  %v1321 = vpop.xlane.xlu0 %1320
  %v1322 = vsel %vm475, %v1305, 0.0
  %1323 = vadd.xlane.f32.xlu0 %v1322
  %v1324 = vpop.xlane.xlu0 %1323
  %v1325 = vsel %vm475, %v1307, 0.0
  %1326 = vadd.xlane.f32.xlu0 %v1325
  %v1327 = vpop.xlane.xlu0 %1326
  %v1328 = vsel %vm475, %v1309, 0.0
  %1329 = vadd.xlane.f32.xlu0 %v1328
  %v1330 = vpop.xlane.xlu0 %1329
  %v1331 = vsel %vm475, %v1311, 0.0
  %1332 = vadd.xlane.f32.xlu0 %v1331
  %v1333 = vpop.xlane.xlu0 %1332
  %v1334 = vsel %vm475, %v1313, 0.0
  %1335 = vadd.xlane.f32.xlu0 %v1334
  %v1336 = vpop.xlane.xlu0 %1335
  %v1337 = vsel %vm475, %v1315, 0.0
  %1338 = vadd.xlane.f32.xlu0 %v1337
  %v1339 = vpop.xlane.xlu0 %1338
  %v1340 = vrcp.pop %v1318
  %v1341 = vrcp.pop %v1321
  %v1342 = vrcp.pop %v1324
  %v1343 = vrcp.pop %v1327
  %v1344 = vrcp.pop %v1330
  %v1345 = vrcp.pop %v1333
  %v1346 = vrcp.pop %v1336
  %v1347 = vrcp.pop %v1339
  %v1348 = vmul.f32 %v1301, %v1340
  %v1349 = vmul.f32 %v1303, %v1341
  %v1350 = vmul.f32 %v1305, %v1342
  %v1351 = vmul.f32 %v1307, %v1343
  %v1352 = vmul.f32 %v1309, %v1344
  %v1353 = vmul.f32 %v1311, %v1345
  %v1354 = vmul.f32 %v1313, %v1346
  %v1355 = vmul.f32 %v1315, %v1347
  %v1356 = vsub.f32 0.0, %v1252
  %v1357 = vsub.f32 0.0, %v1253
  %v1358 = vsub.f32 0.0, %v1254
  %v1359 = vsub.f32 0.0, %v1255
  %v1360 = vsub.f32 0.0, %v1256
  %v1361 = vsub.f32 0.0, %v1257
  %v1362 = vsub.f32 0.0, %v1258
  %v1363 = vsub.f32 0.0, %v1259
  %v1364 = vsel %vm57, %v1356, -1e+12
  %v1365 = vsel %vm58, %v1357, -1e+12
  %v1366 = vsel %vm59, %v1358, -1e+12
  %v1367 = vsel %vm60, %v1359, -1e+12
  %v1368 = vsel %vm61, %v1360, -1e+12
  %v1369 = vsel %vm62, %v1361, -1e+12
  %v1370 = vsel %vm63, %v1362, -1e+12
  %v1371 = vsel %vm64, %v1363, -1e+12
  %v1372 = vsel %vm475, %v1364, -inf
  %1373 = vmax.xlane.f32.xlu0 %v1372
  %v1374 = vpop.xlane.xlu0 %1373
  %v1375 = vsel %vm475, %v1365, -inf
  %1376 = vmax.xlane.f32.xlu0 %v1375
  %v1377 = vpop.xlane.xlu0 %1376
  %v1378 = vsel %vm475, %v1366, -inf
  %1379 = vmax.xlane.f32.xlu0 %v1378
  %v1380 = vpop.xlane.xlu0 %1379
  %v1381 = vsel %vm475, %v1367, -inf
  %1382 = vmax.xlane.f32.xlu0 %v1381
  %v1383 = vpop.xlane.xlu0 %1382
  %v1384 = vsel %vm475, %v1368, -inf
  %1385 = vmax.xlane.f32.xlu0 %v1384
  %v1386 = vpop.xlane.xlu0 %1385
  %v1387 = vsel %vm475, %v1369, -inf
  %1388 = vmax.xlane.f32.xlu0 %v1387
  %v1389 = vpop.xlane.xlu0 %1388
  %v1390 = vsel %vm475, %v1370, -inf
  %1391 = vmax.xlane.f32.xlu0 %v1390
  %v1392 = vpop.xlane.xlu0 %1391
  %v1393 = vsel %vm475, %v1371, -inf
  %1394 = vmax.xlane.f32.xlu0 %v1393
  %v1395 = vpop.xlane.xlu0 %1394
  %v1396 = vsub.f32 %v1364, %v1374
  %v1397 = vsub.f32 %v1365, %v1377
  %v1398 = vsub.f32 %v1366, %v1380
  %v1399 = vsub.f32 %v1367, %v1383
  %v1400 = vsub.f32 %v1368, %v1386
  %v1401 = vsub.f32 %v1369, %v1389
  %v1402 = vsub.f32 %v1370, %v1392
  %v1403 = vsub.f32 %v1371, %v1395
  %v1404 = vmul.f32 %v1396, 1.442695
  %v1405 = vpow.pop %v1404
  %v1406 = vmul.f32 %v1397, 1.442695
  %v1407 = vpow.pop %v1406
  %v1408 = vmul.f32 %v1398, 1.442695
  %v1409 = vpow.pop %v1408
  %v1410 = vmul.f32 %v1399, 1.442695
  %v1411 = vpow.pop %v1410
  %v1412 = vmul.f32 %v1400, 1.442695
  %v1413 = vpow.pop %v1412
  %v1414 = vmul.f32 %v1401, 1.442695
  %v1415 = vpow.pop %v1414
  %v1416 = vmul.f32 %v1402, 1.442695
  %v1417 = vpow.pop %v1416
  %v1418 = vmul.f32 %v1403, 1.442695
  %v1419 = vpow.pop %v1418
  %v1420 = vsel %vm475, %v1405, 0.0
  %1421 = vadd.xlane.f32.xlu0 %v1420
  %v1422 = vpop.xlane.xlu0 %1421
  %v1423 = vsel %vm475, %v1407, 0.0
  %1424 = vadd.xlane.f32.xlu0 %v1423
  %v1425 = vpop.xlane.xlu0 %1424
  %v1426 = vsel %vm475, %v1409, 0.0
  %1427 = vadd.xlane.f32.xlu0 %v1426
  %v1428 = vpop.xlane.xlu0 %1427
  %v1429 = vsel %vm475, %v1411, 0.0
  %1430 = vadd.xlane.f32.xlu0 %v1429
  %v1431 = vpop.xlane.xlu0 %1430
  %v1432 = vsel %vm475, %v1413, 0.0
  %1433 = vadd.xlane.f32.xlu0 %v1432
  %v1434 = vpop.xlane.xlu0 %1433
  %v1435 = vsel %vm475, %v1415, 0.0
  %1436 = vadd.xlane.f32.xlu0 %v1435
  %v1437 = vpop.xlane.xlu0 %1436
  %v1438 = vsel %vm475, %v1417, 0.0
  %1439 = vadd.xlane.f32.xlu0 %v1438
  %v1440 = vpop.xlane.xlu0 %1439
  %v1441 = vsel %vm475, %v1419, 0.0
  %1442 = vadd.xlane.f32.xlu0 %v1441
  %v1443 = vpop.xlane.xlu0 %1442
  %v1444 = vrcp.pop %v1422
  %v1445 = vrcp.pop %v1425
  %v1446 = vrcp.pop %v1428
  %v1447 = vrcp.pop %v1431
  %v1448 = vrcp.pop %v1434
  %v1449 = vrcp.pop %v1437
  %v1450 = vrcp.pop %v1440
  %v1451 = vrcp.pop %v1443
  %v1452 = vmul.f32 %v1405, %v1444
  %v1453 = vmul.f32 %v1407, %v1445
  %v1454 = vmul.f32 %v1409, %v1446
  %v1455 = vmul.f32 %v1411, %v1447
  %v1456 = vmul.f32 %v1413, %v1448
  %v1457 = vmul.f32 %v1415, %v1449
  %v1458 = vmul.f32 %v1417, %v1450
  %v1459 = vmul.f32 %v1419, %v1451
  %s1460 = scalar_lea.vmem %s5, 32
  %v1461 = vld [vmem:[%s1460] sm:$0xff]
  %v1462 = vld [vmem:[%s1460 + $0x8] sm:$0xff]
  %v1463 = vld [vmem:[%s1460 + $0x10] sm:$0xff]
  %v1464 = vld [vmem:[%s1460 + $0x18] sm:$0xff]
  %1465 = vmatprep.subr.mxu0 0.0
  %1466 = vmatpush1.msra.mxu0 0.0
  %1467 = vmatprep.subr.mxu0 0.0
  %1468 = vmatpush1.msra.mxu0 0.0
  %1469 = vmatprep.subr.mxu0 0.0
  %1470 = vmatpush1.msra.mxu0 0.0
  %1471 = vmatprep.subr.mxu0 0.0
  %1472 = vmatpush1.msra.mxu0 0.0
  %1473 = vmatprep.subr.mxu0 0.0
  %1474 = vmatpush1.msra.mxu0 0.0
  %1475 = vmatprep.subr.mxu0 0.0
  %1476 = vmatpush1.msra.mxu0 0.0
  %1477 = vmatprep.subr.mxu0 0.0
  %1478 = vmatpush1.msra.mxu0 0.0
  %1479 = vmatprep.subr.mxu0 0.0
  %1480 = vmatpush1.msra.mxu0 0.0
  %1481 = vmatprep.subr.mxu0 0.0
  %1482 = vmatpush1.msra.mxu0 0.0
  %1483 = vmatprep.subr.mxu0 0.0
  %1484 = vmatpush1.msra.mxu0 0.0
  %1485 = vmatprep.subr.mxu0 0.0
  %1486 = vmatpush1.msra.mxu0 0.0
  %1487 = vmatprep.subr.mxu0 0.0
  %1488 = vmatpush1.msra.mxu0 0.0
  %1489 = vmatprep.subr.mxu0 0.0
  %1490 = vmatpush1.msra.mxu0 %v1464
  %1491 = vmatprep.subr.mxu0 0.0
  %1492 = vmatpush1.msra.mxu0 %v1463
  %1493 = vmatprep.subr.mxu0 0.0
  %1494 = vmatpush1.msra.mxu0 %v1462
  %1495 = vmatprep.subr.mxu0 0.0
  %1496 = vmatpush1.msra.mxu0 %v1461
  %1497 = vmatprep.subr.mxu0 0.0
  %1498 = vmatpush2.msra.mxu0 0.0
  %1499 = vmatprep.subr.mxu0 0.0
  %1500 = vmatpush2.msra.mxu0 0.0
  %1501 = vmatprep.subr.mxu0 0.0
  %1502 = vmatpush2.msra.mxu0 0.0
  %1503 = vmatprep.subr.mxu0 0.0
  %1504 = vmatpush2.msra.mxu0 0.0
  %1505 = vmatprep.subr.mxu0 0.0
  %1506 = vmatpush2.msra.mxu0 0.0
  %1507 = vmatprep.subr.mxu0 0.0
  %1508 = vmatpush2.msra.mxu0 0.0
  %1509 = vmatprep.subr.mxu0 0.0
  %1510 = vmatpush2.msra.mxu0 0.0
  %1511 = vmatprep.subr.mxu0 0.0
  %1512 = vmatpush2.msra.mxu0 0.0
  %1513 = vmatprep.subr.mxu0 0.0
  %1514 = vmatpush2.msra.mxu0 0.0
  %1515 = vmatprep.subr.mxu0 0.0
  %1516 = vmatpush2.msra.mxu0 0.0
  %1517 = vmatprep.subr.mxu0 0.0
  %1518 = vmatpush2.msra.mxu0 0.0
  %1519 = vmatprep.subr.mxu0 0.0
  %1520 = vmatpush2.msra.mxu0 0.0
  %1521 = vmatprep.subr.mxu0 0.0
  %1522 = vmatpush2.msra.mxu0 0.0
  %1523 = vmatprep.subr.mxu0 0.0
  %1524 = vmatpush2.msra.mxu0 0.0
  %1525 = vmatprep.subr.mxu0 0.0
  %1526 = vmatpush2.msra.mxu0 0.0
  %1527 = vmatprep.subr.mxu0 0.0
  %1528 = vmatpush2.msra.mxu0 0.0
  %1529 = vmatprep.mubr.f32.mxu0 0.0
  %1530 = vmatmul.mubr.f32.gmra.mxu0 %v71
  %v1531 = vpop.f32.mrf.mxu0
  %v1532 = vadd.f32 0.0, %v1531
  %v1533 = vpop.f32.mrf.mxu0
  %1534 = vmatprep.mubr.f32.mxu0 0.0
  %1535 = vmatmul.mubr.f32.gmra.mxu0 %v74
  %v1536 = vpop.f32.mrf.mxu0
  %v1537 = vadd.f32 0.0, %v1536
  %v1538 = vpop.f32.mrf.mxu0
  %1539 = vmatprep.mubr.f32.mxu0 0.0
  %1540 = vmatmul.mubr.f32.gmra.mxu0 %v77
  %v1541 = vpop.f32.mrf.mxu0
  %v1542 = vadd.f32 0.0, %v1541
  %v1543 = vpop.f32.mrf.mxu0
  %1544 = vmatprep.mubr.f32.mxu0 0.0
  %1545 = vmatmul.mubr.f32.gmra.mxu0 %v80
  %v1546 = vpop.f32.mrf.mxu0
  %v1547 = vadd.f32 0.0, %v1546
  %v1548 = vpop.f32.mrf.mxu0
  %1549 = vmatprep.mubr.f32.mxu0 0.0
  %1550 = vmatmul.mubr.f32.gmra.mxu0 %v83
  %v1551 = vpop.f32.mrf.mxu0
  %v1552 = vadd.f32 0.0, %v1551
  %v1553 = vpop.f32.mrf.mxu0
  %1554 = vmatprep.mubr.f32.mxu0 0.0
  %1555 = vmatmul.mubr.f32.gmra.mxu0 %v86
  %v1556 = vpop.f32.mrf.mxu0
  %v1557 = vadd.f32 0.0, %v1556
  %v1558 = vpop.f32.mrf.mxu0
  %1559 = vmatprep.mubr.f32.mxu0 0.0
  %1560 = vmatmul.mubr.f32.gmra.mxu0 %v89
  %v1561 = vpop.f32.mrf.mxu0
  %v1562 = vadd.f32 0.0, %v1561
  %v1563 = vpop.f32.mrf.mxu0
  %1564 = vmatprep.mubr.f32.mxu0 0.0
  %1565 = vmatmul.mubr.f32.gmra.mxu0 %v92
  %v1566 = vpop.f32.mrf.mxu0
  %v1567 = vadd.f32 0.0, %v1566
  %v1568 = vpop.f32.mrf.mxu0
  %1569 = vdwg.mxu0
  %s1570 = scalar_lea.vmem %s6, 32
  %v1571 = vld [vmem:[%s1570] sm:$0xff]
  %v1572 = vld [vmem:[%s1570 + $0x8] sm:$0xff]
  %v1573 = vld [vmem:[%s1570 + $0x10] sm:$0xff]
  %v1574 = vld [vmem:[%s1570 + $0x18] sm:$0xff]
  %1575 = vmatprep.subr.mxu0 0.0
  %1576 = vmatpush1.msra.mxu0 0.0
  %1577 = vmatprep.subr.mxu0 0.0
  %1578 = vmatpush1.msra.mxu0 0.0
  %1579 = vmatprep.subr.mxu0 0.0
  %1580 = vmatpush1.msra.mxu0 0.0
  %1581 = vmatprep.subr.mxu0 0.0
  %1582 = vmatpush1.msra.mxu0 0.0
  %1583 = vmatprep.subr.mxu0 0.0
  %1584 = vmatpush1.msra.mxu0 0.0
  %1585 = vmatprep.subr.mxu0 0.0
  %1586 = vmatpush1.msra.mxu0 0.0
  %1587 = vmatprep.subr.mxu0 0.0
  %1588 = vmatpush1.msra.mxu0 0.0
  %1589 = vmatprep.subr.mxu0 0.0
  %1590 = vmatpush1.msra.mxu0 0.0
  %1591 = vmatprep.subr.mxu0 0.0
  %1592 = vmatpush1.msra.mxu0 0.0
  %1593 = vmatprep.subr.mxu0 0.0
  %1594 = vmatpush1.msra.mxu0 0.0
  %1595 = vmatprep.subr.mxu0 0.0
  %1596 = vmatpush1.msra.mxu0 0.0
  %1597 = vmatprep.subr.mxu0 0.0
  %1598 = vmatpush1.msra.mxu0 0.0
  %1599 = vmatprep.subr.mxu0 0.0
  %1600 = vmatpush1.msra.mxu0 %v1574
  %1601 = vmatprep.subr.mxu0 0.0
  %1602 = vmatpush1.msra.mxu0 %v1573
  %1603 = vmatprep.subr.mxu0 0.0
  %1604 = vmatpush1.msra.mxu0 %v1572
  %1605 = vmatprep.subr.mxu0 0.0
  %1606 = vmatpush1.msra.mxu0 %v1571
  %1607 = vmatprep.subr.mxu0 0.0
  %1608 = vmatpush2.msra.mxu0 0.0
  %1609 = vmatprep.subr.mxu0 0.0
  %1610 = vmatpush2.msra.mxu0 0.0
  %1611 = vmatprep.subr.mxu0 0.0
  %1612 = vmatpush2.msra.mxu0 0.0
  %1613 = vmatprep.subr.mxu0 0.0
  %1614 = vmatpush2.msra.mxu0 0.0
  %1615 = vmatprep.subr.mxu0 0.0
  %1616 = vmatpush2.msra.mxu0 0.0
  %1617 = vmatprep.subr.mxu0 0.0
  %1618 = vmatpush2.msra.mxu0 0.0
  %1619 = vmatprep.subr.mxu0 0.0
  %1620 = vmatpush2.msra.mxu0 0.0
  %1621 = vmatprep.subr.mxu0 0.0
  %1622 = vmatpush2.msra.mxu0 0.0
  %1623 = vmatprep.subr.mxu0 0.0
  %1624 = vmatpush2.msra.mxu0 0.0
  %1625 = vmatprep.subr.mxu0 0.0
  %1626 = vmatpush2.msra.mxu0 0.0
  %1627 = vmatprep.subr.mxu0 0.0
  %1628 = vmatpush2.msra.mxu0 0.0
  %1629 = vmatprep.subr.mxu0 0.0
  %1630 = vmatpush2.msra.mxu0 0.0
  %1631 = vmatprep.subr.mxu0 0.0
  %1632 = vmatpush2.msra.mxu0 0.0
  %1633 = vmatprep.subr.mxu0 0.0
  %1634 = vmatpush2.msra.mxu0 0.0
  %1635 = vmatprep.subr.mxu0 0.0
  %1636 = vmatpush2.msra.mxu0 0.0
  %1637 = vmatprep.subr.mxu0 0.0
  %1638 = vmatpush2.msra.mxu0 0.0
  %1639 = vmatprep.mubr.f32.mxu0 0.0
  %1640 = vmatmul.mubr.f32.gmra.mxu0 %v71
  %v1641 = vpop.f32.mrf.mxu0
  %v1642 = vadd.f32 0.0, %v1641
  %v1643 = vpop.f32.mrf.mxu0
  %1644 = vmatprep.mubr.f32.mxu0 0.0
  %1645 = vmatmul.mubr.f32.gmra.mxu0 %v74
  %v1646 = vpop.f32.mrf.mxu0
  %v1647 = vadd.f32 0.0, %v1646
  %v1648 = vpop.f32.mrf.mxu0
  %1649 = vmatprep.mubr.f32.mxu0 0.0
  %1650 = vmatmul.mubr.f32.gmra.mxu0 %v77
  %v1651 = vpop.f32.mrf.mxu0
  %v1652 = vadd.f32 0.0, %v1651
  %v1653 = vpop.f32.mrf.mxu0
  %1654 = vmatprep.mubr.f32.mxu0 0.0
  %1655 = vmatmul.mubr.f32.gmra.mxu0 %v80
  %v1656 = vpop.f32.mrf.mxu0
  %v1657 = vadd.f32 0.0, %v1656
  %v1658 = vpop.f32.mrf.mxu0
  %1659 = vmatprep.mubr.f32.mxu0 0.0
  %1660 = vmatmul.mubr.f32.gmra.mxu0 %v83
  %v1661 = vpop.f32.mrf.mxu0
  %v1662 = vadd.f32 0.0, %v1661
  %v1663 = vpop.f32.mrf.mxu0
  %1664 = vmatprep.mubr.f32.mxu0 0.0
  %1665 = vmatmul.mubr.f32.gmra.mxu0 %v86
  %v1666 = vpop.f32.mrf.mxu0
  %v1667 = vadd.f32 0.0, %v1666
  %v1668 = vpop.f32.mrf.mxu0
  %1669 = vmatprep.mubr.f32.mxu0 0.0
  %1670 = vmatmul.mubr.f32.gmra.mxu0 %v89
  %v1671 = vpop.f32.mrf.mxu0
  %v1672 = vadd.f32 0.0, %v1671
  %v1673 = vpop.f32.mrf.mxu0
  %1674 = vmatprep.mubr.f32.mxu0 0.0
  %1675 = vmatmul.mubr.f32.gmra.mxu0 %v92
  %v1676 = vpop.f32.mrf.mxu0
  %v1677 = vadd.f32 0.0, %v1676
  %v1678 = vpop.f32.mrf.mxu0
  %1679 = vdwg.mxu0
  %v1681 = vsel %vm475, %v1348, 0
  %v1684 = vsel %vm475, %v1349, 0
  %v1687 = vsel %vm475, %v1350, 0
  %v1690 = vsel %vm475, %v1351, 0
  %v1693 = vsel %vm475, %v1352, 0
  %v1696 = vsel %vm475, %v1353, 0
  %v1699 = vsel %vm475, %v1354, 0
  %v1702 = vsel %vm475, %v1355, 0
  %1704 = vmatprep.subr.mxu0 0.0
  %1705 = vmatpush1.msra.mxu0 0.0
  %1706 = vmatprep.subr.mxu0 0.0
  %1707 = vmatpush1.msra.mxu0 0.0
  %1708 = vmatprep.subr.mxu0 0.0
  %1709 = vmatpush1.msra.mxu0 0.0
  %1710 = vmatprep.subr.mxu0 0.0
  %1711 = vmatpush1.msra.mxu0 0.0
  %1712 = vmatprep.subr.mxu0 0.0
  %1713 = vmatpush1.msra.mxu0 0.0
  %1714 = vmatprep.subr.mxu0 0.0
  %1715 = vmatpush1.msra.mxu0 0.0
  %1716 = vmatprep.subr.mxu0 0.0
  %1717 = vmatpush1.msra.mxu0 0.0
  %1718 = vmatprep.subr.mxu0 0.0
  %1719 = vmatpush1.msra.mxu0 0.0
  %1720 = vmatprep.subr.mxu0 0.0
  %1721 = vmatpush1.msra.mxu0 %v1567
  %1722 = vmatprep.subr.mxu0 0.0
  %1723 = vmatpush1.msra.mxu0 %v1562
  %1724 = vmatprep.subr.mxu0 0.0
  %1725 = vmatpush1.msra.mxu0 %v1557
  %1726 = vmatprep.subr.mxu0 0.0
  %1727 = vmatpush1.msra.mxu0 %v1552
  %1728 = vmatprep.subr.mxu0 0.0
  %1729 = vmatpush1.msra.mxu0 %v1547
  %1730 = vmatprep.subr.mxu0 0.0
  %1731 = vmatpush1.msra.mxu0 %v1542
  %1732 = vmatprep.subr.mxu0 0.0
  %1733 = vmatpush1.msra.mxu0 %v1537
  %1734 = vmatprep.subr.mxu0 0.0
  %1735 = vmatpush1.msra.mxu0 %v1532
  %1736 = vmatprep.subr.mxu0 0.0
  %1737 = vmatpush2.msra.mxu0 0.0
  %1738 = vmatprep.subr.mxu0 0.0
  %1739 = vmatpush2.msra.mxu0 0.0
  %1740 = vmatprep.subr.mxu0 0.0
  %1741 = vmatpush2.msra.mxu0 0.0
  %1742 = vmatprep.subr.mxu0 0.0
  %1743 = vmatpush2.msra.mxu0 0.0
  %1744 = vmatprep.subr.mxu0 0.0
  %1745 = vmatpush2.msra.mxu0 0.0
  %1746 = vmatprep.subr.mxu0 0.0
  %1747 = vmatpush2.msra.mxu0 0.0
  %1748 = vmatprep.subr.mxu0 0.0
  %1749 = vmatpush2.msra.mxu0 0.0
  %1750 = vmatprep.subr.mxu0 0.0
  %1751 = vmatpush2.msra.mxu0 0.0
  %1752 = vmatprep.subr.mxu0 0.0
  %1753 = vmatpush2.msra.mxu0 0.0
  %1754 = vmatprep.subr.mxu0 0.0
  %1755 = vmatpush2.msra.mxu0 0.0
  %1756 = vmatprep.subr.mxu0 0.0
  %1757 = vmatpush2.msra.mxu0 0.0
  %1758 = vmatprep.subr.mxu0 0.0
  %1759 = vmatpush2.msra.mxu0 0.0
  %1760 = vmatprep.subr.mxu0 0.0
  %1761 = vmatpush2.msra.mxu0 0.0
  %1762 = vmatprep.subr.mxu0 0.0
  %1763 = vmatpush2.msra.mxu0 0.0
  %1764 = vmatprep.subr.mxu0 0.0
  %1765 = vmatpush2.msra.mxu0 0.0
  %1766 = vmatprep.subr.mxu0 0.0
  %1767 = vmatpush2.msra.mxu0 0.0
  %1768 = vmatprep.mubr.f32.mxu0 0.0
  %1769 = vmatmul.mubr.f32.gmra.mxu0 %v1681
  %v1770 = vpop.f32.mrf.mxu0
  %v1771 = vadd.f32 0.0, %v1770
  %v1772 = vpop.f32.mrf.mxu0
  %1773 = vmatprep.mubr.f32.mxu0 0.0
  %1774 = vmatmul.mubr.f32.gmra.mxu0 %v1684
  %v1775 = vpop.f32.mrf.mxu0
  %v1776 = vadd.f32 0.0, %v1775
  %v1777 = vpop.f32.mrf.mxu0
  %1778 = vmatprep.mubr.f32.mxu0 0.0
  %1779 = vmatmul.mubr.f32.gmra.mxu0 %v1687
  %v1780 = vpop.f32.mrf.mxu0
  %v1781 = vadd.f32 0.0, %v1780
  %v1782 = vpop.f32.mrf.mxu0
  %1783 = vmatprep.mubr.f32.mxu0 0.0
  %1784 = vmatmul.mubr.f32.gmra.mxu0 %v1690
  %v1785 = vpop.f32.mrf.mxu0
  %v1786 = vadd.f32 0.0, %v1785
  %v1787 = vpop.f32.mrf.mxu0
  %1788 = vmatprep.mubr.f32.mxu0 0.0
  %1789 = vmatmul.mubr.f32.gmra.mxu0 %v1693
  %v1790 = vpop.f32.mrf.mxu0
  %v1791 = vadd.f32 0.0, %v1790
  %v1792 = vpop.f32.mrf.mxu0
  %1793 = vmatprep.mubr.f32.mxu0 0.0
  %1794 = vmatmul.mubr.f32.gmra.mxu0 %v1696
  %v1795 = vpop.f32.mrf.mxu0
  %v1796 = vadd.f32 0.0, %v1795
  %v1797 = vpop.f32.mrf.mxu0
  %1798 = vmatprep.mubr.f32.mxu0 0.0
  %1799 = vmatmul.mubr.f32.gmra.mxu0 %v1699
  %v1800 = vpop.f32.mrf.mxu0
  %v1801 = vadd.f32 0.0, %v1800
  %v1802 = vpop.f32.mrf.mxu0
  %1803 = vmatprep.mubr.f32.mxu0 0.0
  %1804 = vmatmul.mubr.f32.gmra.mxu0 %v1702
  %v1805 = vpop.f32.mrf.mxu0
  %v1806 = vadd.f32 0.0, %v1805
  %v1807 = vpop.f32.mrf.mxu0
  %1808 = vdwg.mxu0
  %v1810 = vsel %vm475, %v1452, 0
  %v1813 = vsel %vm475, %v1453, 0
  %v1816 = vsel %vm475, %v1454, 0
  %v1819 = vsel %vm475, %v1455, 0
  %v1822 = vsel %vm475, %v1456, 0
  %v1825 = vsel %vm475, %v1457, 0
  %v1828 = vsel %vm475, %v1458, 0
  %v1831 = vsel %vm475, %v1459, 0
  %1833 = vmatprep.subr.mxu0 0.0
  %1834 = vmatpush1.msra.mxu0 0.0
  %1835 = vmatprep.subr.mxu0 0.0
  %1836 = vmatpush1.msra.mxu0 0.0
  %1837 = vmatprep.subr.mxu0 0.0
  %1838 = vmatpush1.msra.mxu0 0.0
  %1839 = vmatprep.subr.mxu0 0.0
  %1840 = vmatpush1.msra.mxu0 0.0
  %1841 = vmatprep.subr.mxu0 0.0
  %1842 = vmatpush1.msra.mxu0 0.0
  %1843 = vmatprep.subr.mxu0 0.0
  %1844 = vmatpush1.msra.mxu0 0.0
  %1845 = vmatprep.subr.mxu0 0.0
  %1846 = vmatpush1.msra.mxu0 0.0
  %1847 = vmatprep.subr.mxu0 0.0
  %1848 = vmatpush1.msra.mxu0 0.0
  %1849 = vmatprep.subr.mxu0 0.0
  %1850 = vmatpush1.msra.mxu0 %v1677
  %1851 = vmatprep.subr.mxu0 0.0
  %1852 = vmatpush1.msra.mxu0 %v1672
  %1853 = vmatprep.subr.mxu0 0.0
  %1854 = vmatpush1.msra.mxu0 %v1667
  %1855 = vmatprep.subr.mxu0 0.0
  %1856 = vmatpush1.msra.mxu0 %v1662
  %1857 = vmatprep.subr.mxu0 0.0
  %1858 = vmatpush1.msra.mxu0 %v1657
  %1859 = vmatprep.subr.mxu0 0.0
  %1860 = vmatpush1.msra.mxu0 %v1652
  %1861 = vmatprep.subr.mxu0 0.0
  %1862 = vmatpush1.msra.mxu0 %v1647
  %1863 = vmatprep.subr.mxu0 0.0
  %1864 = vmatpush1.msra.mxu0 %v1642
  %1865 = vmatprep.subr.mxu0 0.0
  %1866 = vmatpush2.msra.mxu0 0.0
  %1867 = vmatprep.subr.mxu0 0.0
  %1868 = vmatpush2.msra.mxu0 0.0
  %1869 = vmatprep.subr.mxu0 0.0
  %1870 = vmatpush2.msra.mxu0 0.0
  %1871 = vmatprep.subr.mxu0 0.0
  %1872 = vmatpush2.msra.mxu0 0.0
  %1873 = vmatprep.subr.mxu0 0.0
  %1874 = vmatpush2.msra.mxu0 0.0
  %1875 = vmatprep.subr.mxu0 0.0
  %1876 = vmatpush2.msra.mxu0 0.0
  %1877 = vmatprep.subr.mxu0 0.0
  %1878 = vmatpush2.msra.mxu0 0.0
  %1879 = vmatprep.subr.mxu0 0.0
  %1880 = vmatpush2.msra.mxu0 0.0
  %1881 = vmatprep.subr.mxu0 0.0
  %1882 = vmatpush2.msra.mxu0 0.0
  %1883 = vmatprep.subr.mxu0 0.0
  %1884 = vmatpush2.msra.mxu0 0.0
  %1885 = vmatprep.subr.mxu0 0.0
  %1886 = vmatpush2.msra.mxu0 0.0
  %1887 = vmatprep.subr.mxu0 0.0
  %1888 = vmatpush2.msra.mxu0 0.0
  %1889 = vmatprep.subr.mxu0 0.0
  %1890 = vmatpush2.msra.mxu0 0.0
  %1891 = vmatprep.subr.mxu0 0.0
  %1892 = vmatpush2.msra.mxu0 0.0
  %1893 = vmatprep.subr.mxu0 0.0
  %1894 = vmatpush2.msra.mxu0 0.0
  %1895 = vmatprep.subr.mxu0 0.0
  %1896 = vmatpush2.msra.mxu0 0.0
  %1897 = vmatprep.mubr.f32.mxu0 0.0
  %1898 = vmatmul.mubr.f32.gmra.mxu0 %v1810
  %v1899 = vpop.f32.mrf.mxu0
  %v1900 = vadd.f32 0.0, %v1899
  %v1901 = vpop.f32.mrf.mxu0
  %1902 = vmatprep.mubr.f32.mxu0 0.0
  %1903 = vmatmul.mubr.f32.gmra.mxu0 %v1813
  %v1904 = vpop.f32.mrf.mxu0
  %v1905 = vadd.f32 0.0, %v1904
  %v1906 = vpop.f32.mrf.mxu0
  %1907 = vmatprep.mubr.f32.mxu0 0.0
  %1908 = vmatmul.mubr.f32.gmra.mxu0 %v1816
  %v1909 = vpop.f32.mrf.mxu0
  %v1910 = vadd.f32 0.0, %v1909
  %v1911 = vpop.f32.mrf.mxu0
  %1912 = vmatprep.mubr.f32.mxu0 0.0
  %1913 = vmatmul.mubr.f32.gmra.mxu0 %v1819
  %v1914 = vpop.f32.mrf.mxu0
  %v1915 = vadd.f32 0.0, %v1914
  %v1916 = vpop.f32.mrf.mxu0
  %1917 = vmatprep.mubr.f32.mxu0 0.0
  %1918 = vmatmul.mubr.f32.gmra.mxu0 %v1822
  %v1919 = vpop.f32.mrf.mxu0
  %v1920 = vadd.f32 0.0, %v1919
  %v1921 = vpop.f32.mrf.mxu0
  %1922 = vmatprep.mubr.f32.mxu0 0.0
  %1923 = vmatmul.mubr.f32.gmra.mxu0 %v1825
  %v1924 = vpop.f32.mrf.mxu0
  %v1925 = vadd.f32 0.0, %v1924
  %v1926 = vpop.f32.mrf.mxu0
  %1927 = vmatprep.mubr.f32.mxu0 0.0
  %1928 = vmatmul.mubr.f32.gmra.mxu0 %v1828
  %v1929 = vpop.f32.mrf.mxu0
  %v1930 = vadd.f32 0.0, %v1929
  %v1931 = vpop.f32.mrf.mxu0
  %1932 = vmatprep.mubr.f32.mxu0 0.0
  %1933 = vmatmul.mubr.f32.gmra.mxu0 %v1831
  %v1934 = vpop.f32.mrf.mxu0
  %v1935 = vadd.f32 0.0, %v1934
  %v1936 = vpop.f32.mrf.mxu0
  %1937 = vdwg.mxu0
  %v1938 = vsub.f32 %v1771, %v1900
  %v1939 = vsub.f32 %v1776, %v1905
  %v1940 = vsub.f32 %v1781, %v1910
  %v1941 = vsub.f32 %v1786, %v1915
  %v1942 = vsub.f32 %v1791, %v1920
  %v1943 = vsub.f32 %v1796, %v1925
  %v1944 = vsub.f32 %v1801, %v1930
  %v1945 = vsub.f32 %v1806, %v1935
  %vm1946 = vcmp.gt.f32.partialorder %v1938, 0.0
  %vm1947 = vcmp.gt.f32.partialorder %v1939, 0.0
  %vm1948 = vcmp.gt.f32.partialorder %v1940, 0.0
  %vm1949 = vcmp.gt.f32.partialorder %v1941, 0.0
  %vm1950 = vcmp.gt.f32.partialorder %v1942, 0.0
  %vm1951 = vcmp.gt.f32.partialorder %v1943, 0.0
  %vm1952 = vcmp.gt.f32.partialorder %v1944, 0.0
  %vm1953 = vcmp.gt.f32.partialorder %v1945, 0.0
  %v1954 = vmul.f32 %v1938, 1.442695
  %v1955 = vpow.pop %v1954
  %v1956 = vmul.f32 %v1939, 1.442695
  %v1957 = vpow.pop %v1956
  %v1958 = vmul.f32 %v1940, 1.442695
  %v1959 = vpow.pop %v1958
  %v1960 = vmul.f32 %v1941, 1.442695
  %v1961 = vpow.pop %v1960
  %v1962 = vmul.f32 %v1942, 1.442695
  %v1963 = vpow.pop %v1962
  %v1964 = vmul.f32 %v1943, 1.442695
  %v1965 = vpow.pop %v1964
  %v1966 = vmul.f32 %v1944, 1.442695
  %v1967 = vpow.pop %v1966
  %v1968 = vmul.f32 %v1945, 1.442695
  %v1969 = vpow.pop %v1968
  %v1970 = vsub.f32 %v1955, 1.0
  %v1971 = vsub.f32 %v1957, 1.0
  %v1972 = vsub.f32 %v1959, 1.0
  %v1973 = vsub.f32 %v1961, 1.0
  %v1974 = vsub.f32 %v1963, 1.0
  %v1975 = vsub.f32 %v1965, 1.0
  %v1976 = vsub.f32 %v1967, 1.0
  %v1977 = vsub.f32 %v1969, 1.0
  %v1978 = vsel %vm1946, %v1938, %v1970
  %v1979 = vsel %vm1947, %v1939, %v1971
  %v1980 = vsel %vm1948, %v1940, %v1972
  %v1981 = vsel %vm1949, %v1941, %v1973
  %v1982 = vsel %vm1950, %v1942, %v1974
  %v1983 = vsel %vm1951, %v1943, %v1975
  %v1984 = vsel %vm1952, %v1944, %v1976
  %v1985 = vsel %vm1953, %v1945, %v1977
  %1986 = vset.pattern.permute.xlu0 2
  %1987 = vperm.xlu0 %1986, %v282
  %v1988 = vpop.permute.xlu0 %1987
  %1990 = vset.pattern.permute.xlu0 2
  %1991 = vperm.xlu0 %1990, %v287
  %v1992 = vpop.permute.xlu0 %1991
  %1994 = vset.pattern.permute.xlu0 2
  %1995 = vperm.xlu0 %1994, %v292
  %v1996 = vpop.permute.xlu0 %1995
  %1998 = vset.pattern.permute.xlu0 2
  %1999 = vperm.xlu0 %1998, %v297
  %v2000 = vpop.permute.xlu0 %1999
  %2002 = vset.pattern.permute.xlu0 2
  %2003 = vperm.xlu0 %2002, %v302
  %v2004 = vpop.permute.xlu0 %2003
  %2006 = vset.pattern.permute.xlu0 2
  %2007 = vperm.xlu0 %2006, %v307
  %v2008 = vpop.permute.xlu0 %2007
  %2010 = vset.pattern.permute.xlu0 2
  %2011 = vperm.xlu0 %2010, %v312
  %v2012 = vpop.permute.xlu0 %2011
  %2014 = vset.pattern.permute.xlu0 2
  %2015 = vperm.xlu0 %2014, %v317
  %v2016 = vpop.permute.xlu0 %2015
  %v2018 = vlaneseq
  %v2019 = vshrl.u32 %v2018, 7
  %v2020 = vsub.s32 2, %v2019
  %v2021 = vrot.slane %v388, %v2020
  %v2022 = vadd.f32 %v1988, %v2021
  %v2023 = vadd.f32 %v1992, %v2021
  %v2024 = vadd.f32 %v1996, %v2021
  %v2025 = vadd.f32 %v2000, %v2021
  %v2026 = vadd.f32 %v2004, %v2021
  %v2027 = vadd.f32 %v2008, %v2021
  %v2028 = vadd.f32 %v2012, %v2021
  %v2029 = vadd.f32 %v2016, %v2021
  %vm2030 = vcmp.gt.f32.partialorder %v2022, 0.0
  %vm2031 = vcmp.gt.f32.partialorder %v2023, 0.0
  %vm2032 = vcmp.gt.f32.partialorder %v2024, 0.0
  %vm2033 = vcmp.gt.f32.partialorder %v2025, 0.0
  %vm2034 = vcmp.gt.f32.partialorder %v2026, 0.0
  %vm2035 = vcmp.gt.f32.partialorder %v2027, 0.0
  %vm2036 = vcmp.gt.f32.partialorder %v2028, 0.0
  %vm2037 = vcmp.gt.f32.partialorder %v2029, 0.0
  %v2038 = vmul.f32 %v2022, 0.3
  %v2039 = vmul.f32 %v2023, 0.3
  %v2040 = vmul.f32 %v2024, 0.3
  %v2041 = vmul.f32 %v2025, 0.3
  %v2042 = vmul.f32 %v2026, 0.3
  %v2043 = vmul.f32 %v2027, 0.3
  %v2044 = vmul.f32 %v2028, 0.3
  %v2045 = vmul.f32 %v2029, 0.3
  %v2046 = vsel %vm2030, %v2022, %v2038
  %v2047 = vsel %vm2031, %v2023, %v2039
  %v2048 = vsel %vm2032, %v2024, %v2040
  %v2049 = vsel %vm2033, %v2025, %v2041
  %v2050 = vsel %vm2034, %v2026, %v2042
  %v2051 = vsel %vm2035, %v2027, %v2043
  %v2052 = vsel %vm2036, %v2028, %v2044
  %v2053 = vsel %vm2037, %v2029, %v2045
  %v2054 = vsel %vm57, %v2046, -1e+12
  %v2055 = vsel %vm58, %v2047, -1e+12
  %v2056 = vsel %vm59, %v2048, -1e+12
  %v2057 = vsel %vm60, %v2049, -1e+12
  %v2058 = vsel %vm61, %v2050, -1e+12
  %v2059 = vsel %vm62, %v2051, -1e+12
  %v2060 = vsel %vm63, %v2052, -1e+12
  %v2061 = vsel %vm64, %v2053, -1e+12
  %v2062 = vsel %vm475, %v2054, -inf
  %2063 = vmax.xlane.f32.xlu0 %v2062
  %v2064 = vpop.xlane.xlu0 %2063
  %v2065 = vsel %vm475, %v2055, -inf
  %2066 = vmax.xlane.f32.xlu0 %v2065
  %v2067 = vpop.xlane.xlu0 %2066
  %v2068 = vsel %vm475, %v2056, -inf
  %2069 = vmax.xlane.f32.xlu0 %v2068
  %v2070 = vpop.xlane.xlu0 %2069
  %v2071 = vsel %vm475, %v2057, -inf
  %2072 = vmax.xlane.f32.xlu0 %v2071
  %v2073 = vpop.xlane.xlu0 %2072
  %v2074 = vsel %vm475, %v2058, -inf
  %2075 = vmax.xlane.f32.xlu0 %v2074
  %v2076 = vpop.xlane.xlu0 %2075
  %v2077 = vsel %vm475, %v2059, -inf
  %2078 = vmax.xlane.f32.xlu0 %v2077
  %v2079 = vpop.xlane.xlu0 %2078
  %v2080 = vsel %vm475, %v2060, -inf
  %2081 = vmax.xlane.f32.xlu0 %v2080
  %v2082 = vpop.xlane.xlu0 %2081
  %v2083 = vsel %vm475, %v2061, -inf
  %2084 = vmax.xlane.f32.xlu0 %v2083
  %v2085 = vpop.xlane.xlu0 %2084
  %v2086 = vsub.f32 %v2054, %v2064
  %v2087 = vsub.f32 %v2055, %v2067
  %v2088 = vsub.f32 %v2056, %v2070
  %v2089 = vsub.f32 %v2057, %v2073
  %v2090 = vsub.f32 %v2058, %v2076
  %v2091 = vsub.f32 %v2059, %v2079
  %v2092 = vsub.f32 %v2060, %v2082
  %v2093 = vsub.f32 %v2061, %v2085
  %v2094 = vmul.f32 %v2086, 1.442695
  %v2095 = vpow.pop %v2094
  %v2096 = vmul.f32 %v2087, 1.442695
  %v2097 = vpow.pop %v2096
  %v2098 = vmul.f32 %v2088, 1.442695
  %v2099 = vpow.pop %v2098
  %v2100 = vmul.f32 %v2089, 1.442695
  %v2101 = vpow.pop %v2100
  %v2102 = vmul.f32 %v2090, 1.442695
  %v2103 = vpow.pop %v2102
  %v2104 = vmul.f32 %v2091, 1.442695
  %v2105 = vpow.pop %v2104
  %v2106 = vmul.f32 %v2092, 1.442695
  %v2107 = vpow.pop %v2106
  %v2108 = vmul.f32 %v2093, 1.442695
  %v2109 = vpow.pop %v2108
  %v2110 = vsel %vm475, %v2095, 0.0
  %2111 = vadd.xlane.f32.xlu0 %v2110
  %v2112 = vpop.xlane.xlu0 %2111
  %v2113 = vsel %vm475, %v2097, 0.0
  %2114 = vadd.xlane.f32.xlu0 %v2113
  %v2115 = vpop.xlane.xlu0 %2114
  %v2116 = vsel %vm475, %v2099, 0.0
  %2117 = vadd.xlane.f32.xlu0 %v2116
  %v2118 = vpop.xlane.xlu0 %2117
  %v2119 = vsel %vm475, %v2101, 0.0
  %2120 = vadd.xlane.f32.xlu0 %v2119
  %v2121 = vpop.xlane.xlu0 %2120
  %v2122 = vsel %vm475, %v2103, 0.0
  %2123 = vadd.xlane.f32.xlu0 %v2122
  %v2124 = vpop.xlane.xlu0 %2123
  %v2125 = vsel %vm475, %v2105, 0.0
  %2126 = vadd.xlane.f32.xlu0 %v2125
  %v2127 = vpop.xlane.xlu0 %2126
  %v2128 = vsel %vm475, %v2107, 0.0
  %2129 = vadd.xlane.f32.xlu0 %v2128
  %v2130 = vpop.xlane.xlu0 %2129
  %v2131 = vsel %vm475, %v2109, 0.0
  %2132 = vadd.xlane.f32.xlu0 %v2131
  %v2133 = vpop.xlane.xlu0 %2132
  %v2134 = vrcp.pop %v2112
  %v2135 = vrcp.pop %v2115
  %v2136 = vrcp.pop %v2118
  %v2137 = vrcp.pop %v2121
  %v2138 = vrcp.pop %v2124
  %v2139 = vrcp.pop %v2127
  %v2140 = vrcp.pop %v2130
  %v2141 = vrcp.pop %v2133
  %v2142 = vmul.f32 %v2095, %v2134
  %v2143 = vmul.f32 %v2097, %v2135
  %v2144 = vmul.f32 %v2099, %v2136
  %v2145 = vmul.f32 %v2101, %v2137
  %v2146 = vmul.f32 %v2103, %v2138
  %v2147 = vmul.f32 %v2105, %v2139
  %v2148 = vmul.f32 %v2107, %v2140
  %v2149 = vmul.f32 %v2109, %v2141
  %v2150 = vsub.f32 0.0, %v2046
  %v2151 = vsub.f32 0.0, %v2047
  %v2152 = vsub.f32 0.0, %v2048
  %v2153 = vsub.f32 0.0, %v2049
  %v2154 = vsub.f32 0.0, %v2050
  %v2155 = vsub.f32 0.0, %v2051
  %v2156 = vsub.f32 0.0, %v2052
  %v2157 = vsub.f32 0.0, %v2053
  %v2158 = vsel %vm57, %v2150, -1e+12
  %v2159 = vsel %vm58, %v2151, -1e+12
  %v2160 = vsel %vm59, %v2152, -1e+12
  %v2161 = vsel %vm60, %v2153, -1e+12
  %v2162 = vsel %vm61, %v2154, -1e+12
  %v2163 = vsel %vm62, %v2155, -1e+12
  %v2164 = vsel %vm63, %v2156, -1e+12
  %v2165 = vsel %vm64, %v2157, -1e+12
  %v2166 = vsel %vm475, %v2158, -inf
  %2167 = vmax.xlane.f32.xlu0 %v2166
  %v2168 = vpop.xlane.xlu0 %2167
  %v2169 = vsel %vm475, %v2159, -inf
  %2170 = vmax.xlane.f32.xlu0 %v2169
  %v2171 = vpop.xlane.xlu0 %2170
  %v2172 = vsel %vm475, %v2160, -inf
  %2173 = vmax.xlane.f32.xlu0 %v2172
  %v2174 = vpop.xlane.xlu0 %2173
  %v2175 = vsel %vm475, %v2161, -inf
  %2176 = vmax.xlane.f32.xlu0 %v2175
  %v2177 = vpop.xlane.xlu0 %2176
  %v2178 = vsel %vm475, %v2162, -inf
  %2179 = vmax.xlane.f32.xlu0 %v2178
  %v2180 = vpop.xlane.xlu0 %2179
  %v2181 = vsel %vm475, %v2163, -inf
  %2182 = vmax.xlane.f32.xlu0 %v2181
  %v2183 = vpop.xlane.xlu0 %2182
  %v2184 = vsel %vm475, %v2164, -inf
  %2185 = vmax.xlane.f32.xlu0 %v2184
  %v2186 = vpop.xlane.xlu0 %2185
  %v2187 = vsel %vm475, %v2165, -inf
  %2188 = vmax.xlane.f32.xlu0 %v2187
  %v2189 = vpop.xlane.xlu0 %2188
  %v2190 = vsub.f32 %v2158, %v2168
  %v2191 = vsub.f32 %v2159, %v2171
  %v2192 = vsub.f32 %v2160, %v2174
  %v2193 = vsub.f32 %v2161, %v2177
  %v2194 = vsub.f32 %v2162, %v2180
  %v2195 = vsub.f32 %v2163, %v2183
  %v2196 = vsub.f32 %v2164, %v2186
  %v2197 = vsub.f32 %v2165, %v2189
  %v2198 = vmul.f32 %v2190, 1.442695
  %v2199 = vpow.pop %v2198
  %v2200 = vmul.f32 %v2191, 1.442695
  %v2201 = vpow.pop %v2200
  %v2202 = vmul.f32 %v2192, 1.442695
  %v2203 = vpow.pop %v2202
  %v2204 = vmul.f32 %v2193, 1.442695
  %v2205 = vpow.pop %v2204
  %v2206 = vmul.f32 %v2194, 1.442695
  %v2207 = vpow.pop %v2206
  %v2208 = vmul.f32 %v2195, 1.442695
  %v2209 = vpow.pop %v2208
  %v2210 = vmul.f32 %v2196, 1.442695
  %v2211 = vpow.pop %v2210
  %v2212 = vmul.f32 %v2197, 1.442695
  %v2213 = vpow.pop %v2212
  %v2214 = vsel %vm475, %v2199, 0.0
  %2215 = vadd.xlane.f32.xlu0 %v2214
  %v2216 = vpop.xlane.xlu0 %2215
  %v2217 = vsel %vm475, %v2201, 0.0
  %2218 = vadd.xlane.f32.xlu0 %v2217
  %v2219 = vpop.xlane.xlu0 %2218
  %v2220 = vsel %vm475, %v2203, 0.0
  %2221 = vadd.xlane.f32.xlu0 %v2220
  %v2222 = vpop.xlane.xlu0 %2221
  %v2223 = vsel %vm475, %v2205, 0.0
  %2224 = vadd.xlane.f32.xlu0 %v2223
  %v2225 = vpop.xlane.xlu0 %2224
  %v2226 = vsel %vm475, %v2207, 0.0
  %2227 = vadd.xlane.f32.xlu0 %v2226
  %v2228 = vpop.xlane.xlu0 %2227
  %v2229 = vsel %vm475, %v2209, 0.0
  %2230 = vadd.xlane.f32.xlu0 %v2229
  %v2231 = vpop.xlane.xlu0 %2230
  %v2232 = vsel %vm475, %v2211, 0.0
  %2233 = vadd.xlane.f32.xlu0 %v2232
  %v2234 = vpop.xlane.xlu0 %2233
  %v2235 = vsel %vm475, %v2213, 0.0
  %2236 = vadd.xlane.f32.xlu0 %v2235
  %v2237 = vpop.xlane.xlu0 %2236
  %v2238 = vrcp.pop %v2216
  %v2239 = vrcp.pop %v2219
  %v2240 = vrcp.pop %v2222
  %v2241 = vrcp.pop %v2225
  %v2242 = vrcp.pop %v2228
  %v2243 = vrcp.pop %v2231
  %v2244 = vrcp.pop %v2234
  %v2245 = vrcp.pop %v2237
  %v2246 = vmul.f32 %v2199, %v2238
  %v2247 = vmul.f32 %v2201, %v2239
  %v2248 = vmul.f32 %v2203, %v2240
  %v2249 = vmul.f32 %v2205, %v2241
  %v2250 = vmul.f32 %v2207, %v2242
  %v2251 = vmul.f32 %v2209, %v2243
  %v2252 = vmul.f32 %v2211, %v2244
  %v2253 = vmul.f32 %v2213, %v2245
  %s2254 = scalar_lea.vmem %s5, 64
  %v2255 = vld [vmem:[%s2254] sm:$0xff]
  %v2256 = vld [vmem:[%s2254 + $0x8] sm:$0xff]
  %v2257 = vld [vmem:[%s2254 + $0x10] sm:$0xff]
  %v2258 = vld [vmem:[%s2254 + $0x18] sm:$0xff]
  %2259 = vmatprep.subr.mxu0 0.0
  %2260 = vmatpush1.msra.mxu0 0.0
  %2261 = vmatprep.subr.mxu0 0.0
  %2262 = vmatpush1.msra.mxu0 0.0
  %2263 = vmatprep.subr.mxu0 0.0
  %2264 = vmatpush1.msra.mxu0 0.0
  %2265 = vmatprep.subr.mxu0 0.0
  %2266 = vmatpush1.msra.mxu0 0.0
  %2267 = vmatprep.subr.mxu0 0.0
  %2268 = vmatpush1.msra.mxu0 0.0
  %2269 = vmatprep.subr.mxu0 0.0
  %2270 = vmatpush1.msra.mxu0 0.0
  %2271 = vmatprep.subr.mxu0 0.0
  %2272 = vmatpush1.msra.mxu0 0.0
  %2273 = vmatprep.subr.mxu0 0.0
  %2274 = vmatpush1.msra.mxu0 0.0
  %2275 = vmatprep.subr.mxu0 0.0
  %2276 = vmatpush1.msra.mxu0 0.0
  %2277 = vmatprep.subr.mxu0 0.0
  %2278 = vmatpush1.msra.mxu0 0.0
  %2279 = vmatprep.subr.mxu0 0.0
  %2280 = vmatpush1.msra.mxu0 0.0
  %2281 = vmatprep.subr.mxu0 0.0
  %2282 = vmatpush1.msra.mxu0 0.0
  %2283 = vmatprep.subr.mxu0 0.0
  %2284 = vmatpush1.msra.mxu0 %v2258
  %2285 = vmatprep.subr.mxu0 0.0
  %2286 = vmatpush1.msra.mxu0 %v2257
  %2287 = vmatprep.subr.mxu0 0.0
  %2288 = vmatpush1.msra.mxu0 %v2256
  %2289 = vmatprep.subr.mxu0 0.0
  %2290 = vmatpush1.msra.mxu0 %v2255
  %2291 = vmatprep.subr.mxu0 0.0
  %2292 = vmatpush2.msra.mxu0 0.0
  %2293 = vmatprep.subr.mxu0 0.0
  %2294 = vmatpush2.msra.mxu0 0.0
  %2295 = vmatprep.subr.mxu0 0.0
  %2296 = vmatpush2.msra.mxu0 0.0
  %2297 = vmatprep.subr.mxu0 0.0
  %2298 = vmatpush2.msra.mxu0 0.0
  %2299 = vmatprep.subr.mxu0 0.0
  %2300 = vmatpush2.msra.mxu0 0.0
  %2301 = vmatprep.subr.mxu0 0.0
  %2302 = vmatpush2.msra.mxu0 0.0
  %2303 = vmatprep.subr.mxu0 0.0
  %2304 = vmatpush2.msra.mxu0 0.0
  %2305 = vmatprep.subr.mxu0 0.0
  %2306 = vmatpush2.msra.mxu0 0.0
  %2307 = vmatprep.subr.mxu0 0.0
  %2308 = vmatpush2.msra.mxu0 0.0
  %2309 = vmatprep.subr.mxu0 0.0
  %2310 = vmatpush2.msra.mxu0 0.0
  %2311 = vmatprep.subr.mxu0 0.0
  %2312 = vmatpush2.msra.mxu0 0.0
  %2313 = vmatprep.subr.mxu0 0.0
  %2314 = vmatpush2.msra.mxu0 0.0
  %2315 = vmatprep.subr.mxu0 0.0
  %2316 = vmatpush2.msra.mxu0 0.0
  %2317 = vmatprep.subr.mxu0 0.0
  %2318 = vmatpush2.msra.mxu0 0.0
  %2319 = vmatprep.subr.mxu0 0.0
  %2320 = vmatpush2.msra.mxu0 0.0
  %2321 = vmatprep.subr.mxu0 0.0
  %2322 = vmatpush2.msra.mxu0 0.0
  %2323 = vmatprep.mubr.f32.mxu0 0.0
  %2324 = vmatmul.mubr.f32.gmra.mxu0 %v71
  %v2325 = vpop.f32.mrf.mxu0
  %v2326 = vadd.f32 0.0, %v2325
  %v2327 = vpop.f32.mrf.mxu0
  %2328 = vmatprep.mubr.f32.mxu0 0.0
  %2329 = vmatmul.mubr.f32.gmra.mxu0 %v74
  %v2330 = vpop.f32.mrf.mxu0
  %v2331 = vadd.f32 0.0, %v2330
  %v2332 = vpop.f32.mrf.mxu0
  %2333 = vmatprep.mubr.f32.mxu0 0.0
  %2334 = vmatmul.mubr.f32.gmra.mxu0 %v77
  %v2335 = vpop.f32.mrf.mxu0
  %v2336 = vadd.f32 0.0, %v2335
  %v2337 = vpop.f32.mrf.mxu0
  %2338 = vmatprep.mubr.f32.mxu0 0.0
  %2339 = vmatmul.mubr.f32.gmra.mxu0 %v80
  %v2340 = vpop.f32.mrf.mxu0
  %v2341 = vadd.f32 0.0, %v2340
  %v2342 = vpop.f32.mrf.mxu0
  %2343 = vmatprep.mubr.f32.mxu0 0.0
  %2344 = vmatmul.mubr.f32.gmra.mxu0 %v83
  %v2345 = vpop.f32.mrf.mxu0
  %v2346 = vadd.f32 0.0, %v2345
  %v2347 = vpop.f32.mrf.mxu0
  %2348 = vmatprep.mubr.f32.mxu0 0.0
  %2349 = vmatmul.mubr.f32.gmra.mxu0 %v86
  %v2350 = vpop.f32.mrf.mxu0
  %v2351 = vadd.f32 0.0, %v2350
  %v2352 = vpop.f32.mrf.mxu0
  %2353 = vmatprep.mubr.f32.mxu0 0.0
  %2354 = vmatmul.mubr.f32.gmra.mxu0 %v89
  %v2355 = vpop.f32.mrf.mxu0
  %v2356 = vadd.f32 0.0, %v2355
  %v2357 = vpop.f32.mrf.mxu0
  %2358 = vmatprep.mubr.f32.mxu0 0.0
  %2359 = vmatmul.mubr.f32.gmra.mxu0 %v92
  %v2360 = vpop.f32.mrf.mxu0
  %v2361 = vadd.f32 0.0, %v2360
  %v2362 = vpop.f32.mrf.mxu0
  %2363 = vdwg.mxu0
  %s2364 = scalar_lea.vmem %s6, 64
  %v2365 = vld [vmem:[%s2364] sm:$0xff]
  %v2366 = vld [vmem:[%s2364 + $0x8] sm:$0xff]
  %v2367 = vld [vmem:[%s2364 + $0x10] sm:$0xff]
  %v2368 = vld [vmem:[%s2364 + $0x18] sm:$0xff]
  %2369 = vmatprep.subr.mxu0 0.0
  %2370 = vmatpush1.msra.mxu0 0.0
  %2371 = vmatprep.subr.mxu0 0.0
  %2372 = vmatpush1.msra.mxu0 0.0
  %2373 = vmatprep.subr.mxu0 0.0
  %2374 = vmatpush1.msra.mxu0 0.0
  %2375 = vmatprep.subr.mxu0 0.0
  %2376 = vmatpush1.msra.mxu0 0.0
  %2377 = vmatprep.subr.mxu0 0.0
  %2378 = vmatpush1.msra.mxu0 0.0
  %2379 = vmatprep.subr.mxu0 0.0
  %2380 = vmatpush1.msra.mxu0 0.0
  %2381 = vmatprep.subr.mxu0 0.0
  %2382 = vmatpush1.msra.mxu0 0.0
  %2383 = vmatprep.subr.mxu0 0.0
  %2384 = vmatpush1.msra.mxu0 0.0
  %2385 = vmatprep.subr.mxu0 0.0
  %2386 = vmatpush1.msra.mxu0 0.0
  %2387 = vmatprep.subr.mxu0 0.0
  %2388 = vmatpush1.msra.mxu0 0.0
  %2389 = vmatprep.subr.mxu0 0.0
  %2390 = vmatpush1.msra.mxu0 0.0
  %2391 = vmatprep.subr.mxu0 0.0
  %2392 = vmatpush1.msra.mxu0 0.0
  %2393 = vmatprep.subr.mxu0 0.0
  %2394 = vmatpush1.msra.mxu0 %v2368
  %2395 = vmatprep.subr.mxu0 0.0
  %2396 = vmatpush1.msra.mxu0 %v2367
  %2397 = vmatprep.subr.mxu0 0.0
  %2398 = vmatpush1.msra.mxu0 %v2366
  %2399 = vmatprep.subr.mxu0 0.0
  %2400 = vmatpush1.msra.mxu0 %v2365
  %2401 = vmatprep.subr.mxu0 0.0
  %2402 = vmatpush2.msra.mxu0 0.0
  %2403 = vmatprep.subr.mxu0 0.0
  %2404 = vmatpush2.msra.mxu0 0.0
  %2405 = vmatprep.subr.mxu0 0.0
  %2406 = vmatpush2.msra.mxu0 0.0
  %2407 = vmatprep.subr.mxu0 0.0
  %2408 = vmatpush2.msra.mxu0 0.0
  %2409 = vmatprep.subr.mxu0 0.0
  %2410 = vmatpush2.msra.mxu0 0.0
  %2411 = vmatprep.subr.mxu0 0.0
  %2412 = vmatpush2.msra.mxu0 0.0
  %2413 = vmatprep.subr.mxu0 0.0
  %2414 = vmatpush2.msra.mxu0 0.0
  %2415 = vmatprep.subr.mxu0 0.0
  %2416 = vmatpush2.msra.mxu0 0.0
  %2417 = vmatprep.subr.mxu0 0.0
  %2418 = vmatpush2.msra.mxu0 0.0
  %2419 = vmatprep.subr.mxu0 0.0
  %2420 = vmatpush2.msra.mxu0 0.0
  %2421 = vmatprep.subr.mxu0 0.0
  %2422 = vmatpush2.msra.mxu0 0.0
  %2423 = vmatprep.subr.mxu0 0.0
  %2424 = vmatpush2.msra.mxu0 0.0
  %2425 = vmatprep.subr.mxu0 0.0
  %2426 = vmatpush2.msra.mxu0 0.0
  %2427 = vmatprep.subr.mxu0 0.0
  %2428 = vmatpush2.msra.mxu0 0.0
  %2429 = vmatprep.subr.mxu0 0.0
  %2430 = vmatpush2.msra.mxu0 0.0
  %2431 = vmatprep.subr.mxu0 0.0
  %2432 = vmatpush2.msra.mxu0 0.0
  %2433 = vmatprep.mubr.f32.mxu0 0.0
  %2434 = vmatmul.mubr.f32.gmra.mxu0 %v71
  %v2435 = vpop.f32.mrf.mxu0
  %v2436 = vadd.f32 0.0, %v2435
  %v2437 = vpop.f32.mrf.mxu0
  %2438 = vmatprep.mubr.f32.mxu0 0.0
  %2439 = vmatmul.mubr.f32.gmra.mxu0 %v74
  %v2440 = vpop.f32.mrf.mxu0
  %v2441 = vadd.f32 0.0, %v2440
  %v2442 = vpop.f32.mrf.mxu0
  %2443 = vmatprep.mubr.f32.mxu0 0.0
  %2444 = vmatmul.mubr.f32.gmra.mxu0 %v77
  %v2445 = vpop.f32.mrf.mxu0
  %v2446 = vadd.f32 0.0, %v2445
  %v2447 = vpop.f32.mrf.mxu0
  %2448 = vmatprep.mubr.f32.mxu0 0.0
  %2449 = vmatmul.mubr.f32.gmra.mxu0 %v80
  %v2450 = vpop.f32.mrf.mxu0
  %v2451 = vadd.f32 0.0, %v2450
  %v2452 = vpop.f32.mrf.mxu0
  %2453 = vmatprep.mubr.f32.mxu0 0.0
  %2454 = vmatmul.mubr.f32.gmra.mxu0 %v83
  %v2455 = vpop.f32.mrf.mxu0
  %v2456 = vadd.f32 0.0, %v2455
  %v2457 = vpop.f32.mrf.mxu0
  %2458 = vmatprep.mubr.f32.mxu0 0.0
  %2459 = vmatmul.mubr.f32.gmra.mxu0 %v86
  %v2460 = vpop.f32.mrf.mxu0
  %v2461 = vadd.f32 0.0, %v2460
  %v2462 = vpop.f32.mrf.mxu0
  %2463 = vmatprep.mubr.f32.mxu0 0.0
  %2464 = vmatmul.mubr.f32.gmra.mxu0 %v89
  %v2465 = vpop.f32.mrf.mxu0
  %v2466 = vadd.f32 0.0, %v2465
  %v2467 = vpop.f32.mrf.mxu0
  %2468 = vmatprep.mubr.f32.mxu0 0.0
  %2469 = vmatmul.mubr.f32.gmra.mxu0 %v92
  %v2470 = vpop.f32.mrf.mxu0
  %v2471 = vadd.f32 0.0, %v2470
  %v2472 = vpop.f32.mrf.mxu0
  %2473 = vdwg.mxu0
  %v2475 = vsel %vm475, %v2142, 0
  %v2478 = vsel %vm475, %v2143, 0
  %v2481 = vsel %vm475, %v2144, 0
  %v2484 = vsel %vm475, %v2145, 0
  %v2487 = vsel %vm475, %v2146, 0
  %v2490 = vsel %vm475, %v2147, 0
  %v2493 = vsel %vm475, %v2148, 0
  %v2496 = vsel %vm475, %v2149, 0
  %2498 = vmatprep.subr.mxu0 0.0
  %2499 = vmatpush1.msra.mxu0 0.0
  %2500 = vmatprep.subr.mxu0 0.0
  %2501 = vmatpush1.msra.mxu0 0.0
  %2502 = vmatprep.subr.mxu0 0.0
  %2503 = vmatpush1.msra.mxu0 0.0
  %2504 = vmatprep.subr.mxu0 0.0
  %2505 = vmatpush1.msra.mxu0 0.0
  %2506 = vmatprep.subr.mxu0 0.0
  %2507 = vmatpush1.msra.mxu0 0.0
  %2508 = vmatprep.subr.mxu0 0.0
  %2509 = vmatpush1.msra.mxu0 0.0
  %2510 = vmatprep.subr.mxu0 0.0
  %2511 = vmatpush1.msra.mxu0 0.0
  %2512 = vmatprep.subr.mxu0 0.0
  %2513 = vmatpush1.msra.mxu0 0.0
  %2514 = vmatprep.subr.mxu0 0.0
  %2515 = vmatpush1.msra.mxu0 %v2361
  %2516 = vmatprep.subr.mxu0 0.0
  %2517 = vmatpush1.msra.mxu0 %v2356
  %2518 = vmatprep.subr.mxu0 0.0
  %2519 = vmatpush1.msra.mxu0 %v2351
  %2520 = vmatprep.subr.mxu0 0.0
  %2521 = vmatpush1.msra.mxu0 %v2346
  %2522 = vmatprep.subr.mxu0 0.0
  %2523 = vmatpush1.msra.mxu0 %v2341
  %2524 = vmatprep.subr.mxu0 0.0
  %2525 = vmatpush1.msra.mxu0 %v2336
  %2526 = vmatprep.subr.mxu0 0.0
  %2527 = vmatpush1.msra.mxu0 %v2331
  %2528 = vmatprep.subr.mxu0 0.0
  %2529 = vmatpush1.msra.mxu0 %v2326
  %2530 = vmatprep.subr.mxu0 0.0
  %2531 = vmatpush2.msra.mxu0 0.0
  %2532 = vmatprep.subr.mxu0 0.0
  %2533 = vmatpush2.msra.mxu0 0.0
  %2534 = vmatprep.subr.mxu0 0.0
  %2535 = vmatpush2.msra.mxu0 0.0
  %2536 = vmatprep.subr.mxu0 0.0
  %2537 = vmatpush2.msra.mxu0 0.0
  %2538 = vmatprep.subr.mxu0 0.0
  %2539 = vmatpush2.msra.mxu0 0.0
  %2540 = vmatprep.subr.mxu0 0.0
  %2541 = vmatpush2.msra.mxu0 0.0
  %2542 = vmatprep.subr.mxu0 0.0
  %2543 = vmatpush2.msra.mxu0 0.0
  %2544 = vmatprep.subr.mxu0 0.0
  %2545 = vmatpush2.msra.mxu0 0.0
  %2546 = vmatprep.subr.mxu0 0.0
  %2547 = vmatpush2.msra.mxu0 0.0
  %2548 = vmatprep.subr.mxu0 0.0
  %2549 = vmatpush2.msra.mxu0 0.0
  %2550 = vmatprep.subr.mxu0 0.0
  %2551 = vmatpush2.msra.mxu0 0.0
  %2552 = vmatprep.subr.mxu0 0.0
  %2553 = vmatpush2.msra.mxu0 0.0
  %2554 = vmatprep.subr.mxu0 0.0
  %2555 = vmatpush2.msra.mxu0 0.0
  %2556 = vmatprep.subr.mxu0 0.0
  %2557 = vmatpush2.msra.mxu0 0.0
  %2558 = vmatprep.subr.mxu0 0.0
  %2559 = vmatpush2.msra.mxu0 0.0
  %2560 = vmatprep.subr.mxu0 0.0
  %2561 = vmatpush2.msra.mxu0 0.0
  %2562 = vmatprep.mubr.f32.mxu0 0.0
  %2563 = vmatmul.mubr.f32.gmra.mxu0 %v2475
  %v2564 = vpop.f32.mrf.mxu0
  %v2565 = vadd.f32 0.0, %v2564
  %v2566 = vpop.f32.mrf.mxu0
  %2567 = vmatprep.mubr.f32.mxu0 0.0
  %2568 = vmatmul.mubr.f32.gmra.mxu0 %v2478
  %v2569 = vpop.f32.mrf.mxu0
  %v2570 = vadd.f32 0.0, %v2569
  %v2571 = vpop.f32.mrf.mxu0
  %2572 = vmatprep.mubr.f32.mxu0 0.0
  %2573 = vmatmul.mubr.f32.gmra.mxu0 %v2481
  %v2574 = vpop.f32.mrf.mxu0
  %v2575 = vadd.f32 0.0, %v2574
  %v2576 = vpop.f32.mrf.mxu0
  %2577 = vmatprep.mubr.f32.mxu0 0.0
  %2578 = vmatmul.mubr.f32.gmra.mxu0 %v2484
  %v2579 = vpop.f32.mrf.mxu0
  %v2580 = vadd.f32 0.0, %v2579
  %v2581 = vpop.f32.mrf.mxu0
  %2582 = vmatprep.mubr.f32.mxu0 0.0
  %2583 = vmatmul.mubr.f32.gmra.mxu0 %v2487
  %v2584 = vpop.f32.mrf.mxu0
  %v2585 = vadd.f32 0.0, %v2584
  %v2586 = vpop.f32.mrf.mxu0
  %2587 = vmatprep.mubr.f32.mxu0 0.0
  %2588 = vmatmul.mubr.f32.gmra.mxu0 %v2490
  %v2589 = vpop.f32.mrf.mxu0
  %v2590 = vadd.f32 0.0, %v2589
  %v2591 = vpop.f32.mrf.mxu0
  %2592 = vmatprep.mubr.f32.mxu0 0.0
  %2593 = vmatmul.mubr.f32.gmra.mxu0 %v2493
  %v2594 = vpop.f32.mrf.mxu0
  %v2595 = vadd.f32 0.0, %v2594
  %v2596 = vpop.f32.mrf.mxu0
  %2597 = vmatprep.mubr.f32.mxu0 0.0
  %2598 = vmatmul.mubr.f32.gmra.mxu0 %v2496
  %v2599 = vpop.f32.mrf.mxu0
  %v2600 = vadd.f32 0.0, %v2599
  %v2601 = vpop.f32.mrf.mxu0
  %2602 = vdwg.mxu0
  %v2604 = vsel %vm475, %v2246, 0
  %v2607 = vsel %vm475, %v2247, 0
  %v2610 = vsel %vm475, %v2248, 0
  %v2613 = vsel %vm475, %v2249, 0
  %v2616 = vsel %vm475, %v2250, 0
  %v2619 = vsel %vm475, %v2251, 0
  %v2622 = vsel %vm475, %v2252, 0
  %v2625 = vsel %vm475, %v2253, 0
  %2627 = vmatprep.subr.mxu0 0.0
  %2628 = vmatpush1.msra.mxu0 0.0
  %2629 = vmatprep.subr.mxu0 0.0
  %2630 = vmatpush1.msra.mxu0 0.0
  %2631 = vmatprep.subr.mxu0 0.0
  %2632 = vmatpush1.msra.mxu0 0.0
  %2633 = vmatprep.subr.mxu0 0.0
  %2634 = vmatpush1.msra.mxu0 0.0
  %2635 = vmatprep.subr.mxu0 0.0
  %2636 = vmatpush1.msra.mxu0 0.0
  %2637 = vmatprep.subr.mxu0 0.0
  %2638 = vmatpush1.msra.mxu0 0.0
  %2639 = vmatprep.subr.mxu0 0.0
  %2640 = vmatpush1.msra.mxu0 0.0
  %2641 = vmatprep.subr.mxu0 0.0
  %2642 = vmatpush1.msra.mxu0 0.0
  %2643 = vmatprep.subr.mxu0 0.0
  %2644 = vmatpush1.msra.mxu0 %v2471
  %2645 = vmatprep.subr.mxu0 0.0
  %2646 = vmatpush1.msra.mxu0 %v2466
  %2647 = vmatprep.subr.mxu0 0.0
  %2648 = vmatpush1.msra.mxu0 %v2461
  %2649 = vmatprep.subr.mxu0 0.0
  %2650 = vmatpush1.msra.mxu0 %v2456
  %2651 = vmatprep.subr.mxu0 0.0
  %2652 = vmatpush1.msra.mxu0 %v2451
  %2653 = vmatprep.subr.mxu0 0.0
  %2654 = vmatpush1.msra.mxu0 %v2446
  %2655 = vmatprep.subr.mxu0 0.0
  %2656 = vmatpush1.msra.mxu0 %v2441
  %2657 = vmatprep.subr.mxu0 0.0
  %2658 = vmatpush1.msra.mxu0 %v2436
  %2659 = vmatprep.subr.mxu0 0.0
  %2660 = vmatpush2.msra.mxu0 0.0
  %2661 = vmatprep.subr.mxu0 0.0
  %2662 = vmatpush2.msra.mxu0 0.0
  %2663 = vmatprep.subr.mxu0 0.0
  %2664 = vmatpush2.msra.mxu0 0.0
  %2665 = vmatprep.subr.mxu0 0.0
  %2666 = vmatpush2.msra.mxu0 0.0
  %2667 = vmatprep.subr.mxu0 0.0
  %2668 = vmatpush2.msra.mxu0 0.0
  %2669 = vmatprep.subr.mxu0 0.0
  %2670 = vmatpush2.msra.mxu0 0.0
  %2671 = vmatprep.subr.mxu0 0.0
  %2672 = vmatpush2.msra.mxu0 0.0
  %2673 = vmatprep.subr.mxu0 0.0
  %2674 = vmatpush2.msra.mxu0 0.0
  %2675 = vmatprep.subr.mxu0 0.0
  %2676 = vmatpush2.msra.mxu0 0.0
  %2677 = vmatprep.subr.mxu0 0.0
  %2678 = vmatpush2.msra.mxu0 0.0
  %2679 = vmatprep.subr.mxu0 0.0
  %2680 = vmatpush2.msra.mxu0 0.0
  %2681 = vmatprep.subr.mxu0 0.0
  %2682 = vmatpush2.msra.mxu0 0.0
  %2683 = vmatprep.subr.mxu0 0.0
  %2684 = vmatpush2.msra.mxu0 0.0
  %2685 = vmatprep.subr.mxu0 0.0
  %2686 = vmatpush2.msra.mxu0 0.0
  %2687 = vmatprep.subr.mxu0 0.0
  %2688 = vmatpush2.msra.mxu0 0.0
  %2689 = vmatprep.subr.mxu0 0.0
  %2690 = vmatpush2.msra.mxu0 0.0
  %2691 = vmatprep.mubr.f32.mxu0 0.0
  %2692 = vmatmul.mubr.f32.gmra.mxu0 %v2604
  %v2693 = vpop.f32.mrf.mxu0
  %v2694 = vadd.f32 0.0, %v2693
  %v2695 = vpop.f32.mrf.mxu0
  %2696 = vmatprep.mubr.f32.mxu0 0.0
  %2697 = vmatmul.mubr.f32.gmra.mxu0 %v2607
  %v2698 = vpop.f32.mrf.mxu0
  %v2699 = vadd.f32 0.0, %v2698
  %v2700 = vpop.f32.mrf.mxu0
  %2701 = vmatprep.mubr.f32.mxu0 0.0
  %2702 = vmatmul.mubr.f32.gmra.mxu0 %v2610
  %v2703 = vpop.f32.mrf.mxu0
  %v2704 = vadd.f32 0.0, %v2703
  %v2705 = vpop.f32.mrf.mxu0
  %2706 = vmatprep.mubr.f32.mxu0 0.0
  %2707 = vmatmul.mubr.f32.gmra.mxu0 %v2613
  %v2708 = vpop.f32.mrf.mxu0
  %v2709 = vadd.f32 0.0, %v2708
  %v2710 = vpop.f32.mrf.mxu0
  %2711 = vmatprep.mubr.f32.mxu0 0.0
  %2712 = vmatmul.mubr.f32.gmra.mxu0 %v2616
  %v2713 = vpop.f32.mrf.mxu0
  %v2714 = vadd.f32 0.0, %v2713
  %v2715 = vpop.f32.mrf.mxu0
  %2716 = vmatprep.mubr.f32.mxu0 0.0
  %2717 = vmatmul.mubr.f32.gmra.mxu0 %v2619
  %v2718 = vpop.f32.mrf.mxu0
  %v2719 = vadd.f32 0.0, %v2718
  %v2720 = vpop.f32.mrf.mxu0
  %2721 = vmatprep.mubr.f32.mxu0 0.0
  %2722 = vmatmul.mubr.f32.gmra.mxu0 %v2622
  %v2723 = vpop.f32.mrf.mxu0
  %v2724 = vadd.f32 0.0, %v2723
  %v2725 = vpop.f32.mrf.mxu0
  %2726 = vmatprep.mubr.f32.mxu0 0.0
  %2727 = vmatmul.mubr.f32.gmra.mxu0 %v2625
  %v2728 = vpop.f32.mrf.mxu0
  %v2729 = vadd.f32 0.0, %v2728
  %v2730 = vpop.f32.mrf.mxu0
  %2731 = vdwg.mxu0
  %v2732 = vsub.f32 %v2565, %v2694
  %v2733 = vsub.f32 %v2570, %v2699
  %v2734 = vsub.f32 %v2575, %v2704
  %v2735 = vsub.f32 %v2580, %v2709
  %v2736 = vsub.f32 %v2585, %v2714
  %v2737 = vsub.f32 %v2590, %v2719
  %v2738 = vsub.f32 %v2595, %v2724
  %v2739 = vsub.f32 %v2600, %v2729
  %vm2740 = vcmp.gt.f32.partialorder %v2732, 0.0
  %vm2741 = vcmp.gt.f32.partialorder %v2733, 0.0
  %vm2742 = vcmp.gt.f32.partialorder %v2734, 0.0
  %vm2743 = vcmp.gt.f32.partialorder %v2735, 0.0
  %vm2744 = vcmp.gt.f32.partialorder %v2736, 0.0
  %vm2745 = vcmp.gt.f32.partialorder %v2737, 0.0
  %vm2746 = vcmp.gt.f32.partialorder %v2738, 0.0
  %vm2747 = vcmp.gt.f32.partialorder %v2739, 0.0
  %v2748 = vmul.f32 %v2732, 1.442695
  %v2749 = vpow.pop %v2748
  %v2750 = vmul.f32 %v2733, 1.442695
  %v2751 = vpow.pop %v2750
  %v2752 = vmul.f32 %v2734, 1.442695
  %v2753 = vpow.pop %v2752
  %v2754 = vmul.f32 %v2735, 1.442695
  %v2755 = vpow.pop %v2754
  %v2756 = vmul.f32 %v2736, 1.442695
  %v2757 = vpow.pop %v2756
  %v2758 = vmul.f32 %v2737, 1.442695
  %v2759 = vpow.pop %v2758
  %v2760 = vmul.f32 %v2738, 1.442695
  %v2761 = vpow.pop %v2760
  %v2762 = vmul.f32 %v2739, 1.442695
  %v2763 = vpow.pop %v2762
  %v2764 = vsub.f32 %v2749, 1.0
  %v2765 = vsub.f32 %v2751, 1.0
  %v2766 = vsub.f32 %v2753, 1.0
  %v2767 = vsub.f32 %v2755, 1.0
  %v2768 = vsub.f32 %v2757, 1.0
  %v2769 = vsub.f32 %v2759, 1.0
  %v2770 = vsub.f32 %v2761, 1.0
  %v2771 = vsub.f32 %v2763, 1.0
  %v2772 = vsel %vm2740, %v2732, %v2764
  %v2773 = vsel %vm2741, %v2733, %v2765
  %v2774 = vsel %vm2742, %v2734, %v2766
  %v2775 = vsel %vm2743, %v2735, %v2767
  %v2776 = vsel %vm2744, %v2736, %v2768
  %v2777 = vsel %vm2745, %v2737, %v2769
  %v2778 = vsel %vm2746, %v2738, %v2770
  %v2779 = vsel %vm2747, %v2739, %v2771
  %2780 = vset.pattern.permute.xlu0 3
  %2781 = vperm.xlu0 %2780, %v282
  %v2782 = vpop.permute.xlu0 %2781
  %2784 = vset.pattern.permute.xlu0 3
  %2785 = vperm.xlu0 %2784, %v287
  %v2786 = vpop.permute.xlu0 %2785
  %2788 = vset.pattern.permute.xlu0 3
  %2789 = vperm.xlu0 %2788, %v292
  %v2790 = vpop.permute.xlu0 %2789
  %2792 = vset.pattern.permute.xlu0 3
  %2793 = vperm.xlu0 %2792, %v297
  %v2794 = vpop.permute.xlu0 %2793
  %2796 = vset.pattern.permute.xlu0 3
  %2797 = vperm.xlu0 %2796, %v302
  %v2798 = vpop.permute.xlu0 %2797
  %2800 = vset.pattern.permute.xlu0 3
  %2801 = vperm.xlu0 %2800, %v307
  %v2802 = vpop.permute.xlu0 %2801
  %2804 = vset.pattern.permute.xlu0 3
  %2805 = vperm.xlu0 %2804, %v312
  %v2806 = vpop.permute.xlu0 %2805
  %2808 = vset.pattern.permute.xlu0 3
  %2809 = vperm.xlu0 %2808, %v317
  %v2810 = vpop.permute.xlu0 %2809
  %v2812 = vlaneseq
  %v2813 = vshrl.u32 %v2812, 7
  %v2814 = vsub.s32 3, %v2813
  %v2815 = vrot.slane %v388, %v2814
  %v2816 = vadd.f32 %v2782, %v2815
  %v2817 = vadd.f32 %v2786, %v2815
  %v2818 = vadd.f32 %v2790, %v2815
  %v2819 = vadd.f32 %v2794, %v2815
  %v2820 = vadd.f32 %v2798, %v2815
  %v2821 = vadd.f32 %v2802, %v2815
  %v2822 = vadd.f32 %v2806, %v2815
  %v2823 = vadd.f32 %v2810, %v2815
  %vm2824 = vcmp.gt.f32.partialorder %v2816, 0.0
  %vm2825 = vcmp.gt.f32.partialorder %v2817, 0.0
  %vm2826 = vcmp.gt.f32.partialorder %v2818, 0.0
  %vm2827 = vcmp.gt.f32.partialorder %v2819, 0.0
  %vm2828 = vcmp.gt.f32.partialorder %v2820, 0.0
  %vm2829 = vcmp.gt.f32.partialorder %v2821, 0.0
  %vm2830 = vcmp.gt.f32.partialorder %v2822, 0.0
  %vm2831 = vcmp.gt.f32.partialorder %v2823, 0.0
  %v2832 = vmul.f32 %v2816, 0.3
  %v2833 = vmul.f32 %v2817, 0.3
  %v2834 = vmul.f32 %v2818, 0.3
  %v2835 = vmul.f32 %v2819, 0.3
  %v2836 = vmul.f32 %v2820, 0.3
  %v2837 = vmul.f32 %v2821, 0.3
  %v2838 = vmul.f32 %v2822, 0.3
  %v2839 = vmul.f32 %v2823, 0.3
  %v2840 = vsel %vm2824, %v2816, %v2832
  %v2841 = vsel %vm2825, %v2817, %v2833
  %v2842 = vsel %vm2826, %v2818, %v2834
  %v2843 = vsel %vm2827, %v2819, %v2835
  %v2844 = vsel %vm2828, %v2820, %v2836
  %v2845 = vsel %vm2829, %v2821, %v2837
  %v2846 = vsel %vm2830, %v2822, %v2838
  %v2847 = vsel %vm2831, %v2823, %v2839
  %v2848 = vsel %vm57, %v2840, -1e+12
  %v2849 = vsel %vm58, %v2841, -1e+12
  %v2850 = vsel %vm59, %v2842, -1e+12
  %v2851 = vsel %vm60, %v2843, -1e+12
  %v2852 = vsel %vm61, %v2844, -1e+12
  %v2853 = vsel %vm62, %v2845, -1e+12
  %v2854 = vsel %vm63, %v2846, -1e+12
  %v2855 = vsel %vm64, %v2847, -1e+12
  %v2856 = vsel %vm475, %v2848, -inf
  %2857 = vmax.xlane.f32.xlu0 %v2856
  %v2858 = vpop.xlane.xlu0 %2857
  %v2859 = vsel %vm475, %v2849, -inf
  %2860 = vmax.xlane.f32.xlu0 %v2859
  %v2861 = vpop.xlane.xlu0 %2860
  %v2862 = vsel %vm475, %v2850, -inf
  %2863 = vmax.xlane.f32.xlu0 %v2862
  %v2864 = vpop.xlane.xlu0 %2863
  %v2865 = vsel %vm475, %v2851, -inf
  %2866 = vmax.xlane.f32.xlu0 %v2865
  %v2867 = vpop.xlane.xlu0 %2866
  %v2868 = vsel %vm475, %v2852, -inf
  %2869 = vmax.xlane.f32.xlu0 %v2868
  %v2870 = vpop.xlane.xlu0 %2869
  %v2871 = vsel %vm475, %v2853, -inf
  %2872 = vmax.xlane.f32.xlu0 %v2871
  %v2873 = vpop.xlane.xlu0 %2872
  %v2874 = vsel %vm475, %v2854, -inf
  %2875 = vmax.xlane.f32.xlu0 %v2874
  %v2876 = vpop.xlane.xlu0 %2875
  %v2877 = vsel %vm475, %v2855, -inf
  %2878 = vmax.xlane.f32.xlu0 %v2877
  %v2879 = vpop.xlane.xlu0 %2878
  %v2880 = vsub.f32 %v2848, %v2858
  %v2881 = vsub.f32 %v2849, %v2861
  %v2882 = vsub.f32 %v2850, %v2864
  %v2883 = vsub.f32 %v2851, %v2867
  %v2884 = vsub.f32 %v2852, %v2870
  %v2885 = vsub.f32 %v2853, %v2873
  %v2886 = vsub.f32 %v2854, %v2876
  %v2887 = vsub.f32 %v2855, %v2879
  %v2888 = vmul.f32 %v2880, 1.442695
  %v2889 = vpow.pop %v2888
  %v2890 = vmul.f32 %v2881, 1.442695
  %v2891 = vpow.pop %v2890
  %v2892 = vmul.f32 %v2882, 1.442695
  %v2893 = vpow.pop %v2892
  %v2894 = vmul.f32 %v2883, 1.442695
  %v2895 = vpow.pop %v2894
  %v2896 = vmul.f32 %v2884, 1.442695
  %v2897 = vpow.pop %v2896
  %v2898 = vmul.f32 %v2885, 1.442695
  %v2899 = vpow.pop %v2898
  %v2900 = vmul.f32 %v2886, 1.442695
  %v2901 = vpow.pop %v2900
  %v2902 = vmul.f32 %v2887, 1.442695
  %v2903 = vpow.pop %v2902
  %v2904 = vsel %vm475, %v2889, 0.0
  %2905 = vadd.xlane.f32.xlu0 %v2904
  %v2906 = vpop.xlane.xlu0 %2905
  %v2907 = vsel %vm475, %v2891, 0.0
  %2908 = vadd.xlane.f32.xlu0 %v2907
  %v2909 = vpop.xlane.xlu0 %2908
  %v2910 = vsel %vm475, %v2893, 0.0
  %2911 = vadd.xlane.f32.xlu0 %v2910
  %v2912 = vpop.xlane.xlu0 %2911
  %v2913 = vsel %vm475, %v2895, 0.0
  %2914 = vadd.xlane.f32.xlu0 %v2913
  %v2915 = vpop.xlane.xlu0 %2914
  %v2916 = vsel %vm475, %v2897, 0.0
  %2917 = vadd.xlane.f32.xlu0 %v2916
  %v2918 = vpop.xlane.xlu0 %2917
  %v2919 = vsel %vm475, %v2899, 0.0
  %2920 = vadd.xlane.f32.xlu0 %v2919
  %v2921 = vpop.xlane.xlu0 %2920
  %v2922 = vsel %vm475, %v2901, 0.0
  %2923 = vadd.xlane.f32.xlu0 %v2922
  %v2924 = vpop.xlane.xlu0 %2923
  %v2925 = vsel %vm475, %v2903, 0.0
  %2926 = vadd.xlane.f32.xlu0 %v2925
  %v2927 = vpop.xlane.xlu0 %2926
  %v2928 = vrcp.pop %v2906
  %v2929 = vrcp.pop %v2909
  %v2930 = vrcp.pop %v2912
  %v2931 = vrcp.pop %v2915
  %v2932 = vrcp.pop %v2918
  %v2933 = vrcp.pop %v2921
  %v2934 = vrcp.pop %v2924
  %v2935 = vrcp.pop %v2927
  %v2936 = vmul.f32 %v2889, %v2928
  %v2937 = vmul.f32 %v2891, %v2929
  %v2938 = vmul.f32 %v2893, %v2930
  %v2939 = vmul.f32 %v2895, %v2931
  %v2940 = vmul.f32 %v2897, %v2932
  %v2941 = vmul.f32 %v2899, %v2933
  %v2942 = vmul.f32 %v2901, %v2934
  %v2943 = vmul.f32 %v2903, %v2935
  %v2944 = vsub.f32 0.0, %v2840
  %v2945 = vsub.f32 0.0, %v2841
  %v2946 = vsub.f32 0.0, %v2842
  %v2947 = vsub.f32 0.0, %v2843
  %v2948 = vsub.f32 0.0, %v2844
  %v2949 = vsub.f32 0.0, %v2845
  %v2950 = vsub.f32 0.0, %v2846
  %v2951 = vsub.f32 0.0, %v2847
  %v2952 = vsel %vm57, %v2944, -1e+12
  %v2953 = vsel %vm58, %v2945, -1e+12
  %v2954 = vsel %vm59, %v2946, -1e+12
  %v2955 = vsel %vm60, %v2947, -1e+12
  %v2956 = vsel %vm61, %v2948, -1e+12
  %v2957 = vsel %vm62, %v2949, -1e+12
  %v2958 = vsel %vm63, %v2950, -1e+12
  %v2959 = vsel %vm64, %v2951, -1e+12
  %v2960 = vsel %vm475, %v2952, -inf
  %2961 = vmax.xlane.f32.xlu0 %v2960
  %v2962 = vpop.xlane.xlu0 %2961
  %v2963 = vsel %vm475, %v2953, -inf
  %2964 = vmax.xlane.f32.xlu0 %v2963
  %v2965 = vpop.xlane.xlu0 %2964
  %v2966 = vsel %vm475, %v2954, -inf
  %2967 = vmax.xlane.f32.xlu0 %v2966
  %v2968 = vpop.xlane.xlu0 %2967
  %v2969 = vsel %vm475, %v2955, -inf
  %2970 = vmax.xlane.f32.xlu0 %v2969
  %v2971 = vpop.xlane.xlu0 %2970
  %v2972 = vsel %vm475, %v2956, -inf
  %2973 = vmax.xlane.f32.xlu0 %v2972
  %v2974 = vpop.xlane.xlu0 %2973
  %v2975 = vsel %vm475, %v2957, -inf
  %2976 = vmax.xlane.f32.xlu0 %v2975
  %v2977 = vpop.xlane.xlu0 %2976
  %v2978 = vsel %vm475, %v2958, -inf
  %2979 = vmax.xlane.f32.xlu0 %v2978
  %v2980 = vpop.xlane.xlu0 %2979
  %v2981 = vsel %vm475, %v2959, -inf
  %2982 = vmax.xlane.f32.xlu0 %v2981
  %v2983 = vpop.xlane.xlu0 %2982
  %v2984 = vsub.f32 %v2952, %v2962
  %v2985 = vsub.f32 %v2953, %v2965
  %v2986 = vsub.f32 %v2954, %v2968
  %v2987 = vsub.f32 %v2955, %v2971
  %v2988 = vsub.f32 %v2956, %v2974
  %v2989 = vsub.f32 %v2957, %v2977
  %v2990 = vsub.f32 %v2958, %v2980
  %v2991 = vsub.f32 %v2959, %v2983
  %v2992 = vmul.f32 %v2984, 1.442695
  %v2993 = vpow.pop %v2992
  %v2994 = vmul.f32 %v2985, 1.442695
  %v2995 = vpow.pop %v2994
  %v2996 = vmul.f32 %v2986, 1.442695
  %v2997 = vpow.pop %v2996
  %v2998 = vmul.f32 %v2987, 1.442695
  %v2999 = vpow.pop %v2998
  %v3000 = vmul.f32 %v2988, 1.442695
  %v3001 = vpow.pop %v3000
  %v3002 = vmul.f32 %v2989, 1.442695
  %v3003 = vpow.pop %v3002
  %v3004 = vmul.f32 %v2990, 1.442695
  %v3005 = vpow.pop %v3004
  %v3006 = vmul.f32 %v2991, 1.442695
  %v3007 = vpow.pop %v3006
  %v3008 = vsel %vm475, %v2993, 0.0
  %3009 = vadd.xlane.f32.xlu0 %v3008
  %v3010 = vpop.xlane.xlu0 %3009
  %v3011 = vsel %vm475, %v2995, 0.0
  %3012 = vadd.xlane.f32.xlu0 %v3011
  %v3013 = vpop.xlane.xlu0 %3012
  %v3014 = vsel %vm475, %v2997, 0.0
  %3015 = vadd.xlane.f32.xlu0 %v3014
  %v3016 = vpop.xlane.xlu0 %3015
  %v3017 = vsel %vm475, %v2999, 0.0
  %3018 = vadd.xlane.f32.xlu0 %v3017
  %v3019 = vpop.xlane.xlu0 %3018
  %v3020 = vsel %vm475, %v3001, 0.0
  %3021 = vadd.xlane.f32.xlu0 %v3020
  %v3022 = vpop.xlane.xlu0 %3021
  %v3023 = vsel %vm475, %v3003, 0.0
  %3024 = vadd.xlane.f32.xlu0 %v3023
  %v3025 = vpop.xlane.xlu0 %3024
  %v3026 = vsel %vm475, %v3005, 0.0
  %3027 = vadd.xlane.f32.xlu0 %v3026
  %v3028 = vpop.xlane.xlu0 %3027
  %v3029 = vsel %vm475, %v3007, 0.0
  %3030 = vadd.xlane.f32.xlu0 %v3029
  %v3031 = vpop.xlane.xlu0 %3030
  %v3032 = vrcp.pop %v3010
  %v3033 = vrcp.pop %v3013
  %v3034 = vrcp.pop %v3016
  %v3035 = vrcp.pop %v3019
  %v3036 = vrcp.pop %v3022
  %v3037 = vrcp.pop %v3025
  %v3038 = vrcp.pop %v3028
  %v3039 = vrcp.pop %v3031
  %v3040 = vmul.f32 %v2993, %v3032
  %v3041 = vmul.f32 %v2995, %v3033
  %v3042 = vmul.f32 %v2997, %v3034
  %v3043 = vmul.f32 %v2999, %v3035
  %v3044 = vmul.f32 %v3001, %v3036
  %v3045 = vmul.f32 %v3003, %v3037
  %v3046 = vmul.f32 %v3005, %v3038
  %v3047 = vmul.f32 %v3007, %v3039
  %s3048 = scalar_lea.vmem %s5, 96
  %v3049 = vld [vmem:[%s3048] sm:$0xff]
  %v3050 = vld [vmem:[%s3048 + $0x8] sm:$0xff]
  %v3051 = vld [vmem:[%s3048 + $0x10] sm:$0xff]
  %v3052 = vld [vmem:[%s3048 + $0x18] sm:$0xff]
  %3053 = vmatprep.subr.mxu0 0.0
  %3054 = vmatpush1.msra.mxu0 0.0
  %3055 = vmatprep.subr.mxu0 0.0
  %3056 = vmatpush1.msra.mxu0 0.0
  %3057 = vmatprep.subr.mxu0 0.0
  %3058 = vmatpush1.msra.mxu0 0.0
  %3059 = vmatprep.subr.mxu0 0.0
  %3060 = vmatpush1.msra.mxu0 0.0
  %3061 = vmatprep.subr.mxu0 0.0
  %3062 = vmatpush1.msra.mxu0 0.0
  %3063 = vmatprep.subr.mxu0 0.0
  %3064 = vmatpush1.msra.mxu0 0.0
  %3065 = vmatprep.subr.mxu0 0.0
  %3066 = vmatpush1.msra.mxu0 0.0
  %3067 = vmatprep.subr.mxu0 0.0
  %3068 = vmatpush1.msra.mxu0 0.0
  %3069 = vmatprep.subr.mxu0 0.0
  %3070 = vmatpush1.msra.mxu0 0.0
  %3071 = vmatprep.subr.mxu0 0.0
  %3072 = vmatpush1.msra.mxu0 0.0
  %3073 = vmatprep.subr.mxu0 0.0
  %3074 = vmatpush1.msra.mxu0 0.0
  %3075 = vmatprep.subr.mxu0 0.0
  %3076 = vmatpush1.msra.mxu0 0.0
  %3077 = vmatprep.subr.mxu0 0.0
  %3078 = vmatpush1.msra.mxu0 %v3052
  %3079 = vmatprep.subr.mxu0 0.0
  %3080 = vmatpush1.msra.mxu0 %v3051
  %3081 = vmatprep.subr.mxu0 0.0
  %3082 = vmatpush1.msra.mxu0 %v3050
  %3083 = vmatprep.subr.mxu0 0.0
  %3084 = vmatpush1.msra.mxu0 %v3049
  %3085 = vmatprep.subr.mxu0 0.0
  %3086 = vmatpush2.msra.mxu0 0.0
  %3087 = vmatprep.subr.mxu0 0.0
  %3088 = vmatpush2.msra.mxu0 0.0
  %3089 = vmatprep.subr.mxu0 0.0
  %3090 = vmatpush2.msra.mxu0 0.0
  %3091 = vmatprep.subr.mxu0 0.0
  %3092 = vmatpush2.msra.mxu0 0.0
  %3093 = vmatprep.subr.mxu0 0.0
  %3094 = vmatpush2.msra.mxu0 0.0
  %3095 = vmatprep.subr.mxu0 0.0
  %3096 = vmatpush2.msra.mxu0 0.0
  %3097 = vmatprep.subr.mxu0 0.0
  %3098 = vmatpush2.msra.mxu0 0.0
  %3099 = vmatprep.subr.mxu0 0.0
  %3100 = vmatpush2.msra.mxu0 0.0
  %3101 = vmatprep.subr.mxu0 0.0
  %3102 = vmatpush2.msra.mxu0 0.0
  %3103 = vmatprep.subr.mxu0 0.0
  %3104 = vmatpush2.msra.mxu0 0.0
  %3105 = vmatprep.subr.mxu0 0.0
  %3106 = vmatpush2.msra.mxu0 0.0
  %3107 = vmatprep.subr.mxu0 0.0
  %3108 = vmatpush2.msra.mxu0 0.0
  %3109 = vmatprep.subr.mxu0 0.0
  %3110 = vmatpush2.msra.mxu0 0.0
  %3111 = vmatprep.subr.mxu0 0.0
  %3112 = vmatpush2.msra.mxu0 0.0
  %3113 = vmatprep.subr.mxu0 0.0
  %3114 = vmatpush2.msra.mxu0 0.0
  %3115 = vmatprep.subr.mxu0 0.0
  %3116 = vmatpush2.msra.mxu0 0.0
  %3117 = vmatprep.mubr.f32.mxu0 0.0
  %3118 = vmatmul.mubr.f32.gmra.mxu0 %v71
  %v3119 = vpop.f32.mrf.mxu0
  %v3120 = vadd.f32 0.0, %v3119
  %v3121 = vpop.f32.mrf.mxu0
  %3122 = vmatprep.mubr.f32.mxu0 0.0
  %3123 = vmatmul.mubr.f32.gmra.mxu0 %v74
  %v3124 = vpop.f32.mrf.mxu0
  %v3125 = vadd.f32 0.0, %v3124
  %v3126 = vpop.f32.mrf.mxu0
  %3127 = vmatprep.mubr.f32.mxu0 0.0
  %3128 = vmatmul.mubr.f32.gmra.mxu0 %v77
  %v3129 = vpop.f32.mrf.mxu0
  %v3130 = vadd.f32 0.0, %v3129
  %v3131 = vpop.f32.mrf.mxu0
  %3132 = vmatprep.mubr.f32.mxu0 0.0
  %3133 = vmatmul.mubr.f32.gmra.mxu0 %v80
  %v3134 = vpop.f32.mrf.mxu0
  %v3135 = vadd.f32 0.0, %v3134
  %v3136 = vpop.f32.mrf.mxu0
  %3137 = vmatprep.mubr.f32.mxu0 0.0
  %3138 = vmatmul.mubr.f32.gmra.mxu0 %v83
  %v3139 = vpop.f32.mrf.mxu0
  %v3140 = vadd.f32 0.0, %v3139
  %v3141 = vpop.f32.mrf.mxu0
  %3142 = vmatprep.mubr.f32.mxu0 0.0
  %3143 = vmatmul.mubr.f32.gmra.mxu0 %v86
  %v3144 = vpop.f32.mrf.mxu0
  %v3145 = vadd.f32 0.0, %v3144
  %v3146 = vpop.f32.mrf.mxu0
  %3147 = vmatprep.mubr.f32.mxu0 0.0
  %3148 = vmatmul.mubr.f32.gmra.mxu0 %v89
  %v3149 = vpop.f32.mrf.mxu0
  %v3150 = vadd.f32 0.0, %v3149
  %v3151 = vpop.f32.mrf.mxu0
  %3152 = vmatprep.mubr.f32.mxu0 0.0
  %3153 = vmatmul.mubr.f32.gmra.mxu0 %v92
  %v3154 = vpop.f32.mrf.mxu0
  %v3155 = vadd.f32 0.0, %v3154
  %v3156 = vpop.f32.mrf.mxu0
  %3157 = vdwg.mxu0
  %s3158 = scalar_lea.vmem %s6, 96
  %v3159 = vld [vmem:[%s3158] sm:$0xff]
  %v3160 = vld [vmem:[%s3158 + $0x8] sm:$0xff]
  %v3161 = vld [vmem:[%s3158 + $0x10] sm:$0xff]
  %v3162 = vld [vmem:[%s3158 + $0x18] sm:$0xff]
  %3163 = vmatprep.subr.mxu0 0.0
  %3164 = vmatpush1.msra.mxu0 0.0
  %3165 = vmatprep.subr.mxu0 0.0
  %3166 = vmatpush1.msra.mxu0 0.0
  %3167 = vmatprep.subr.mxu0 0.0
  %3168 = vmatpush1.msra.mxu0 0.0
  %3169 = vmatprep.subr.mxu0 0.0
  %3170 = vmatpush1.msra.mxu0 0.0
  %3171 = vmatprep.subr.mxu0 0.0
  %3172 = vmatpush1.msra.mxu0 0.0
  %3173 = vmatprep.subr.mxu0 0.0
  %3174 = vmatpush1.msra.mxu0 0.0
  %3175 = vmatprep.subr.mxu0 0.0
  %3176 = vmatpush1.msra.mxu0 0.0
  %3177 = vmatprep.subr.mxu0 0.0
  %3178 = vmatpush1.msra.mxu0 0.0
  %3179 = vmatprep.subr.mxu0 0.0
  %3180 = vmatpush1.msra.mxu0 0.0
  %3181 = vmatprep.subr.mxu0 0.0
  %3182 = vmatpush1.msra.mxu0 0.0
  %3183 = vmatprep.subr.mxu0 0.0
  %3184 = vmatpush1.msra.mxu0 0.0
  %3185 = vmatprep.subr.mxu0 0.0
  %3186 = vmatpush1.msra.mxu0 0.0
  %3187 = vmatprep.subr.mxu0 0.0
  %3188 = vmatpush1.msra.mxu0 %v3162
  %3189 = vmatprep.subr.mxu0 0.0
  %3190 = vmatpush1.msra.mxu0 %v3161
  %3191 = vmatprep.subr.mxu0 0.0
  %3192 = vmatpush1.msra.mxu0 %v3160
  %3193 = vmatprep.subr.mxu0 0.0
  %3194 = vmatpush1.msra.mxu0 %v3159
  %3195 = vmatprep.subr.mxu0 0.0
  %3196 = vmatpush2.msra.mxu0 0.0
  %3197 = vmatprep.subr.mxu0 0.0
  %3198 = vmatpush2.msra.mxu0 0.0
  %3199 = vmatprep.subr.mxu0 0.0
  %3200 = vmatpush2.msra.mxu0 0.0
  %3201 = vmatprep.subr.mxu0 0.0
  %3202 = vmatpush2.msra.mxu0 0.0
  %3203 = vmatprep.subr.mxu0 0.0
  %3204 = vmatpush2.msra.mxu0 0.0
  %3205 = vmatprep.subr.mxu0 0.0
  %3206 = vmatpush2.msra.mxu0 0.0
  %3207 = vmatprep.subr.mxu0 0.0
  %3208 = vmatpush2.msra.mxu0 0.0
  %3209 = vmatprep.subr.mxu0 0.0
  %3210 = vmatpush2.msra.mxu0 0.0
  %3211 = vmatprep.subr.mxu0 0.0
  %3212 = vmatpush2.msra.mxu0 0.0
  %3213 = vmatprep.subr.mxu0 0.0
  %3214 = vmatpush2.msra.mxu0 0.0
  %3215 = vmatprep.subr.mxu0 0.0
  %3216 = vmatpush2.msra.mxu0 0.0
  %3217 = vmatprep.subr.mxu0 0.0
  %3218 = vmatpush2.msra.mxu0 0.0
  %3219 = vmatprep.subr.mxu0 0.0
  %3220 = vmatpush2.msra.mxu0 0.0
  %3221 = vmatprep.subr.mxu0 0.0
  %3222 = vmatpush2.msra.mxu0 0.0
  %3223 = vmatprep.subr.mxu0 0.0
  %3224 = vmatpush2.msra.mxu0 0.0
  %3225 = vmatprep.subr.mxu0 0.0
  %3226 = vmatpush2.msra.mxu0 0.0
  %3227 = vmatprep.mubr.f32.mxu0 0.0
  %3228 = vmatmul.mubr.f32.gmra.mxu0 %v71
  %v3229 = vpop.f32.mrf.mxu0
  %v3230 = vadd.f32 0.0, %v3229
  %v3231 = vpop.f32.mrf.mxu0
  %3232 = vmatprep.mubr.f32.mxu0 0.0
  %3233 = vmatmul.mubr.f32.gmra.mxu0 %v74
  %v3234 = vpop.f32.mrf.mxu0
  %v3235 = vadd.f32 0.0, %v3234
  %v3236 = vpop.f32.mrf.mxu0
  %3237 = vmatprep.mubr.f32.mxu0 0.0
  %3238 = vmatmul.mubr.f32.gmra.mxu0 %v77
  %v3239 = vpop.f32.mrf.mxu0
  %v3240 = vadd.f32 0.0, %v3239
  %v3241 = vpop.f32.mrf.mxu0
  %3242 = vmatprep.mubr.f32.mxu0 0.0
  %3243 = vmatmul.mubr.f32.gmra.mxu0 %v80
  %v3244 = vpop.f32.mrf.mxu0
  %v3245 = vadd.f32 0.0, %v3244
  %v3246 = vpop.f32.mrf.mxu0
  %3247 = vmatprep.mubr.f32.mxu0 0.0
  %3248 = vmatmul.mubr.f32.gmra.mxu0 %v83
  %v3249 = vpop.f32.mrf.mxu0
  %v3250 = vadd.f32 0.0, %v3249
  %v3251 = vpop.f32.mrf.mxu0
  %3252 = vmatprep.mubr.f32.mxu0 0.0
  %3253 = vmatmul.mubr.f32.gmra.mxu0 %v86
  %v3254 = vpop.f32.mrf.mxu0
  %v3255 = vadd.f32 0.0, %v3254
  %v3256 = vpop.f32.mrf.mxu0
  %3257 = vmatprep.mubr.f32.mxu0 0.0
  %3258 = vmatmul.mubr.f32.gmra.mxu0 %v89
  %v3259 = vpop.f32.mrf.mxu0
  %v3260 = vadd.f32 0.0, %v3259
  %v3261 = vpop.f32.mrf.mxu0
  %3262 = vmatprep.mubr.f32.mxu0 0.0
  %3263 = vmatmul.mubr.f32.gmra.mxu0 %v92
  %v3264 = vpop.f32.mrf.mxu0
  %v3265 = vadd.f32 0.0, %v3264
  %v3266 = vpop.f32.mrf.mxu0
  %3267 = vdwg.mxu0
  %v3269 = vsel %vm475, %v2936, 0
  %v3272 = vsel %vm475, %v2937, 0
  %v3275 = vsel %vm475, %v2938, 0
  %v3278 = vsel %vm475, %v2939, 0
  %v3281 = vsel %vm475, %v2940, 0
  %v3284 = vsel %vm475, %v2941, 0
  %v3287 = vsel %vm475, %v2942, 0
  %v3290 = vsel %vm475, %v2943, 0
  %3292 = vmatprep.subr.mxu0 0.0
  %3293 = vmatpush1.msra.mxu0 0.0
  %3294 = vmatprep.subr.mxu0 0.0
  %3295 = vmatpush1.msra.mxu0 0.0
  %3296 = vmatprep.subr.mxu0 0.0
  %3297 = vmatpush1.msra.mxu0 0.0
  %3298 = vmatprep.subr.mxu0 0.0
  %3299 = vmatpush1.msra.mxu0 0.0
  %3300 = vmatprep.subr.mxu0 0.0
  %3301 = vmatpush1.msra.mxu0 0.0
  %3302 = vmatprep.subr.mxu0 0.0
  %3303 = vmatpush1.msra.mxu0 0.0
  %3304 = vmatprep.subr.mxu0 0.0
  %3305 = vmatpush1.msra.mxu0 0.0
  %3306 = vmatprep.subr.mxu0 0.0
  %3307 = vmatpush1.msra.mxu0 0.0
  %3308 = vmatprep.subr.mxu0 0.0
  %3309 = vmatpush1.msra.mxu0 %v3155
  %3310 = vmatprep.subr.mxu0 0.0
  %3311 = vmatpush1.msra.mxu0 %v3150
  %3312 = vmatprep.subr.mxu0 0.0
  %3313 = vmatpush1.msra.mxu0 %v3145
  %3314 = vmatprep.subr.mxu0 0.0
  %3315 = vmatpush1.msra.mxu0 %v3140
  %3316 = vmatprep.subr.mxu0 0.0
  %3317 = vmatpush1.msra.mxu0 %v3135
  %3318 = vmatprep.subr.mxu0 0.0
  %3319 = vmatpush1.msra.mxu0 %v3130
  %3320 = vmatprep.subr.mxu0 0.0
  %3321 = vmatpush1.msra.mxu0 %v3125
  %3322 = vmatprep.subr.mxu0 0.0
  %3323 = vmatpush1.msra.mxu0 %v3120
  %3324 = vmatprep.subr.mxu0 0.0
  %3325 = vmatpush2.msra.mxu0 0.0
  %3326 = vmatprep.subr.mxu0 0.0
  %3327 = vmatpush2.msra.mxu0 0.0
  %3328 = vmatprep.subr.mxu0 0.0
  %3329 = vmatpush2.msra.mxu0 0.0
  %3330 = vmatprep.subr.mxu0 0.0
  %3331 = vmatpush2.msra.mxu0 0.0
  %3332 = vmatprep.subr.mxu0 0.0
  %3333 = vmatpush2.msra.mxu0 0.0
  %3334 = vmatprep.subr.mxu0 0.0
  %3335 = vmatpush2.msra.mxu0 0.0
  %3336 = vmatprep.subr.mxu0 0.0
  %3337 = vmatpush2.msra.mxu0 0.0
  %3338 = vmatprep.subr.mxu0 0.0
  %3339 = vmatpush2.msra.mxu0 0.0
  %3340 = vmatprep.subr.mxu0 0.0
  %3341 = vmatpush2.msra.mxu0 0.0
  %3342 = vmatprep.subr.mxu0 0.0
  %3343 = vmatpush2.msra.mxu0 0.0
  %3344 = vmatprep.subr.mxu0 0.0
  %3345 = vmatpush2.msra.mxu0 0.0
  %3346 = vmatprep.subr.mxu0 0.0
  %3347 = vmatpush2.msra.mxu0 0.0
  %3348 = vmatprep.subr.mxu0 0.0
  %3349 = vmatpush2.msra.mxu0 0.0
  %3350 = vmatprep.subr.mxu0 0.0
  %3351 = vmatpush2.msra.mxu0 0.0
  %3352 = vmatprep.subr.mxu0 0.0
  %3353 = vmatpush2.msra.mxu0 0.0
  %3354 = vmatprep.subr.mxu0 0.0
  %3355 = vmatpush2.msra.mxu0 0.0
  %3356 = vmatprep.mubr.f32.mxu0 0.0
  %3357 = vmatmul.mubr.f32.gmra.mxu0 %v3269
  %v3358 = vpop.f32.mrf.mxu0
  %v3359 = vadd.f32 0.0, %v3358
  %v3360 = vpop.f32.mrf.mxu0
  %3361 = vmatprep.mubr.f32.mxu0 0.0
  %3362 = vmatmul.mubr.f32.gmra.mxu0 %v3272
  %v3363 = vpop.f32.mrf.mxu0
  %v3364 = vadd.f32 0.0, %v3363
  %v3365 = vpop.f32.mrf.mxu0
  %3366 = vmatprep.mubr.f32.mxu0 0.0
  %3367 = vmatmul.mubr.f32.gmra.mxu0 %v3275
  %v3368 = vpop.f32.mrf.mxu0
  %v3369 = vadd.f32 0.0, %v3368
  %v3370 = vpop.f32.mrf.mxu0
  %3371 = vmatprep.mubr.f32.mxu0 0.0
  %3372 = vmatmul.mubr.f32.gmra.mxu0 %v3278
  %v3373 = vpop.f32.mrf.mxu0
  %v3374 = vadd.f32 0.0, %v3373
  %v3375 = vpop.f32.mrf.mxu0
  %3376 = vmatprep.mubr.f32.mxu0 0.0
  %3377 = vmatmul.mubr.f32.gmra.mxu0 %v3281
  %v3378 = vpop.f32.mrf.mxu0
  %v3379 = vadd.f32 0.0, %v3378
  %v3380 = vpop.f32.mrf.mxu0
  %3381 = vmatprep.mubr.f32.mxu0 0.0
  %3382 = vmatmul.mubr.f32.gmra.mxu0 %v3284
  %v3383 = vpop.f32.mrf.mxu0
  %v3384 = vadd.f32 0.0, %v3383
  %v3385 = vpop.f32.mrf.mxu0
  %3386 = vmatprep.mubr.f32.mxu0 0.0
  %3387 = vmatmul.mubr.f32.gmra.mxu0 %v3287
  %v3388 = vpop.f32.mrf.mxu0
  %v3389 = vadd.f32 0.0, %v3388
  %v3390 = vpop.f32.mrf.mxu0
  %3391 = vmatprep.mubr.f32.mxu0 0.0
  %3392 = vmatmul.mubr.f32.gmra.mxu0 %v3290
  %v3393 = vpop.f32.mrf.mxu0
  %v3394 = vadd.f32 0.0, %v3393
  %v3395 = vpop.f32.mrf.mxu0
  %3396 = vdwg.mxu0
  %v3398 = vsel %vm475, %v3040, 0
  %v3401 = vsel %vm475, %v3041, 0
  %v3404 = vsel %vm475, %v3042, 0
  %v3407 = vsel %vm475, %v3043, 0
  %v3410 = vsel %vm475, %v3044, 0
  %v3413 = vsel %vm475, %v3045, 0
  %v3416 = vsel %vm475, %v3046, 0
  %v3419 = vsel %vm475, %v3047, 0
  %3421 = vmatprep.subr.mxu0 0.0
  %3422 = vmatpush1.msra.mxu0 0.0
  %3423 = vmatprep.subr.mxu0 0.0
  %3424 = vmatpush1.msra.mxu0 0.0
  %3425 = vmatprep.subr.mxu0 0.0
  %3426 = vmatpush1.msra.mxu0 0.0
  %3427 = vmatprep.subr.mxu0 0.0
  %3428 = vmatpush1.msra.mxu0 0.0
  %3429 = vmatprep.subr.mxu0 0.0
  %3430 = vmatpush1.msra.mxu0 0.0
  %3431 = vmatprep.subr.mxu0 0.0
  %3432 = vmatpush1.msra.mxu0 0.0
  %3433 = vmatprep.subr.mxu0 0.0
  %3434 = vmatpush1.msra.mxu0 0.0
  %3435 = vmatprep.subr.mxu0 0.0
  %3436 = vmatpush1.msra.mxu0 0.0
  %3437 = vmatprep.subr.mxu0 0.0
  %3438 = vmatpush1.msra.mxu0 %v3265
  %3439 = vmatprep.subr.mxu0 0.0
  %3440 = vmatpush1.msra.mxu0 %v3260
  %3441 = vmatprep.subr.mxu0 0.0
  %3442 = vmatpush1.msra.mxu0 %v3255
  %3443 = vmatprep.subr.mxu0 0.0
  %3444 = vmatpush1.msra.mxu0 %v3250
  %3445 = vmatprep.subr.mxu0 0.0
  %3446 = vmatpush1.msra.mxu0 %v3245
  %3447 = vmatprep.subr.mxu0 0.0
  %3448 = vmatpush1.msra.mxu0 %v3240
  %3449 = vmatprep.subr.mxu0 0.0
  %3450 = vmatpush1.msra.mxu0 %v3235
  %3451 = vmatprep.subr.mxu0 0.0
  %3452 = vmatpush1.msra.mxu0 %v3230
  %3453 = vmatprep.subr.mxu0 0.0
  %3454 = vmatpush2.msra.mxu0 0.0
  %3455 = vmatprep.subr.mxu0 0.0
  %3456 = vmatpush2.msra.mxu0 0.0
  %3457 = vmatprep.subr.mxu0 0.0
  %3458 = vmatpush2.msra.mxu0 0.0
  %3459 = vmatprep.subr.mxu0 0.0
  %3460 = vmatpush2.msra.mxu0 0.0
  %3461 = vmatprep.subr.mxu0 0.0
  %3462 = vmatpush2.msra.mxu0 0.0
  %3463 = vmatprep.subr.mxu0 0.0
  %3464 = vmatpush2.msra.mxu0 0.0
  %3465 = vmatprep.subr.mxu0 0.0
  %3466 = vmatpush2.msra.mxu0 0.0
  %3467 = vmatprep.subr.mxu0 0.0
  %3468 = vmatpush2.msra.mxu0 0.0
  %3469 = vmatprep.subr.mxu0 0.0
  %3470 = vmatpush2.msra.mxu0 0.0
  %3471 = vmatprep.subr.mxu0 0.0
  %3472 = vmatpush2.msra.mxu0 0.0
  %3473 = vmatprep.subr.mxu0 0.0
  %3474 = vmatpush2.msra.mxu0 0.0
  %3475 = vmatprep.subr.mxu0 0.0
  %3476 = vmatpush2.msra.mxu0 0.0
  %3477 = vmatprep.subr.mxu0 0.0
  %3478 = vmatpush2.msra.mxu0 0.0
  %3479 = vmatprep.subr.mxu0 0.0
  %3480 = vmatpush2.msra.mxu0 0.0
  %3481 = vmatprep.subr.mxu0 0.0
  %3482 = vmatpush2.msra.mxu0 0.0
  %3483 = vmatprep.subr.mxu0 0.0
  %3484 = vmatpush2.msra.mxu0 0.0
  %3485 = vmatprep.mubr.f32.mxu0 0.0
  %3486 = vmatmul.mubr.f32.gmra.mxu0 %v3398
  %v3487 = vpop.f32.mrf.mxu0
  %v3488 = vadd.f32 0.0, %v3487
  %v3489 = vpop.f32.mrf.mxu0
  %3490 = vmatprep.mubr.f32.mxu0 0.0
  %3491 = vmatmul.mubr.f32.gmra.mxu0 %v3401
  %v3492 = vpop.f32.mrf.mxu0
  %v3493 = vadd.f32 0.0, %v3492
  %v3494 = vpop.f32.mrf.mxu0
  %3495 = vmatprep.mubr.f32.mxu0 0.0
  %3496 = vmatmul.mubr.f32.gmra.mxu0 %v3404
  %v3497 = vpop.f32.mrf.mxu0
  %v3498 = vadd.f32 0.0, %v3497
  %v3499 = vpop.f32.mrf.mxu0
  %3500 = vmatprep.mubr.f32.mxu0 0.0
  %3501 = vmatmul.mubr.f32.gmra.mxu0 %v3407
  %v3502 = vpop.f32.mrf.mxu0
  %v3503 = vadd.f32 0.0, %v3502
  %v3504 = vpop.f32.mrf.mxu0
  %3505 = vmatprep.mubr.f32.mxu0 0.0
  %3506 = vmatmul.mubr.f32.gmra.mxu0 %v3410
  %v3507 = vpop.f32.mrf.mxu0
  %v3508 = vadd.f32 0.0, %v3507
  %v3509 = vpop.f32.mrf.mxu0
  %3510 = vmatprep.mubr.f32.mxu0 0.0
  %3511 = vmatmul.mubr.f32.gmra.mxu0 %v3413
  %v3512 = vpop.f32.mrf.mxu0
  %v3513 = vadd.f32 0.0, %v3512
  %v3514 = vpop.f32.mrf.mxu0
  %3515 = vmatprep.mubr.f32.mxu0 0.0
  %3516 = vmatmul.mubr.f32.gmra.mxu0 %v3416
  %v3517 = vpop.f32.mrf.mxu0
  %v3518 = vadd.f32 0.0, %v3517
  %v3519 = vpop.f32.mrf.mxu0
  %3520 = vmatprep.mubr.f32.mxu0 0.0
  %3521 = vmatmul.mubr.f32.gmra.mxu0 %v3419
  %v3522 = vpop.f32.mrf.mxu0
  %v3523 = vadd.f32 0.0, %v3522
  %v3524 = vpop.f32.mrf.mxu0
  %3525 = vdwg.mxu0
  %v3526 = vsub.f32 %v3359, %v3488
  %v3527 = vsub.f32 %v3364, %v3493
  %v3528 = vsub.f32 %v3369, %v3498
  %v3529 = vsub.f32 %v3374, %v3503
  %v3530 = vsub.f32 %v3379, %v3508
  %v3531 = vsub.f32 %v3384, %v3513
  %v3532 = vsub.f32 %v3389, %v3518
  %v3533 = vsub.f32 %v3394, %v3523
  %vm3534 = vcmp.gt.f32.partialorder %v3526, 0.0
  %vm3535 = vcmp.gt.f32.partialorder %v3527, 0.0
  %vm3536 = vcmp.gt.f32.partialorder %v3528, 0.0
  %vm3537 = vcmp.gt.f32.partialorder %v3529, 0.0
  %vm3538 = vcmp.gt.f32.partialorder %v3530, 0.0
  %vm3539 = vcmp.gt.f32.partialorder %v3531, 0.0
  %vm3540 = vcmp.gt.f32.partialorder %v3532, 0.0
  %vm3541 = vcmp.gt.f32.partialorder %v3533, 0.0
  %v3542 = vmul.f32 %v3526, 1.442695
  %v3543 = vpow.pop %v3542
  %v3544 = vmul.f32 %v3527, 1.442695
  %v3545 = vpow.pop %v3544
  %v3546 = vmul.f32 %v3528, 1.442695
  %v3547 = vpow.pop %v3546
  %v3548 = vmul.f32 %v3529, 1.442695
  %v3549 = vpow.pop %v3548
  %v3550 = vmul.f32 %v3530, 1.442695
  %v3551 = vpow.pop %v3550
  %v3552 = vmul.f32 %v3531, 1.442695
  %v3553 = vpow.pop %v3552
  %v3554 = vmul.f32 %v3532, 1.442695
  %v3555 = vpow.pop %v3554
  %v3556 = vmul.f32 %v3533, 1.442695
  %v3557 = vpow.pop %v3556
  %v3558 = vsub.f32 %v3543, 1.0
  %v3559 = vsub.f32 %v3545, 1.0
  %v3560 = vsub.f32 %v3547, 1.0
  %v3561 = vsub.f32 %v3549, 1.0
  %v3562 = vsub.f32 %v3551, 1.0
  %v3563 = vsub.f32 %v3553, 1.0
  %v3564 = vsub.f32 %v3555, 1.0
  %v3565 = vsub.f32 %v3557, 1.0
  %v3566 = vsel %vm3534, %v3526, %v3558
  %v3567 = vsel %vm3535, %v3527, %v3559
  %v3568 = vsel %vm3536, %v3528, %v3560
  %v3569 = vsel %vm3537, %v3529, %v3561
  %v3570 = vsel %vm3538, %v3530, %v3562
  %v3571 = vsel %vm3539, %v3531, %v3563
  %v3572 = vsel %vm3540, %v3532, %v3564
  %v3573 = vsel %vm3541, %v3533, %v3565
  %3582 = vrot.lane.b32.xlu0 %v1978, 32
  %v3583 = vpop.permute.xlu0 %3582
  %3584 = vrot.lane.b32.xlu0 %v1979, 32
  %v3585 = vpop.permute.xlu0 %3584
  %3586 = vrot.lane.b32.xlu0 %v1980, 32
  %v3587 = vpop.permute.xlu0 %3586
  %3588 = vrot.lane.b32.xlu0 %v1981, 32
  %v3589 = vpop.permute.xlu0 %3588
  %3590 = vrot.lane.b32.xlu0 %v1982, 32
  %v3591 = vpop.permute.xlu0 %3590
  %3592 = vrot.lane.b32.xlu0 %v1983, 32
  %v3593 = vpop.permute.xlu0 %3592
  %3594 = vrot.lane.b32.xlu0 %v1984, 32
  %v3595 = vpop.permute.xlu0 %3594
  %3596 = vrot.lane.b32.xlu0 %v1985, 32
  %v3597 = vpop.permute.xlu0 %3596
  %3614 = vrot.lane.b32.xlu0 %v2772, 64
  %v3615 = vpop.permute.xlu0 %3614
  %3616 = vrot.lane.b32.xlu0 %v2773, 64
  %v3617 = vpop.permute.xlu0 %3616
  %3618 = vrot.lane.b32.xlu0 %v2774, 64
  %v3619 = vpop.permute.xlu0 %3618
  %3620 = vrot.lane.b32.xlu0 %v2775, 64
  %v3621 = vpop.permute.xlu0 %3620
  %3622 = vrot.lane.b32.xlu0 %v2776, 64
  %v3623 = vpop.permute.xlu0 %3622
  %3624 = vrot.lane.b32.xlu0 %v2777, 64
  %v3625 = vpop.permute.xlu0 %3624
  %3626 = vrot.lane.b32.xlu0 %v2778, 64
  %v3627 = vpop.permute.xlu0 %3626
  %3628 = vrot.lane.b32.xlu0 %v2779, 64
  %v3629 = vpop.permute.xlu0 %3628
  %3646 = vrot.lane.b32.xlu0 %v3566, 96
  %v3647 = vpop.permute.xlu0 %3646
  %3648 = vrot.lane.b32.xlu0 %v3567, 96
  %v3649 = vpop.permute.xlu0 %3648
  %3650 = vrot.lane.b32.xlu0 %v3568, 96
  %v3651 = vpop.permute.xlu0 %3650
  %3652 = vrot.lane.b32.xlu0 %v3569, 96
  %v3653 = vpop.permute.xlu0 %3652
  %3654 = vrot.lane.b32.xlu0 %v3570, 96
  %v3655 = vpop.permute.xlu0 %3654
  %3656 = vrot.lane.b32.xlu0 %v3571, 96
  %v3657 = vpop.permute.xlu0 %3656
  %3658 = vrot.lane.b32.xlu0 %v3572, 96
  %v3659 = vpop.permute.xlu0 %3658
  %3660 = vrot.lane.b32.xlu0 %v3573, 96
  %v3661 = vpop.permute.xlu0 %3660
  %v3670 = vsel %vm69, %v1184, %v3583
  %v3671 = vsel %vm69, %v1185, %v3585
  %v3672 = vsel %vm69, %v1186, %v3587
  %v3673 = vsel %vm69, %v1187, %v3589
  %v3674 = vsel %vm69, %v1188, %v3591
  %v3675 = vsel %vm69, %v1189, %v3593
  %v3676 = vsel %vm69, %v1190, %v3595
  %v3677 = vsel %vm69, %v1191, %v3597
  %v3678 = vsel %vm475, %v3670, %v3615
  %v3679 = vsel %vm475, %v3671, %v3617
  %v3680 = vsel %vm475, %v3672, %v3619
  %v3681 = vsel %vm475, %v3673, %v3621
  %v3682 = vsel %vm475, %v3674, %v3623
  %v3683 = vsel %vm475, %v3675, %v3625
  %v3684 = vsel %vm475, %v3676, %v3627
  %v3685 = vsel %vm475, %v3677, %v3629
  %vm3686 = vcmask 785408
  %v3687 = vsel %vm3686, %v3678, %v3647
  %v3688 = vsel %vm3686, %v3679, %v3649
  %v3689 = vsel %vm3686, %v3680, %v3651
  %v3690 = vsel %vm3686, %v3681, %v3653
  %v3691 = vsel %vm3686, %v3682, %v3655
  %v3692 = vsel %vm3686, %v3683, %v3657
  %v3693 = vsel %vm3686, %v3684, %v3659
  %v3694 = vsel %vm3686, %v3685, %v3661
  %v3695 = vld [vmem:[%s7] sm:$0xff]
  %v3696 = vld [vmem:[%s7 + $0x8] sm:$0xff]
  %v3697 = vld [vmem:[%s7 + $0x10] sm:$0xff]
  %v3698 = vld [vmem:[%s7 + $0x18] sm:$0xff]
  %v3699 = vld [vmem:[%s7 + $0x20] sm:$0xff]
  %v3700 = vld [vmem:[%s7 + $0x28] sm:$0xff]
  %v3701 = vld [vmem:[%s7 + $0x30] sm:$0xff]
  %v3702 = vld [vmem:[%s7 + $0x38] sm:$0xff]
  %v3703 = vld [vmem:[%s7 + $0x40] sm:$0xff]
  %v3704 = vld [vmem:[%s7 + $0x48] sm:$0xff]
  %v3705 = vld [vmem:[%s7 + $0x50] sm:$0xff]
  %v3706 = vld [vmem:[%s7 + $0x58] sm:$0xff]
  %v3707 = vld [vmem:[%s7 + $0x60] sm:$0xff]
  %v3708 = vld [vmem:[%s7 + $0x68] sm:$0xff]
  %v3709 = vld [vmem:[%s7 + $0x70] sm:$0xff]
  %v3710 = vld [vmem:[%s7 + $0x78] sm:$0xff]
  %3711 = vmatprep.subr.mxu0 0.0
  %3712 = vmatpush1.msra.mxu0 %v3710
  %3713 = vmatprep.subr.mxu0 0.0
  %3714 = vmatpush1.msra.mxu0 %v3709
  %3715 = vmatprep.subr.mxu0 0.0
  %3716 = vmatpush1.msra.mxu0 %v3708
  %3717 = vmatprep.subr.mxu0 0.0
  %3718 = vmatpush1.msra.mxu0 %v3707
  %3719 = vmatprep.subr.mxu0 0.0
  %3720 = vmatpush1.msra.mxu0 %v3706
  %3721 = vmatprep.subr.mxu0 0.0
  %3722 = vmatpush1.msra.mxu0 %v3705
  %3723 = vmatprep.subr.mxu0 0.0
  %3724 = vmatpush1.msra.mxu0 %v3704
  %3725 = vmatprep.subr.mxu0 0.0
  %3726 = vmatpush1.msra.mxu0 %v3703
  %3727 = vmatprep.subr.mxu0 0.0
  %3728 = vmatpush1.msra.mxu0 %v3702
  %3729 = vmatprep.subr.mxu0 0.0
  %3730 = vmatpush1.msra.mxu0 %v3701
  %3731 = vmatprep.subr.mxu0 0.0
  %3732 = vmatpush1.msra.mxu0 %v3700
  %3733 = vmatprep.subr.mxu0 0.0
  %3734 = vmatpush1.msra.mxu0 %v3699
  %3735 = vmatprep.subr.mxu0 0.0
  %3736 = vmatpush1.msra.mxu0 %v3698
  %3737 = vmatprep.subr.mxu0 0.0
  %3738 = vmatpush1.msra.mxu0 %v3697
  %3739 = vmatprep.subr.mxu0 0.0
  %3740 = vmatpush1.msra.mxu0 %v3696
  %3741 = vmatprep.subr.mxu0 0.0
  %3742 = vmatpush1.msra.mxu0 %v3695
  %3743 = vmatprep.subr.mxu0 0.0
  %3744 = vmatpush2.msra.mxu0 0.0
  %3745 = vmatprep.subr.mxu0 0.0
  %3746 = vmatpush2.msra.mxu0 0.0
  %3747 = vmatprep.subr.mxu0 0.0
  %3748 = vmatpush2.msra.mxu0 0.0
  %3749 = vmatprep.subr.mxu0 0.0
  %3750 = vmatpush2.msra.mxu0 0.0
  %3751 = vmatprep.subr.mxu0 0.0
  %3752 = vmatpush2.msra.mxu0 0.0
  %3753 = vmatprep.subr.mxu0 0.0
  %3754 = vmatpush2.msra.mxu0 0.0
  %3755 = vmatprep.subr.mxu0 0.0
  %3756 = vmatpush2.msra.mxu0 0.0
  %3757 = vmatprep.subr.mxu0 0.0
  %3758 = vmatpush2.msra.mxu0 0.0
  %3759 = vmatprep.subr.mxu0 0.0
  %3760 = vmatpush2.msra.mxu0 0.0
  %3761 = vmatprep.subr.mxu0 0.0
  %3762 = vmatpush2.msra.mxu0 0.0
  %3763 = vmatprep.subr.mxu0 0.0
  %3764 = vmatpush2.msra.mxu0 0.0
  %3765 = vmatprep.subr.mxu0 0.0
  %3766 = vmatpush2.msra.mxu0 0.0
  %3767 = vmatprep.subr.mxu0 0.0
  %3768 = vmatpush2.msra.mxu0 0.0
  %3769 = vmatprep.subr.mxu0 0.0
  %3770 = vmatpush2.msra.mxu0 0.0
  %3771 = vmatprep.subr.mxu0 0.0
  %3772 = vmatpush2.msra.mxu0 0.0
  %3773 = vmatprep.subr.mxu0 0.0
  %3774 = vmatpush2.msra.mxu0 0.0
  %3775 = vmatprep.mubr.f32.mxu0 0.0
  %3776 = vmatmul.mubr.f32.gmra.mxu0 %v3687
  %v3777 = vpop.f32.mrf.mxu0
  %v3778 = vadd.f32 0.0, %v3777
  %v3779 = vpop.f32.mrf.mxu0
  %3780 = vmatprep.mubr.f32.mxu0 0.0
  %3781 = vmatmul.mubr.f32.gmra.mxu0 %v3688
  %v3782 = vpop.f32.mrf.mxu0
  %v3783 = vadd.f32 0.0, %v3782
  %v3784 = vpop.f32.mrf.mxu0
  %3785 = vmatprep.mubr.f32.mxu0 0.0
  %3786 = vmatmul.mubr.f32.gmra.mxu0 %v3689
  %v3787 = vpop.f32.mrf.mxu0
  %v3788 = vadd.f32 0.0, %v3787
  %v3789 = vpop.f32.mrf.mxu0
  %3790 = vmatprep.mubr.f32.mxu0 0.0
  %3791 = vmatmul.mubr.f32.gmra.mxu0 %v3690
  %v3792 = vpop.f32.mrf.mxu0
  %v3793 = vadd.f32 0.0, %v3792
  %v3794 = vpop.f32.mrf.mxu0
  %3795 = vmatprep.mubr.f32.mxu0 0.0
  %3796 = vmatmul.mubr.f32.gmra.mxu0 %v3691
  %v3797 = vpop.f32.mrf.mxu0
  %v3798 = vadd.f32 0.0, %v3797
  %v3799 = vpop.f32.mrf.mxu0
  %3800 = vmatprep.mubr.f32.mxu0 0.0
  %3801 = vmatmul.mubr.f32.gmra.mxu0 %v3692
  %v3802 = vpop.f32.mrf.mxu0
  %v3803 = vadd.f32 0.0, %v3802
  %v3804 = vpop.f32.mrf.mxu0
  %3805 = vmatprep.mubr.f32.mxu0 0.0
  %3806 = vmatmul.mubr.f32.gmra.mxu0 %v3693
  %v3807 = vpop.f32.mrf.mxu0
  %v3808 = vadd.f32 0.0, %v3807
  %v3809 = vpop.f32.mrf.mxu0
  %3810 = vmatprep.mubr.f32.mxu0 0.0
  %3811 = vmatmul.mubr.f32.gmra.mxu0 %v3694
  %v3812 = vpop.f32.mrf.mxu0
  %v3813 = vadd.f32 0.0, %v3812
  %v3814 = vpop.f32.mrf.mxu0
  %3815 = vdwg.mxu0
  %v3816 = vld [vmem:[%s8] sm:$0xff]
  %v3817 = vld [vmem:[%s8 + $0x8] sm:$0xff]
  %v3818 = vld [vmem:[%s8 + $0x10] sm:$0xff]
  %v3819 = vld [vmem:[%s8 + $0x18] sm:$0xff]
  %v3821 = vsel %vm69, %v3778, 0
  %v3824 = vsel %vm69, %v3783, 0
  %v3827 = vsel %vm69, %v3788, 0
  %v3830 = vsel %vm69, %v3793, 0
  %v3833 = vsel %vm69, %v3798, 0
  %v3836 = vsel %vm69, %v3803, 0
  %v3839 = vsel %vm69, %v3808, 0
  %v3842 = vsel %vm69, %v3813, 0
  %3844 = vmatprep.subr.mxu0 0.0
  %3845 = vmatpush1.msra.mxu0 0.0
  %3846 = vmatprep.subr.mxu0 0.0
  %3847 = vmatpush1.msra.mxu0 0.0
  %3848 = vmatprep.subr.mxu0 0.0
  %3849 = vmatpush1.msra.mxu0 0.0
  %3850 = vmatprep.subr.mxu0 0.0
  %3851 = vmatpush1.msra.mxu0 0.0
  %3852 = vmatprep.subr.mxu0 0.0
  %3853 = vmatpush1.msra.mxu0 0.0
  %3854 = vmatprep.subr.mxu0 0.0
  %3855 = vmatpush1.msra.mxu0 0.0
  %3856 = vmatprep.subr.mxu0 0.0
  %3857 = vmatpush1.msra.mxu0 0.0
  %3858 = vmatprep.subr.mxu0 0.0
  %3859 = vmatpush1.msra.mxu0 0.0
  %3860 = vmatprep.subr.mxu0 0.0
  %3861 = vmatpush1.msra.mxu0 0.0
  %3862 = vmatprep.subr.mxu0 0.0
  %3863 = vmatpush1.msra.mxu0 0.0
  %3864 = vmatprep.subr.mxu0 0.0
  %3865 = vmatpush1.msra.mxu0 0.0
  %3866 = vmatprep.subr.mxu0 0.0
  %3867 = vmatpush1.msra.mxu0 0.0
  %3868 = vmatprep.subr.mxu0 0.0
  %3869 = vmatpush1.msra.mxu0 %v3819
  %3870 = vmatprep.subr.mxu0 0.0
  %3871 = vmatpush1.msra.mxu0 %v3818
  %3872 = vmatprep.subr.mxu0 0.0
  %3873 = vmatpush1.msra.mxu0 %v3817
  %3874 = vmatprep.subr.mxu0 0.0
  %3875 = vmatpush1.msra.mxu0 %v3816
  %3876 = vmatprep.subr.mxu0 0.0
  %3877 = vmatpush2.msra.mxu0 0.0
  %3878 = vmatprep.subr.mxu0 0.0
  %3879 = vmatpush2.msra.mxu0 0.0
  %3880 = vmatprep.subr.mxu0 0.0
  %3881 = vmatpush2.msra.mxu0 0.0
  %3882 = vmatprep.subr.mxu0 0.0
  %3883 = vmatpush2.msra.mxu0 0.0
  %3884 = vmatprep.subr.mxu0 0.0
  %3885 = vmatpush2.msra.mxu0 0.0
  %3886 = vmatprep.subr.mxu0 0.0
  %3887 = vmatpush2.msra.mxu0 0.0
  %3888 = vmatprep.subr.mxu0 0.0
  %3889 = vmatpush2.msra.mxu0 0.0
  %3890 = vmatprep.subr.mxu0 0.0
  %3891 = vmatpush2.msra.mxu0 0.0
  %3892 = vmatprep.subr.mxu0 0.0
  %3893 = vmatpush2.msra.mxu0 0.0
  %3894 = vmatprep.subr.mxu0 0.0
  %3895 = vmatpush2.msra.mxu0 0.0
  %3896 = vmatprep.subr.mxu0 0.0
  %3897 = vmatpush2.msra.mxu0 0.0
  %3898 = vmatprep.subr.mxu0 0.0
  %3899 = vmatpush2.msra.mxu0 0.0
  %3900 = vmatprep.subr.mxu0 0.0
  %3901 = vmatpush2.msra.mxu0 0.0
  %3902 = vmatprep.subr.mxu0 0.0
  %3903 = vmatpush2.msra.mxu0 0.0
  %3904 = vmatprep.subr.mxu0 0.0
  %3905 = vmatpush2.msra.mxu0 0.0
  %3906 = vmatprep.subr.mxu0 0.0
  %3907 = vmatpush2.msra.mxu0 0.0
  %3908 = vmatprep.mubr.f32.mxu0 0.0
  %3909 = vmatmul.mubr.f32.gmra.mxu0 %v3821
  %v3910 = vpop.f32.mrf.mxu0
  %v3911 = vadd.f32 0.0, %v3910
  %v3912 = vpop.f32.mrf.mxu0
  %3913 = vmatprep.mubr.f32.mxu0 0.0
  %3914 = vmatmul.mubr.f32.gmra.mxu0 %v3824
  %v3915 = vpop.f32.mrf.mxu0
  %v3916 = vadd.f32 0.0, %v3915
  %v3917 = vpop.f32.mrf.mxu0
  %3918 = vmatprep.mubr.f32.mxu0 0.0
  %3919 = vmatmul.mubr.f32.gmra.mxu0 %v3827
  %v3920 = vpop.f32.mrf.mxu0
  %v3921 = vadd.f32 0.0, %v3920
  %v3922 = vpop.f32.mrf.mxu0
  %3923 = vmatprep.mubr.f32.mxu0 0.0
  %3924 = vmatmul.mubr.f32.gmra.mxu0 %v3830
  %v3925 = vpop.f32.mrf.mxu0
  %v3926 = vadd.f32 0.0, %v3925
  %v3927 = vpop.f32.mrf.mxu0
  %3928 = vmatprep.mubr.f32.mxu0 0.0
  %3929 = vmatmul.mubr.f32.gmra.mxu0 %v3833
  %v3930 = vpop.f32.mrf.mxu0
  %v3931 = vadd.f32 0.0, %v3930
  %v3932 = vpop.f32.mrf.mxu0
  %3933 = vmatprep.mubr.f32.mxu0 0.0
  %3934 = vmatmul.mubr.f32.gmra.mxu0 %v3836
  %v3935 = vpop.f32.mrf.mxu0
  %v3936 = vadd.f32 0.0, %v3935
  %v3937 = vpop.f32.mrf.mxu0
  %3938 = vmatprep.mubr.f32.mxu0 0.0
  %3939 = vmatmul.mubr.f32.gmra.mxu0 %v3839
  %v3940 = vpop.f32.mrf.mxu0
  %v3941 = vadd.f32 0.0, %v3940
  %v3942 = vpop.f32.mrf.mxu0
  %3943 = vmatprep.mubr.f32.mxu0 0.0
  %3944 = vmatmul.mubr.f32.gmra.mxu0 %v3842
  %v3945 = vpop.f32.mrf.mxu0
  %v3946 = vadd.f32 0.0, %v3945
  %v3947 = vpop.f32.mrf.mxu0
  %3948 = vdwg.mxu0
  %v3949 = vld [vmem:[%s9] sm:$0x1]
  %v3951 = vsel %vm69, %v3949, 0
  %3953 = vmatprep.subr.mxu0 0.0
  %3954 = vmatpush1.xpose.msra.mxu0 0.0
  %3955 = vmatprep.subr.mxu0 0.0
  %3956 = vmatpush1.xpose.msra.mxu0 0.0
  %3957 = vmatprep.subr.mxu0 0.0
  %3958 = vmatpush1.xpose.msra.mxu0 0.0
  %3959 = vmatprep.subr.mxu0 0.0
  %3960 = vmatpush1.xpose.msra.mxu0 0.0
  %3961 = vmatprep.subr.mxu0 0.0
  %3962 = vmatpush1.xpose.msra.mxu0 0.0
  %3963 = vmatprep.subr.mxu0 0.0
  %3964 = vmatpush1.xpose.msra.mxu0 0.0
  %3965 = vmatprep.subr.mxu0 0.0
  %3966 = vmatpush1.xpose.msra.mxu0 0.0
  %3967 = vmatprep.subr.mxu0 0.0
  %3968 = vmatpush1.xpose.msra.mxu0 0.0
  %3969 = vmatprep.subr.mxu0 0.0
  %3970 = vmatpush1.xpose.msra.mxu0 %v3842
  %3971 = vmatprep.subr.mxu0 0.0
  %3972 = vmatpush1.xpose.msra.mxu0 %v3839
  %3973 = vmatprep.subr.mxu0 0.0
  %3974 = vmatpush1.xpose.msra.mxu0 %v3836
  %3975 = vmatprep.subr.mxu0 0.0
  %3976 = vmatpush1.xpose.msra.mxu0 %v3833
  %3977 = vmatprep.subr.mxu0 0.0
  %3978 = vmatpush1.xpose.msra.mxu0 %v3830
  %3979 = vmatprep.subr.mxu0 0.0
  %3980 = vmatpush1.xpose.msra.mxu0 %v3827
  %3981 = vmatprep.subr.mxu0 0.0
  %3982 = vmatpush1.xpose.msra.mxu0 %v3824
  %3983 = vmatprep.subr.mxu0 0.0
  %3984 = vmatpush1.xpose.msra.mxu0 %v3821
  %3985 = vmatprep.subr.mxu0 0.0
  %3986 = vmatpush2.xpose.msra.mxu0 0.0
  %3987 = vmatprep.subr.mxu0 0.0
  %3988 = vmatpush2.xpose.msra.mxu0 0.0
  %3989 = vmatprep.subr.mxu0 0.0
  %3990 = vmatpush2.xpose.msra.mxu0 0.0
  %3991 = vmatprep.subr.mxu0 0.0
  %3992 = vmatpush2.xpose.msra.mxu0 0.0
  %3993 = vmatprep.subr.mxu0 0.0
  %3994 = vmatpush2.xpose.msra.mxu0 0.0
  %3995 = vmatprep.subr.mxu0 0.0
  %3996 = vmatpush2.xpose.msra.mxu0 0.0
  %3997 = vmatprep.subr.mxu0 0.0
  %3998 = vmatpush2.xpose.msra.mxu0 0.0
  %3999 = vmatprep.subr.mxu0 0.0
  %4000 = vmatpush2.xpose.msra.mxu0 0.0
  %4001 = vmatprep.subr.mxu0 0.0
  %4002 = vmatpush2.xpose.msra.mxu0 0.0
  %4003 = vmatprep.subr.mxu0 0.0
  %4004 = vmatpush2.xpose.msra.mxu0 0.0
  %4005 = vmatprep.subr.mxu0 0.0
  %4006 = vmatpush2.xpose.msra.mxu0 0.0
  %4007 = vmatprep.subr.mxu0 0.0
  %4008 = vmatpush2.xpose.msra.mxu0 0.0
  %4009 = vmatprep.subr.mxu0 0.0
  %4010 = vmatpush2.xpose.msra.mxu0 0.0
  %4011 = vmatprep.subr.mxu0 0.0
  %4012 = vmatpush2.xpose.msra.mxu0 0.0
  %4013 = vmatprep.subr.mxu0 0.0
  %4014 = vmatpush2.xpose.msra.mxu0 0.0
  %4015 = vmatprep.subr.mxu0 0.0
  %4016 = vmatpush2.xpose.msra.mxu0 0.0
  %4017 = vmatprep.mubr.f32.mxu0 0.0
  %4018 = vmatmul.mubr.f32.gmra.mxu0 %v3951
  %v4019 = vpop.f32.mrf.mxu0
  %v4020 = vadd.f32 0.0, %v4019
  %v4021 = vpop.f32.mrf.mxu0
  %4022 = vdwg.mxu0
  %4024 = vset.pattern.permute.xlu0 0
  %4025 = vperm.xlu0 %4024, %v3911
  %v4026 = vpop.permute.xlu0 %4025
  %4029 = vset.pattern.permute.xlu0 0
  %4030 = vperm.xlu0 %4029, %v3916
  %v4031 = vpop.permute.xlu0 %4030
  %4034 = vset.pattern.permute.xlu0 0
  %4035 = vperm.xlu0 %4034, %v3921
  %v4036 = vpop.permute.xlu0 %4035
  %4039 = vset.pattern.permute.xlu0 0
  %4040 = vperm.xlu0 %4039, %v3926
  %v4041 = vpop.permute.xlu0 %4040
  %4044 = vset.pattern.permute.xlu0 0
  %4045 = vperm.xlu0 %4044, %v3931
  %v4046 = vpop.permute.xlu0 %4045
  %4049 = vset.pattern.permute.xlu0 0
  %4050 = vperm.xlu0 %4049, %v3936
  %v4051 = vpop.permute.xlu0 %4050
  %4054 = vset.pattern.permute.xlu0 0
  %4055 = vperm.xlu0 %4054, %v3941
  %v4056 = vpop.permute.xlu0 %4055
  %4059 = vset.pattern.permute.xlu0 0
  %4060 = vperm.xlu0 %4059, %v3946
  %v4061 = vpop.permute.xlu0 %4060
  %v4063 = vlaneseq
  %v4064 = vshrl.u32 %v4063, 7
  %v4065 = vsub.s32 0, %v4064
  %v4066 = vrot.slane %v4020, %v4065
  %v4067 = vadd.f32 %v4026, %v4066
  %v4068 = vadd.f32 %v4031, %v4066
  %v4069 = vadd.f32 %v4036, %v4066
  %v4070 = vadd.f32 %v4041, %v4066
  %v4071 = vadd.f32 %v4046, %v4066
  %v4072 = vadd.f32 %v4051, %v4066
  %v4073 = vadd.f32 %v4056, %v4066
  %v4074 = vadd.f32 %v4061, %v4066
  %vm4075 = vcmp.gt.f32.partialorder %v4067, 0.0
  %vm4076 = vcmp.gt.f32.partialorder %v4068, 0.0
  %vm4077 = vcmp.gt.f32.partialorder %v4069, 0.0
  %vm4078 = vcmp.gt.f32.partialorder %v4070, 0.0
  %vm4079 = vcmp.gt.f32.partialorder %v4071, 0.0
  %vm4080 = vcmp.gt.f32.partialorder %v4072, 0.0
  %vm4081 = vcmp.gt.f32.partialorder %v4073, 0.0
  %vm4082 = vcmp.gt.f32.partialorder %v4074, 0.0
  %v4083 = vmul.f32 %v4067, 0.3
  %v4084 = vmul.f32 %v4068, 0.3
  %v4085 = vmul.f32 %v4069, 0.3
  %v4086 = vmul.f32 %v4070, 0.3
  %v4087 = vmul.f32 %v4071, 0.3
  %v4088 = vmul.f32 %v4072, 0.3
  %v4089 = vmul.f32 %v4073, 0.3
  %v4090 = vmul.f32 %v4074, 0.3
  %v4091 = vsel %vm4075, %v4067, %v4083
  %v4092 = vsel %vm4076, %v4068, %v4084
  %v4093 = vsel %vm4077, %v4069, %v4085
  %v4094 = vsel %vm4078, %v4070, %v4086
  %v4095 = vsel %vm4079, %v4071, %v4087
  %v4096 = vsel %vm4080, %v4072, %v4088
  %v4097 = vsel %vm4081, %v4073, %v4089
  %v4098 = vsel %vm4082, %v4074, %v4090
  %v4099 = vsel %vm57, %v4091, -1e+12
  %v4100 = vsel %vm58, %v4092, -1e+12
  %v4101 = vsel %vm59, %v4093, -1e+12
  %v4102 = vsel %vm60, %v4094, -1e+12
  %v4103 = vsel %vm61, %v4095, -1e+12
  %v4104 = vsel %vm62, %v4096, -1e+12
  %v4105 = vsel %vm63, %v4097, -1e+12
  %v4106 = vsel %vm64, %v4098, -1e+12
  %v4107 = vsel %vm475, %v4099, -inf
  %4108 = vmax.xlane.f32.xlu0 %v4107
  %v4109 = vpop.xlane.xlu0 %4108
  %v4110 = vsel %vm475, %v4100, -inf
  %4111 = vmax.xlane.f32.xlu0 %v4110
  %v4112 = vpop.xlane.xlu0 %4111
  %v4113 = vsel %vm475, %v4101, -inf
  %4114 = vmax.xlane.f32.xlu0 %v4113
  %v4115 = vpop.xlane.xlu0 %4114
  %v4116 = vsel %vm475, %v4102, -inf
  %4117 = vmax.xlane.f32.xlu0 %v4116
  %v4118 = vpop.xlane.xlu0 %4117
  %v4119 = vsel %vm475, %v4103, -inf
  %4120 = vmax.xlane.f32.xlu0 %v4119
  %v4121 = vpop.xlane.xlu0 %4120
  %v4122 = vsel %vm475, %v4104, -inf
  %4123 = vmax.xlane.f32.xlu0 %v4122
  %v4124 = vpop.xlane.xlu0 %4123
  %v4125 = vsel %vm475, %v4105, -inf
  %4126 = vmax.xlane.f32.xlu0 %v4125
  %v4127 = vpop.xlane.xlu0 %4126
  %v4128 = vsel %vm475, %v4106, -inf
  %4129 = vmax.xlane.f32.xlu0 %v4128
  %v4130 = vpop.xlane.xlu0 %4129
  %v4131 = vsub.f32 %v4099, %v4109
  %v4132 = vsub.f32 %v4100, %v4112
  %v4133 = vsub.f32 %v4101, %v4115
  %v4134 = vsub.f32 %v4102, %v4118
  %v4135 = vsub.f32 %v4103, %v4121
  %v4136 = vsub.f32 %v4104, %v4124
  %v4137 = vsub.f32 %v4105, %v4127
  %v4138 = vsub.f32 %v4106, %v4130
  %v4139 = vmul.f32 %v4131, 1.442695
  %v4140 = vpow.pop %v4139
  %v4141 = vmul.f32 %v4132, 1.442695
  %v4142 = vpow.pop %v4141
  %v4143 = vmul.f32 %v4133, 1.442695
  %v4144 = vpow.pop %v4143
  %v4145 = vmul.f32 %v4134, 1.442695
  %v4146 = vpow.pop %v4145
  %v4147 = vmul.f32 %v4135, 1.442695
  %v4148 = vpow.pop %v4147
  %v4149 = vmul.f32 %v4136, 1.442695
  %v4150 = vpow.pop %v4149
  %v4151 = vmul.f32 %v4137, 1.442695
  %v4152 = vpow.pop %v4151
  %v4153 = vmul.f32 %v4138, 1.442695
  %v4154 = vpow.pop %v4153
  %v4155 = vsel %vm475, %v4140, 0.0
  %4156 = vadd.xlane.f32.xlu0 %v4155
  %v4157 = vpop.xlane.xlu0 %4156
  %v4158 = vsel %vm475, %v4142, 0.0
  %4159 = vadd.xlane.f32.xlu0 %v4158
  %v4160 = vpop.xlane.xlu0 %4159
  %v4161 = vsel %vm475, %v4144, 0.0
  %4162 = vadd.xlane.f32.xlu0 %v4161
  %v4163 = vpop.xlane.xlu0 %4162
  %v4164 = vsel %vm475, %v4146, 0.0
  %4165 = vadd.xlane.f32.xlu0 %v4164
  %v4166 = vpop.xlane.xlu0 %4165
  %v4167 = vsel %vm475, %v4148, 0.0
  %4168 = vadd.xlane.f32.xlu0 %v4167
  %v4169 = vpop.xlane.xlu0 %4168
  %v4170 = vsel %vm475, %v4150, 0.0
  %4171 = vadd.xlane.f32.xlu0 %v4170
  %v4172 = vpop.xlane.xlu0 %4171
  %v4173 = vsel %vm475, %v4152, 0.0
  %4174 = vadd.xlane.f32.xlu0 %v4173
  %v4175 = vpop.xlane.xlu0 %4174
  %v4176 = vsel %vm475, %v4154, 0.0
  %4177 = vadd.xlane.f32.xlu0 %v4176
  %v4178 = vpop.xlane.xlu0 %4177
  %v4179 = vrcp.pop %v4157
  %v4180 = vrcp.pop %v4160
  %v4181 = vrcp.pop %v4163
  %v4182 = vrcp.pop %v4166
  %v4183 = vrcp.pop %v4169
  %v4184 = vrcp.pop %v4172
  %v4185 = vrcp.pop %v4175
  %v4186 = vrcp.pop %v4178
  %v4187 = vmul.f32 %v4140, %v4179
  %v4188 = vmul.f32 %v4142, %v4180
  %v4189 = vmul.f32 %v4144, %v4181
  %v4190 = vmul.f32 %v4146, %v4182
  %v4191 = vmul.f32 %v4148, %v4183
  %v4192 = vmul.f32 %v4150, %v4184
  %v4193 = vmul.f32 %v4152, %v4185
  %v4194 = vmul.f32 %v4154, %v4186
  %v4195 = vsub.f32 0.0, %v4091
  %v4196 = vsub.f32 0.0, %v4092
  %v4197 = vsub.f32 0.0, %v4093
  %v4198 = vsub.f32 0.0, %v4094
  %v4199 = vsub.f32 0.0, %v4095
  %v4200 = vsub.f32 0.0, %v4096
  %v4201 = vsub.f32 0.0, %v4097
  %v4202 = vsub.f32 0.0, %v4098
  %v4203 = vsel %vm57, %v4195, -1e+12
  %v4204 = vsel %vm58, %v4196, -1e+12
  %v4205 = vsel %vm59, %v4197, -1e+12
  %v4206 = vsel %vm60, %v4198, -1e+12
  %v4207 = vsel %vm61, %v4199, -1e+12
  %v4208 = vsel %vm62, %v4200, -1e+12
  %v4209 = vsel %vm63, %v4201, -1e+12
  %v4210 = vsel %vm64, %v4202, -1e+12
  %v4211 = vsel %vm475, %v4203, -inf
  %4212 = vmax.xlane.f32.xlu0 %v4211
  %v4213 = vpop.xlane.xlu0 %4212
  %v4214 = vsel %vm475, %v4204, -inf
  %4215 = vmax.xlane.f32.xlu0 %v4214
  %v4216 = vpop.xlane.xlu0 %4215
  %v4217 = vsel %vm475, %v4205, -inf
  %4218 = vmax.xlane.f32.xlu0 %v4217
  %v4219 = vpop.xlane.xlu0 %4218
  %v4220 = vsel %vm475, %v4206, -inf
  %4221 = vmax.xlane.f32.xlu0 %v4220
  %v4222 = vpop.xlane.xlu0 %4221
  %v4223 = vsel %vm475, %v4207, -inf
  %4224 = vmax.xlane.f32.xlu0 %v4223
  %v4225 = vpop.xlane.xlu0 %4224
  %v4226 = vsel %vm475, %v4208, -inf
  %4227 = vmax.xlane.f32.xlu0 %v4226
  %v4228 = vpop.xlane.xlu0 %4227
  %v4229 = vsel %vm475, %v4209, -inf
  %4230 = vmax.xlane.f32.xlu0 %v4229
  %v4231 = vpop.xlane.xlu0 %4230
  %v4232 = vsel %vm475, %v4210, -inf
  %4233 = vmax.xlane.f32.xlu0 %v4232
  %v4234 = vpop.xlane.xlu0 %4233
  %v4235 = vsub.f32 %v4203, %v4213
  %v4236 = vsub.f32 %v4204, %v4216
  %v4237 = vsub.f32 %v4205, %v4219
  %v4238 = vsub.f32 %v4206, %v4222
  %v4239 = vsub.f32 %v4207, %v4225
  %v4240 = vsub.f32 %v4208, %v4228
  %v4241 = vsub.f32 %v4209, %v4231
  %v4242 = vsub.f32 %v4210, %v4234
  %v4243 = vmul.f32 %v4235, 1.442695
  %v4244 = vpow.pop %v4243
  %v4245 = vmul.f32 %v4236, 1.442695
  %v4246 = vpow.pop %v4245
  %v4247 = vmul.f32 %v4237, 1.442695
  %v4248 = vpow.pop %v4247
  %v4249 = vmul.f32 %v4238, 1.442695
  %v4250 = vpow.pop %v4249
  %v4251 = vmul.f32 %v4239, 1.442695
  %v4252 = vpow.pop %v4251
  %v4253 = vmul.f32 %v4240, 1.442695
  %v4254 = vpow.pop %v4253
  %v4255 = vmul.f32 %v4241, 1.442695
  %v4256 = vpow.pop %v4255
  %v4257 = vmul.f32 %v4242, 1.442695
  %v4258 = vpow.pop %v4257
  %v4259 = vsel %vm475, %v4244, 0.0
  %4260 = vadd.xlane.f32.xlu0 %v4259
  %v4261 = vpop.xlane.xlu0 %4260
  %v4262 = vsel %vm475, %v4246, 0.0
  %4263 = vadd.xlane.f32.xlu0 %v4262
  %v4264 = vpop.xlane.xlu0 %4263
  %v4265 = vsel %vm475, %v4248, 0.0
  %4266 = vadd.xlane.f32.xlu0 %v4265
  %v4267 = vpop.xlane.xlu0 %4266
  %v4268 = vsel %vm475, %v4250, 0.0
  %4269 = vadd.xlane.f32.xlu0 %v4268
  %v4270 = vpop.xlane.xlu0 %4269
  %v4271 = vsel %vm475, %v4252, 0.0
  %4272 = vadd.xlane.f32.xlu0 %v4271
  %v4273 = vpop.xlane.xlu0 %4272
  %v4274 = vsel %vm475, %v4254, 0.0
  %4275 = vadd.xlane.f32.xlu0 %v4274
  %v4276 = vpop.xlane.xlu0 %4275
  %v4277 = vsel %vm475, %v4256, 0.0
  %4278 = vadd.xlane.f32.xlu0 %v4277
  %v4279 = vpop.xlane.xlu0 %4278
  %v4280 = vsel %vm475, %v4258, 0.0
  %4281 = vadd.xlane.f32.xlu0 %v4280
  %v4282 = vpop.xlane.xlu0 %4281
  %v4283 = vrcp.pop %v4261
  %v4284 = vrcp.pop %v4264
  %v4285 = vrcp.pop %v4267
  %v4286 = vrcp.pop %v4270
  %v4287 = vrcp.pop %v4273
  %v4288 = vrcp.pop %v4276
  %v4289 = vrcp.pop %v4279
  %v4290 = vrcp.pop %v4282
  %v4291 = vmul.f32 %v4244, %v4283
  %v4292 = vmul.f32 %v4246, %v4284
  %v4293 = vmul.f32 %v4248, %v4285
  %v4294 = vmul.f32 %v4250, %v4286
  %v4295 = vmul.f32 %v4252, %v4287
  %v4296 = vmul.f32 %v4254, %v4288
  %v4297 = vmul.f32 %v4256, %v4289
  %v4298 = vmul.f32 %v4258, %v4290
  %v4299 = vld [vmem:[%s10] sm:$0xff]
  %v4300 = vld [vmem:[%s10 + $0x8] sm:$0xff]
  %v4301 = vld [vmem:[%s10 + $0x10] sm:$0xff]
  %v4302 = vld [vmem:[%s10 + $0x18] sm:$0xff]
  %v4303 = vld [vmem:[%s10 + $0x20] sm:$0xff]
  %v4304 = vld [vmem:[%s10 + $0x28] sm:$0xff]
  %v4305 = vld [vmem:[%s10 + $0x30] sm:$0xff]
  %v4306 = vld [vmem:[%s10 + $0x38] sm:$0xff]
  %v4307 = vld [vmem:[%s10 + $0x40] sm:$0xff]
  %v4308 = vld [vmem:[%s10 + $0x48] sm:$0xff]
  %v4309 = vld [vmem:[%s10 + $0x50] sm:$0xff]
  %v4310 = vld [vmem:[%s10 + $0x58] sm:$0xff]
  %v4311 = vld [vmem:[%s10 + $0x60] sm:$0xff]
  %v4312 = vld [vmem:[%s10 + $0x68] sm:$0xff]
  %v4313 = vld [vmem:[%s10 + $0x70] sm:$0xff]
  %v4314 = vld [vmem:[%s10 + $0x78] sm:$0xff]
  %4315 = vmatprep.subr.mxu0 0.0
  %4316 = vmatpush1.msra.mxu0 %v4314
  %4317 = vmatprep.subr.mxu0 0.0
  %4318 = vmatpush1.msra.mxu0 %v4313
  %4319 = vmatprep.subr.mxu0 0.0
  %4320 = vmatpush1.msra.mxu0 %v4312
  %4321 = vmatprep.subr.mxu0 0.0
  %4322 = vmatpush1.msra.mxu0 %v4311
  %4323 = vmatprep.subr.mxu0 0.0
  %4324 = vmatpush1.msra.mxu0 %v4310
  %4325 = vmatprep.subr.mxu0 0.0
  %4326 = vmatpush1.msra.mxu0 %v4309
  %4327 = vmatprep.subr.mxu0 0.0
  %4328 = vmatpush1.msra.mxu0 %v4308
  %4329 = vmatprep.subr.mxu0 0.0
  %4330 = vmatpush1.msra.mxu0 %v4307
  %4331 = vmatprep.subr.mxu0 0.0
  %4332 = vmatpush1.msra.mxu0 %v4306
  %4333 = vmatprep.subr.mxu0 0.0
  %4334 = vmatpush1.msra.mxu0 %v4305
  %4335 = vmatprep.subr.mxu0 0.0
  %4336 = vmatpush1.msra.mxu0 %v4304
  %4337 = vmatprep.subr.mxu0 0.0
  %4338 = vmatpush1.msra.mxu0 %v4303
  %4339 = vmatprep.subr.mxu0 0.0
  %4340 = vmatpush1.msra.mxu0 %v4302
  %4341 = vmatprep.subr.mxu0 0.0
  %4342 = vmatpush1.msra.mxu0 %v4301
  %4343 = vmatprep.subr.mxu0 0.0
  %4344 = vmatpush1.msra.mxu0 %v4300
  %4345 = vmatprep.subr.mxu0 0.0
  %4346 = vmatpush1.msra.mxu0 %v4299
  %4347 = vmatprep.subr.mxu0 0.0
  %4348 = vmatpush2.msra.mxu0 0.0
  %4349 = vmatprep.subr.mxu0 0.0
  %4350 = vmatpush2.msra.mxu0 0.0
  %4351 = vmatprep.subr.mxu0 0.0
  %4352 = vmatpush2.msra.mxu0 0.0
  %4353 = vmatprep.subr.mxu0 0.0
  %4354 = vmatpush2.msra.mxu0 0.0
  %4355 = vmatprep.subr.mxu0 0.0
  %4356 = vmatpush2.msra.mxu0 0.0
  %4357 = vmatprep.subr.mxu0 0.0
  %4358 = vmatpush2.msra.mxu0 0.0
  %4359 = vmatprep.subr.mxu0 0.0
  %4360 = vmatpush2.msra.mxu0 0.0
  %4361 = vmatprep.subr.mxu0 0.0
  %4362 = vmatpush2.msra.mxu0 0.0
  %4363 = vmatprep.subr.mxu0 0.0
  %4364 = vmatpush2.msra.mxu0 0.0
  %4365 = vmatprep.subr.mxu0 0.0
  %4366 = vmatpush2.msra.mxu0 0.0
  %4367 = vmatprep.subr.mxu0 0.0
  %4368 = vmatpush2.msra.mxu0 0.0
  %4369 = vmatprep.subr.mxu0 0.0
  %4370 = vmatpush2.msra.mxu0 0.0
  %4371 = vmatprep.subr.mxu0 0.0
  %4372 = vmatpush2.msra.mxu0 0.0
  %4373 = vmatprep.subr.mxu0 0.0
  %4374 = vmatpush2.msra.mxu0 0.0
  %4375 = vmatprep.subr.mxu0 0.0
  %4376 = vmatpush2.msra.mxu0 0.0
  %4377 = vmatprep.subr.mxu0 0.0
  %4378 = vmatpush2.msra.mxu0 0.0
  %4379 = vmatprep.mubr.f32.mxu0 0.0
  %4380 = vmatmul.mubr.f32.gmra.mxu0 %v3687
  %v4381 = vpop.f32.mrf.mxu0
  %v4382 = vadd.f32 0.0, %v4381
  %v4383 = vpop.f32.mrf.mxu0
  %4384 = vmatprep.mubr.f32.mxu0 0.0
  %4385 = vmatmul.mubr.f32.gmra.mxu0 %v3688
  %v4386 = vpop.f32.mrf.mxu0
  %v4387 = vadd.f32 0.0, %v4386
  %v4388 = vpop.f32.mrf.mxu0
  %4389 = vmatprep.mubr.f32.mxu0 0.0
  %4390 = vmatmul.mubr.f32.gmra.mxu0 %v3689
  %v4391 = vpop.f32.mrf.mxu0
  %v4392 = vadd.f32 0.0, %v4391
  %v4393 = vpop.f32.mrf.mxu0
  %4394 = vmatprep.mubr.f32.mxu0 0.0
  %4395 = vmatmul.mubr.f32.gmra.mxu0 %v3690
  %v4396 = vpop.f32.mrf.mxu0
  %v4397 = vadd.f32 0.0, %v4396
  %v4398 = vpop.f32.mrf.mxu0
  %4399 = vmatprep.mubr.f32.mxu0 0.0
  %4400 = vmatmul.mubr.f32.gmra.mxu0 %v3691
  %v4401 = vpop.f32.mrf.mxu0
  %v4402 = vadd.f32 0.0, %v4401
  %v4403 = vpop.f32.mrf.mxu0
  %4404 = vmatprep.mubr.f32.mxu0 0.0
  %4405 = vmatmul.mubr.f32.gmra.mxu0 %v3692
  %v4406 = vpop.f32.mrf.mxu0
  %v4407 = vadd.f32 0.0, %v4406
  %v4408 = vpop.f32.mrf.mxu0
  %4409 = vmatprep.mubr.f32.mxu0 0.0
  %4410 = vmatmul.mubr.f32.gmra.mxu0 %v3693
  %v4411 = vpop.f32.mrf.mxu0
  %v4412 = vadd.f32 0.0, %v4411
  %v4413 = vpop.f32.mrf.mxu0
  %4414 = vmatprep.mubr.f32.mxu0 0.0
  %4415 = vmatmul.mubr.f32.gmra.mxu0 %v3694
  %v4416 = vpop.f32.mrf.mxu0
  %v4417 = vadd.f32 0.0, %v4416
  %v4418 = vpop.f32.mrf.mxu0
  %4419 = vdwg.mxu0
  %v4420 = vld [vmem:[%s11] sm:$0xff]
  %v4421 = vld [vmem:[%s11 + $0x8] sm:$0xff]
  %v4422 = vld [vmem:[%s11 + $0x10] sm:$0xff]
  %v4423 = vld [vmem:[%s11 + $0x18] sm:$0xff]
  %v4424 = vld [vmem:[%s11 + $0x20] sm:$0xff]
  %v4425 = vld [vmem:[%s11 + $0x28] sm:$0xff]
  %v4426 = vld [vmem:[%s11 + $0x30] sm:$0xff]
  %v4427 = vld [vmem:[%s11 + $0x38] sm:$0xff]
  %v4428 = vld [vmem:[%s11 + $0x40] sm:$0xff]
  %v4429 = vld [vmem:[%s11 + $0x48] sm:$0xff]
  %v4430 = vld [vmem:[%s11 + $0x50] sm:$0xff]
  %v4431 = vld [vmem:[%s11 + $0x58] sm:$0xff]
  %v4432 = vld [vmem:[%s11 + $0x60] sm:$0xff]
  %v4433 = vld [vmem:[%s11 + $0x68] sm:$0xff]
  %v4434 = vld [vmem:[%s11 + $0x70] sm:$0xff]
  %v4435 = vld [vmem:[%s11 + $0x78] sm:$0xff]
  %4436 = vmatprep.subr.mxu0 0.0
  %4437 = vmatpush1.msra.mxu0 %v4435
  %4438 = vmatprep.subr.mxu0 0.0
  %4439 = vmatpush1.msra.mxu0 %v4434
  %4440 = vmatprep.subr.mxu0 0.0
  %4441 = vmatpush1.msra.mxu0 %v4433
  %4442 = vmatprep.subr.mxu0 0.0
  %4443 = vmatpush1.msra.mxu0 %v4432
  %4444 = vmatprep.subr.mxu0 0.0
  %4445 = vmatpush1.msra.mxu0 %v4431
  %4446 = vmatprep.subr.mxu0 0.0
  %4447 = vmatpush1.msra.mxu0 %v4430
  %4448 = vmatprep.subr.mxu0 0.0
  %4449 = vmatpush1.msra.mxu0 %v4429
  %4450 = vmatprep.subr.mxu0 0.0
  %4451 = vmatpush1.msra.mxu0 %v4428
  %4452 = vmatprep.subr.mxu0 0.0
  %4453 = vmatpush1.msra.mxu0 %v4427
  %4454 = vmatprep.subr.mxu0 0.0
  %4455 = vmatpush1.msra.mxu0 %v4426
  %4456 = vmatprep.subr.mxu0 0.0
  %4457 = vmatpush1.msra.mxu0 %v4425
  %4458 = vmatprep.subr.mxu0 0.0
  %4459 = vmatpush1.msra.mxu0 %v4424
  %4460 = vmatprep.subr.mxu0 0.0
  %4461 = vmatpush1.msra.mxu0 %v4423
  %4462 = vmatprep.subr.mxu0 0.0
  %4463 = vmatpush1.msra.mxu0 %v4422
  %4464 = vmatprep.subr.mxu0 0.0
  %4465 = vmatpush1.msra.mxu0 %v4421
  %4466 = vmatprep.subr.mxu0 0.0
  %4467 = vmatpush1.msra.mxu0 %v4420
  %4468 = vmatprep.subr.mxu0 0.0
  %4469 = vmatpush2.msra.mxu0 0.0
  %4470 = vmatprep.subr.mxu0 0.0
  %4471 = vmatpush2.msra.mxu0 0.0
  %4472 = vmatprep.subr.mxu0 0.0
  %4473 = vmatpush2.msra.mxu0 0.0
  %4474 = vmatprep.subr.mxu0 0.0
  %4475 = vmatpush2.msra.mxu0 0.0
  %4476 = vmatprep.subr.mxu0 0.0
  %4477 = vmatpush2.msra.mxu0 0.0
  %4478 = vmatprep.subr.mxu0 0.0
  %4479 = vmatpush2.msra.mxu0 0.0
  %4480 = vmatprep.subr.mxu0 0.0
  %4481 = vmatpush2.msra.mxu0 0.0
  %4482 = vmatprep.subr.mxu0 0.0
  %4483 = vmatpush2.msra.mxu0 0.0
  %4484 = vmatprep.subr.mxu0 0.0
  %4485 = vmatpush2.msra.mxu0 0.0
  %4486 = vmatprep.subr.mxu0 0.0
  %4487 = vmatpush2.msra.mxu0 0.0
  %4488 = vmatprep.subr.mxu0 0.0
  %4489 = vmatpush2.msra.mxu0 0.0
  %4490 = vmatprep.subr.mxu0 0.0
  %4491 = vmatpush2.msra.mxu0 0.0
  %4492 = vmatprep.subr.mxu0 0.0
  %4493 = vmatpush2.msra.mxu0 0.0
  %4494 = vmatprep.subr.mxu0 0.0
  %4495 = vmatpush2.msra.mxu0 0.0
  %4496 = vmatprep.subr.mxu0 0.0
  %4497 = vmatpush2.msra.mxu0 0.0
  %4498 = vmatprep.subr.mxu0 0.0
  %4499 = vmatpush2.msra.mxu0 0.0
  %4500 = vmatprep.mubr.f32.mxu0 0.0
  %4501 = vmatmul.mubr.f32.gmra.mxu0 %v3687
  %v4502 = vpop.f32.mrf.mxu0
  %v4503 = vadd.f32 0.0, %v4502
  %v4504 = vpop.f32.mrf.mxu0
  %4505 = vmatprep.mubr.f32.mxu0 0.0
  %4506 = vmatmul.mubr.f32.gmra.mxu0 %v3688
  %v4507 = vpop.f32.mrf.mxu0
  %v4508 = vadd.f32 0.0, %v4507
  %v4509 = vpop.f32.mrf.mxu0
  %4510 = vmatprep.mubr.f32.mxu0 0.0
  %4511 = vmatmul.mubr.f32.gmra.mxu0 %v3689
  %v4512 = vpop.f32.mrf.mxu0
  %v4513 = vadd.f32 0.0, %v4512
  %v4514 = vpop.f32.mrf.mxu0
  %4515 = vmatprep.mubr.f32.mxu0 0.0
  %4516 = vmatmul.mubr.f32.gmra.mxu0 %v3690
  %v4517 = vpop.f32.mrf.mxu0
  %v4518 = vadd.f32 0.0, %v4517
  %v4519 = vpop.f32.mrf.mxu0
  %4520 = vmatprep.mubr.f32.mxu0 0.0
  %4521 = vmatmul.mubr.f32.gmra.mxu0 %v3691
  %v4522 = vpop.f32.mrf.mxu0
  %v4523 = vadd.f32 0.0, %v4522
  %v4524 = vpop.f32.mrf.mxu0
  %4525 = vmatprep.mubr.f32.mxu0 0.0
  %4526 = vmatmul.mubr.f32.gmra.mxu0 %v3692
  %v4527 = vpop.f32.mrf.mxu0
  %v4528 = vadd.f32 0.0, %v4527
  %v4529 = vpop.f32.mrf.mxu0
  %4530 = vmatprep.mubr.f32.mxu0 0.0
  %4531 = vmatmul.mubr.f32.gmra.mxu0 %v3693
  %v4532 = vpop.f32.mrf.mxu0
  %v4533 = vadd.f32 0.0, %v4532
  %v4534 = vpop.f32.mrf.mxu0
  %4535 = vmatprep.mubr.f32.mxu0 0.0
  %4536 = vmatmul.mubr.f32.gmra.mxu0 %v3694
  %v4537 = vpop.f32.mrf.mxu0
  %v4538 = vadd.f32 0.0, %v4537
  %v4539 = vpop.f32.mrf.mxu0
  %4540 = vdwg.mxu0
  %v4542 = vsel %vm475, %v4187, 0
  %v4545 = vsel %vm475, %v4188, 0
  %v4548 = vsel %vm475, %v4189, 0
  %v4551 = vsel %vm475, %v4190, 0
  %v4554 = vsel %vm475, %v4191, 0
  %v4557 = vsel %vm475, %v4192, 0
  %v4560 = vsel %vm475, %v4193, 0
  %v4563 = vsel %vm475, %v4194, 0
  %4565 = vmatprep.subr.mxu0 0.0
  %4566 = vmatpush1.msra.mxu0 0.0
  %4567 = vmatprep.subr.mxu0 0.0
  %4568 = vmatpush1.msra.mxu0 0.0
  %4569 = vmatprep.subr.mxu0 0.0
  %4570 = vmatpush1.msra.mxu0 0.0
  %4571 = vmatprep.subr.mxu0 0.0
  %4572 = vmatpush1.msra.mxu0 0.0
  %4573 = vmatprep.subr.mxu0 0.0
  %4574 = vmatpush1.msra.mxu0 0.0
  %4575 = vmatprep.subr.mxu0 0.0
  %4576 = vmatpush1.msra.mxu0 0.0
  %4577 = vmatprep.subr.mxu0 0.0
  %4578 = vmatpush1.msra.mxu0 0.0
  %4579 = vmatprep.subr.mxu0 0.0
  %4580 = vmatpush1.msra.mxu0 0.0
  %4581 = vmatprep.subr.mxu0 0.0
  %4582 = vmatpush1.msra.mxu0 %v4417
  %4583 = vmatprep.subr.mxu0 0.0
  %4584 = vmatpush1.msra.mxu0 %v4412
  %4585 = vmatprep.subr.mxu0 0.0
  %4586 = vmatpush1.msra.mxu0 %v4407
  %4587 = vmatprep.subr.mxu0 0.0
  %4588 = vmatpush1.msra.mxu0 %v4402
  %4589 = vmatprep.subr.mxu0 0.0
  %4590 = vmatpush1.msra.mxu0 %v4397
  %4591 = vmatprep.subr.mxu0 0.0
  %4592 = vmatpush1.msra.mxu0 %v4392
  %4593 = vmatprep.subr.mxu0 0.0
  %4594 = vmatpush1.msra.mxu0 %v4387
  %4595 = vmatprep.subr.mxu0 0.0
  %4596 = vmatpush1.msra.mxu0 %v4382
  %4597 = vmatprep.subr.mxu0 0.0
  %4598 = vmatpush2.msra.mxu0 0.0
  %4599 = vmatprep.subr.mxu0 0.0
  %4600 = vmatpush2.msra.mxu0 0.0
  %4601 = vmatprep.subr.mxu0 0.0
  %4602 = vmatpush2.msra.mxu0 0.0
  %4603 = vmatprep.subr.mxu0 0.0
  %4604 = vmatpush2.msra.mxu0 0.0
  %4605 = vmatprep.subr.mxu0 0.0
  %4606 = vmatpush2.msra.mxu0 0.0
  %4607 = vmatprep.subr.mxu0 0.0
  %4608 = vmatpush2.msra.mxu0 0.0
  %4609 = vmatprep.subr.mxu0 0.0
  %4610 = vmatpush2.msra.mxu0 0.0
  %4611 = vmatprep.subr.mxu0 0.0
  %4612 = vmatpush2.msra.mxu0 0.0
  %4613 = vmatprep.subr.mxu0 0.0
  %4614 = vmatpush2.msra.mxu0 0.0
  %4615 = vmatprep.subr.mxu0 0.0
  %4616 = vmatpush2.msra.mxu0 0.0
  %4617 = vmatprep.subr.mxu0 0.0
  %4618 = vmatpush2.msra.mxu0 0.0
  %4619 = vmatprep.subr.mxu0 0.0
  %4620 = vmatpush2.msra.mxu0 0.0
  %4621 = vmatprep.subr.mxu0 0.0
  %4622 = vmatpush2.msra.mxu0 0.0
  %4623 = vmatprep.subr.mxu0 0.0
  %4624 = vmatpush2.msra.mxu0 0.0
  %4625 = vmatprep.subr.mxu0 0.0
  %4626 = vmatpush2.msra.mxu0 0.0
  %4627 = vmatprep.subr.mxu0 0.0
  %4628 = vmatpush2.msra.mxu0 0.0
  %4629 = vmatprep.mubr.f32.mxu0 0.0
  %4630 = vmatmul.mubr.f32.gmra.mxu0 %v4542
  %v4631 = vpop.f32.mrf.mxu0
  %v4632 = vadd.f32 0.0, %v4631
  %v4633 = vpop.f32.mrf.mxu0
  %4634 = vmatprep.mubr.f32.mxu0 0.0
  %4635 = vmatmul.mubr.f32.gmra.mxu0 %v4545
  %v4636 = vpop.f32.mrf.mxu0
  %v4637 = vadd.f32 0.0, %v4636
  %v4638 = vpop.f32.mrf.mxu0
  %4639 = vmatprep.mubr.f32.mxu0 0.0
  %4640 = vmatmul.mubr.f32.gmra.mxu0 %v4548
  %v4641 = vpop.f32.mrf.mxu0
  %v4642 = vadd.f32 0.0, %v4641
  %v4643 = vpop.f32.mrf.mxu0
  %4644 = vmatprep.mubr.f32.mxu0 0.0
  %4645 = vmatmul.mubr.f32.gmra.mxu0 %v4551
  %v4646 = vpop.f32.mrf.mxu0
  %v4647 = vadd.f32 0.0, %v4646
  %v4648 = vpop.f32.mrf.mxu0
  %4649 = vmatprep.mubr.f32.mxu0 0.0
  %4650 = vmatmul.mubr.f32.gmra.mxu0 %v4554
  %v4651 = vpop.f32.mrf.mxu0
  %v4652 = vadd.f32 0.0, %v4651
  %v4653 = vpop.f32.mrf.mxu0
  %4654 = vmatprep.mubr.f32.mxu0 0.0
  %4655 = vmatmul.mubr.f32.gmra.mxu0 %v4557
  %v4656 = vpop.f32.mrf.mxu0
  %v4657 = vadd.f32 0.0, %v4656
  %v4658 = vpop.f32.mrf.mxu0
  %4659 = vmatprep.mubr.f32.mxu0 0.0
  %4660 = vmatmul.mubr.f32.gmra.mxu0 %v4560
  %v4661 = vpop.f32.mrf.mxu0
  %v4662 = vadd.f32 0.0, %v4661
  %v4663 = vpop.f32.mrf.mxu0
  %4664 = vmatprep.mubr.f32.mxu0 0.0
  %4665 = vmatmul.mubr.f32.gmra.mxu0 %v4563
  %v4666 = vpop.f32.mrf.mxu0
  %v4667 = vadd.f32 0.0, %v4666
  %v4668 = vpop.f32.mrf.mxu0
  %4669 = vdwg.mxu0
  %v4671 = vsel %vm475, %v4291, 0
  %v4674 = vsel %vm475, %v4292, 0
  %v4677 = vsel %vm475, %v4293, 0
  %v4680 = vsel %vm475, %v4294, 0
  %v4683 = vsel %vm475, %v4295, 0
  %v4686 = vsel %vm475, %v4296, 0
  %v4689 = vsel %vm475, %v4297, 0
  %v4692 = vsel %vm475, %v4298, 0
  %4694 = vmatprep.subr.mxu0 0.0
  %4695 = vmatpush1.msra.mxu0 0.0
  %4696 = vmatprep.subr.mxu0 0.0
  %4697 = vmatpush1.msra.mxu0 0.0
  %4698 = vmatprep.subr.mxu0 0.0
  %4699 = vmatpush1.msra.mxu0 0.0
  %4700 = vmatprep.subr.mxu0 0.0
  %4701 = vmatpush1.msra.mxu0 0.0
  %4702 = vmatprep.subr.mxu0 0.0
  %4703 = vmatpush1.msra.mxu0 0.0
  %4704 = vmatprep.subr.mxu0 0.0
  %4705 = vmatpush1.msra.mxu0 0.0
  %4706 = vmatprep.subr.mxu0 0.0
  %4707 = vmatpush1.msra.mxu0 0.0
  %4708 = vmatprep.subr.mxu0 0.0
  %4709 = vmatpush1.msra.mxu0 0.0
  %4710 = vmatprep.subr.mxu0 0.0
  %4711 = vmatpush1.msra.mxu0 %v4538
  %4712 = vmatprep.subr.mxu0 0.0
  %4713 = vmatpush1.msra.mxu0 %v4533
  %4714 = vmatprep.subr.mxu0 0.0
  %4715 = vmatpush1.msra.mxu0 %v4528
  %4716 = vmatprep.subr.mxu0 0.0
  %4717 = vmatpush1.msra.mxu0 %v4523
  %4718 = vmatprep.subr.mxu0 0.0
  %4719 = vmatpush1.msra.mxu0 %v4518
  %4720 = vmatprep.subr.mxu0 0.0
  %4721 = vmatpush1.msra.mxu0 %v4513
  %4722 = vmatprep.subr.mxu0 0.0
  %4723 = vmatpush1.msra.mxu0 %v4508
  %4724 = vmatprep.subr.mxu0 0.0
  %4725 = vmatpush1.msra.mxu0 %v4503
  %4726 = vmatprep.subr.mxu0 0.0
  %4727 = vmatpush2.msra.mxu0 0.0
  %4728 = vmatprep.subr.mxu0 0.0
  %4729 = vmatpush2.msra.mxu0 0.0
  %4730 = vmatprep.subr.mxu0 0.0
  %4731 = vmatpush2.msra.mxu0 0.0
  %4732 = vmatprep.subr.mxu0 0.0
  %4733 = vmatpush2.msra.mxu0 0.0
  %4734 = vmatprep.subr.mxu0 0.0
  %4735 = vmatpush2.msra.mxu0 0.0
  %4736 = vmatprep.subr.mxu0 0.0
  %4737 = vmatpush2.msra.mxu0 0.0
  %4738 = vmatprep.subr.mxu0 0.0
  %4739 = vmatpush2.msra.mxu0 0.0
  %4740 = vmatprep.subr.mxu0 0.0
  %4741 = vmatpush2.msra.mxu0 0.0
  %4742 = vmatprep.subr.mxu0 0.0
  %4743 = vmatpush2.msra.mxu0 0.0
  %4744 = vmatprep.subr.mxu0 0.0
  %4745 = vmatpush2.msra.mxu0 0.0
  %4746 = vmatprep.subr.mxu0 0.0
  %4747 = vmatpush2.msra.mxu0 0.0
  %4748 = vmatprep.subr.mxu0 0.0
  %4749 = vmatpush2.msra.mxu0 0.0
  %4750 = vmatprep.subr.mxu0 0.0
  %4751 = vmatpush2.msra.mxu0 0.0
  %4752 = vmatprep.subr.mxu0 0.0
  %4753 = vmatpush2.msra.mxu0 0.0
  %4754 = vmatprep.subr.mxu0 0.0
  %4755 = vmatpush2.msra.mxu0 0.0
  %4756 = vmatprep.subr.mxu0 0.0
  %4757 = vmatpush2.msra.mxu0 0.0
  %4758 = vmatprep.mubr.f32.mxu0 0.0
  %4759 = vmatmul.mubr.f32.gmra.mxu0 %v4671
  %v4760 = vpop.f32.mrf.mxu0
  %v4761 = vadd.f32 0.0, %v4760
  %v4762 = vpop.f32.mrf.mxu0
  %4763 = vmatprep.mubr.f32.mxu0 0.0
  %4764 = vmatmul.mubr.f32.gmra.mxu0 %v4674
  %v4765 = vpop.f32.mrf.mxu0
  %v4766 = vadd.f32 0.0, %v4765
  %v4767 = vpop.f32.mrf.mxu0
  %4768 = vmatprep.mubr.f32.mxu0 0.0
  %4769 = vmatmul.mubr.f32.gmra.mxu0 %v4677
  %v4770 = vpop.f32.mrf.mxu0
  %v4771 = vadd.f32 0.0, %v4770
  %v4772 = vpop.f32.mrf.mxu0
  %4773 = vmatprep.mubr.f32.mxu0 0.0
  %4774 = vmatmul.mubr.f32.gmra.mxu0 %v4680
  %v4775 = vpop.f32.mrf.mxu0
  %v4776 = vadd.f32 0.0, %v4775
  %v4777 = vpop.f32.mrf.mxu0
  %4778 = vmatprep.mubr.f32.mxu0 0.0
  %4779 = vmatmul.mubr.f32.gmra.mxu0 %v4683
  %v4780 = vpop.f32.mrf.mxu0
  %v4781 = vadd.f32 0.0, %v4780
  %v4782 = vpop.f32.mrf.mxu0
  %4783 = vmatprep.mubr.f32.mxu0 0.0
  %4784 = vmatmul.mubr.f32.gmra.mxu0 %v4686
  %v4785 = vpop.f32.mrf.mxu0
  %v4786 = vadd.f32 0.0, %v4785
  %v4787 = vpop.f32.mrf.mxu0
  %4788 = vmatprep.mubr.f32.mxu0 0.0
  %4789 = vmatmul.mubr.f32.gmra.mxu0 %v4689
  %v4790 = vpop.f32.mrf.mxu0
  %v4791 = vadd.f32 0.0, %v4790
  %v4792 = vpop.f32.mrf.mxu0
  %4793 = vmatprep.mubr.f32.mxu0 0.0
  %4794 = vmatmul.mubr.f32.gmra.mxu0 %v4692
  %v4795 = vpop.f32.mrf.mxu0
  %v4796 = vadd.f32 0.0, %v4795
  %v4797 = vpop.f32.mrf.mxu0
  %4798 = vdwg.mxu0
  %v4799 = vsub.f32 %v4632, %v4761
  %v4800 = vsub.f32 %v4637, %v4766
  %v4801 = vsub.f32 %v4642, %v4771
  %v4802 = vsub.f32 %v4647, %v4776
  %v4803 = vsub.f32 %v4652, %v4781
  %v4804 = vsub.f32 %v4657, %v4786
  %v4805 = vsub.f32 %v4662, %v4791
  %v4806 = vsub.f32 %v4667, %v4796
  %v4807 = vsub.f32 0.0, %v4799
  %v4808 = vsub.f32 0.0, %v4800
  %v4809 = vsub.f32 0.0, %v4801
  %v4810 = vsub.f32 0.0, %v4802
  %v4811 = vsub.f32 0.0, %v4803
  %v4812 = vsub.f32 0.0, %v4804
  %v4813 = vsub.f32 0.0, %v4805
  %v4814 = vsub.f32 0.0, %v4806
  %v4815 = vmul.f32 %v4807, 1.442695
  %v4816 = vpow.pop %v4815
  %v4817 = vmul.f32 %v4808, 1.442695
  %v4818 = vpow.pop %v4817
  %v4819 = vmul.f32 %v4809, 1.442695
  %v4820 = vpow.pop %v4819
  %v4821 = vmul.f32 %v4810, 1.442695
  %v4822 = vpow.pop %v4821
  %v4823 = vmul.f32 %v4811, 1.442695
  %v4824 = vpow.pop %v4823
  %v4825 = vmul.f32 %v4812, 1.442695
  %v4826 = vpow.pop %v4825
  %v4827 = vmul.f32 %v4813, 1.442695
  %v4828 = vpow.pop %v4827
  %v4829 = vmul.f32 %v4814, 1.442695
  %v4830 = vpow.pop %v4829
  %v4831 = vadd.f32 %v4816, 1.0
  %v4832 = vadd.f32 %v4818, 1.0
  %v4833 = vadd.f32 %v4820, 1.0
  %v4834 = vadd.f32 %v4822, 1.0
  %v4835 = vadd.f32 %v4824, 1.0
  %v4836 = vadd.f32 %v4826, 1.0
  %v4837 = vadd.f32 %v4828, 1.0
  %v4838 = vadd.f32 %v4830, 1.0
  %v4839 = vrcp.pop %v4831
  %v4840 = vmul.f32 1.0, %v4839
  %v4841 = vrcp.pop %v4832
  %v4842 = vmul.f32 1.0, %v4841
  %v4843 = vrcp.pop %v4833
  %v4844 = vmul.f32 1.0, %v4843
  %v4845 = vrcp.pop %v4834
  %v4846 = vmul.f32 1.0, %v4845
  %v4847 = vrcp.pop %v4835
  %v4848 = vmul.f32 1.0, %v4847
  %v4849 = vrcp.pop %v4836
  %v4850 = vmul.f32 1.0, %v4849
  %v4851 = vrcp.pop %v4837
  %v4852 = vmul.f32 1.0, %v4851
  %v4853 = vrcp.pop %v4838
  %v4854 = vmul.f32 1.0, %v4853
  %4855 = vst.msk [vmem:[%s12] sm:$0xff] %vm69, %v4840
  %4856 = vst.msk [vmem:[%s12 + $0x8] sm:$0xff] %vm69, %v4842
  %4857 = vst.msk [vmem:[%s12 + $0x10] sm:$0xff] %vm69, %v4844
  %4858 = vst.msk [vmem:[%s12 + $0x18] sm:$0xff] %vm69, %v4846
  %4859 = vst.msk [vmem:[%s12 + $0x20] sm:$0xff] %vm69, %v4848
  %4860 = vst.msk [vmem:[%s12 + $0x28] sm:$0xff] %vm69, %v4850
  %4861 = vst.msk [vmem:[%s12 + $0x30] sm:$0xff] %vm69, %v4852
  %4862 = vst.msk [vmem:[%s12 + $0x38] sm:$0xff] %vm69, %v4854
  // Predicated region
  $region50: #{tpu_custom_call.1} parent=0 // pred_check
    _
  $region51: #{tpu_custom_call.1} parent=0 // pred_check_branch
    %4864 = sbr.rel (0) target = $region53
  $region52: #{tpu_custom_call.1} parent=0 // pred_region
    _
  $region53: #{tpu_custom_call.1} parent=0 // pred_fallthru
    _
  // Predicated region
  $region54: #{tpu_custom_call.1} parent=0 // pred_check
    _
  $region55: #{tpu_custom_call.1} parent=0 // pred_check_branch
    %4866 = sbr.rel (0) target = $region57
  $region56: #{tpu_custom_call.1} parent=0 // pred_region
    _
  $region57: #{tpu_custom_call.1} parent=0 // pred_fallthru
    _

</llo_original>
